<compile_context>
chip_gen: v7x
topology: tpu7x:2x2x1
jax: 0.10.0
libtpu: 0.0.40
codegen_flags: <defaults>
</compile_context>

<pallas_src>
import jax
import jax.numpy as jnp
from jax.experimental import pallas as pl
from jax.experimental.pallas import tpu as pltpu


def _round_up(x, m):
    return ((x + m - 1) // m) * m


def _halo_pad(row_tile, halo):
    """Smallest h >= max(halo, 1) that divides row_tile.

    This lets the halo rows of a tile be fetched with a plain Blocked BlockSpec
    (block index = (t+1) * row_tile / h) instead of overlapping windows.
    """
    h = max(halo, 1)
    while row_tile % h:
        h += 1
    return h


def _tile_bytes(shape, itemsize):
    """Approx VMEM bytes: last two dims padded to the (8, 128) register tile."""
    lead = 1
    for d in shape[:-2]:
        lead *= d
    return lead * _round_up(shape[-2], 8) * _round_up(shape[-1], 128) * itemsize


def _vmem_bytes(toh, halo_pad, P, WQ, Cin, OWP, Coutp, KH, KW, in_item, out_item):
    inp = _tile_bytes((P, toh, WQ, Cin), in_item)              # main input block
    hal = _tile_bytes((P, halo_pad, WQ, Cin), in_item)         # halo input block
    win = _tile_bytes((P, toh + halo_pad, WQ, Cin), in_item)   # assembled window scratch
    out = _tile_bytes((toh, OWP, Coutp), out_item)             # output block
    wgt = _tile_bytes((KH * KW, Cin, Coutp), in_item)          # resident weights
    acc = _tile_bytes((toh * OWP, Coutp), 4)                   # f32 accumulator
    # Inputs / outputs / weights are double-buffered by the Pallas pipeline.
    return 2 * (inp + hal + out + wgt) + win + 2 * acc + (1 << 16)


def _choose_row_tile(OH, N, P, WQ, Cin, OWP, Coutp, KH, KW, halo,
                     in_item, out_item, budget_bytes):
    """Largest multiple-of-8 output-row tile that keeps the accumulator small
    and the per-step footprint within the VMEM budget."""
    max_rows = _round_up(OH, 8)
    if N < 2 and OH > 8:
        # Keep >=2 spatial tiles so a second TensorCore (v7x) has work at batch 1.
        max_rows = max(8, _round_up((OH + 1) // 2, 8))
    best = 8
    toh = 8
    while toh <= max_rows:
        hp = _halo_pad(toh, halo)
        acc_ok = toh * OWP * Coutp * 4 <= 512 * 1024   # M_tile ~ 256-1024 for Coutp=128
        fits = _vmem_bytes(toh, hp, P, WQ, Cin, OWP, Coutp, KH, KW,
                           in_item, out_item) <= budget_bytes
        if acc_ok and fits:
            best = toh
        toh += 8
    return best


def _make_conv2d_kernel(KH, KW, SH, SW, P, TOH, OWP, HALO_PAD):
    """Builds the Pallas kernel for fixed (static) conv geometry."""

    def kernel(xm_ref, xh_ref, w_ref, b_ref, o_ref, win_ref):
        # xm_ref: (1, P, TOH, WQ, Cin)       main row slab of the phase input
        # xh_ref: (1, P, HALO_PAD, WQ, Cin)  halo rows (start of the next slab)
        # w_ref:  (KH, KW, Cin, Coutp)       HWIO weights (VMEM resident)
        # b_ref:  (1, Coutp)                 f32 bias
        # o_ref:  (1, TOH, OWP, Coutp)       output row tile
        # win_ref:(P, TOH+HALO_PAD, WQ, Cin) assembled per-phase window (scratch)
        win_ref[:, :TOH] = xm_ref[0]
        win_ref[:, TOH:] = xh_ref[0]

        cin = w_ref.shape[2]
        coutp = w_ref.shape[3]
        acc = jnp.zeros((TOH * OWP, coutp), jnp.float32)
        for kh in range(KH):                      # static unroll over kernel offsets
            qh, rh = divmod(kh, SH)
            for kw in range(KW):
                qw, rw = divmod(kw, SW)
                p = rh * SW + rw                  # stride phase index
                patch = win_ref[p, qh:qh + TOH, qw:qw + OWP, :]   # (TOH, OWP, Cin)
                # OWP % 8 == 0 by construction, so this reshape is a pure
                # metadata op (no sublane repack).
                patch = patch.reshape(TOH * OWP, cin)
                acc = acc + jnp.dot(patch, w_ref[kh, kw],
                                    preferred_element_type=jnp.float32)
        acc = acc + b_ref[...]                                    # (1, Coutp) broadcast
        o_ref[0] = acc.reshape(TOH, OWP, coutp).astype(o_ref.dtype)

    return kernel


def same_pad_conv2d(x, w, b=None, *, stride=1, compute_dtype=None, row_tile=None):
    """SamePadConvNd (n_dim=2) forward.

    x: (N, Cin, H, W)        PyTorch NCHW layout
    w: (Cout, Cin, KH, KW)   PyTorch OIHW layout
    b: (Cout,) or None
    stride: int or (sh, sw)
    compute_dtype: optional MXU dtype (e.g. jnp.bfloat16); accumulation stays f32.
    row_tile: optional override of the output-row tile (rounded up to x8).
    Returns: (N, Cout, OH, OW) in NCHW, dtype of x.
    """
    assert x.ndim == 4 and w.ndim == 4
    N, Cin, H, W = x.shape
    Cout, Cin_w, KH, KW = w.shape
    assert Cin == Cin_w
    if isinstance(stride, int):
        stride = (stride, stride)
    SH, SW = stride
    assert KH >= SH and KW >= SW, "same-pad requires kernel >= stride"

    out_dtype = x.dtype
    cdt = jnp.dtype(compute_dtype) if compute_dtype is not None else jnp.dtype(x.dtype)

    # Same-pad amounts, mirroring SamePadConvNd: before=ceil(p/2), after=floor(p/2).
    pH, pW = KH - SH, KW - SW
    pbh = pH // 2 + pH % 2
    pbw = pW // 2 + pW % 2
    OH = (H + pH - KH) // SH + 1
    OW = (W + pW - KW) // SW + 1

    P = SH * SW                      # number of stride phases
    halo = (KH - 1) // SH            # extra phase rows a row tile needs

    # Lane/sublane alignment of the output tile: OW -> x8 (sublanes), Cout -> x128 (lanes).
    OWP = _round_up(OW, 8)
    Coutp = _round_up(Cout, 128)
    WQ = OWP + (KW - 1) // SW        # phase columns the kernel reads

    in_item = cdt.itemsize
    out_item = jnp.dtype(out_dtype).itemsize
    if row_tile is None:
        TOH = _choose_row_tile(OH, N, P, WQ, Cin, OWP, Coutp, KH, KW, halo,
                               in_item, out_item, budget_bytes=20 * 2**20)
    else:
        TOH = _round_up(max(int(row_tile), 1), 8)
    NT = -(-OH // TOH)               # number of output-row tiles
    OHP = NT * TOH
    HALO_PAD = _halo_pad(TOH, halo)
    HQP = OHP + HALO_PAD             # phase rows the kernel may touch
    THP, TWP = HQP * SH, WQ * SW     # padded-input extent fed to the kernel

    # NCHW -> NHWC (channels-last / lane-dense), asymmetric same-pad, then pad/crop
    # to exactly (THP, TWP). Extra rows/cols are never read by valid output
    # positions; padded output rows/cols/channels are cropped after the kernel.
    xh = jnp.transpose(x, (0, 2, 3, 1)).astype(cdt)
    xh = jnp.pad(xh, ((0, 0),
                      (pbh, max(THP - H - pbh, 0)),
                      (pbw, max(TWP - W - pbw, 0)),
                      (0, 0)))
    xh = xh[:, :THP, :TWP, :]
    if SH == 1 and SW == 1:
        # Fast path: phase decomposition is the identity -> skip the extra HBM
        # transpose pass and just add the (size-1) phase axis.
        xp = xh.reshape(N, 1, THP, TWP, Cin)
    else:
        # x_phase[n, rh*SW+rw, i, j, c] = x_pad[n, i*SH+rh, j*SW+rw, c]
        xp = xh.reshape(N, HQP, SH, WQ, SW, Cin)
        xp = jnp.transpose(xp, (0, 2, 4, 1, 3, 5)).reshape(N, P, HQP, WQ, Cin)

    # OIHW -> HWIO with Cout padded to the 128-lane boundary; bias in f32.
    wh = jnp.transpose(w, (2, 3, 1, 0)).astype(cdt)
    wh = jnp.pad(wh, ((0, 0), (0, 0), (0, 0), (0, Coutp - Cout)))
    if b is None:
        b = jnp.zeros((Cout,), jnp.float32)
    b2 = jnp.pad(b.astype(jnp.float32), (0, Coutp - Cout)).reshape(1, Coutp)

    kernel = _make_conv2d_kernel(KH, KW, SH, SW, P, TOH, OWP, HALO_PAD)

    footprint = _vmem_bytes(TOH, HALO_PAD, P, WQ, Cin, OWP, Coutp, KH, KW,
                            in_item, out_item)
    vmem_limit = int(min(max(2 * footprint, 16 * 2**20), 64 * 2**20))

    flops = 2 * N * OHP * OWP * KH * KW * Cin * Coutp
    bytes_accessed = (xp.size * xp.dtype.itemsize
                      + wh.size * wh.dtype.itemsize + b2.size * 4
                      + N * OHP * OWP * Coutp * out_item)

    halo_blk = TOH // HALO_PAD       # halo block-index stride per row tile

    out = pl.pallas_call(
        kernel,
        out_shape=jax.ShapeDtypeStruct((N, OHP, OWP, Coutp), out_dtype),
        grid_spec=pltpu.PrefetchScalarGridSpec(
            num_scalar_prefetch=0,
            grid=(N, NT),
            in_specs=[
                # Main TOH-row slab of the phase-decomposed input.
                pl.BlockSpec((1, P, TOH, WQ, Cin), lambda n, t: (n, 0, t, 0, 0)),
                # Halo rows: the first HALO_PAD rows of the *next* slab, fetched as a
                # second Blocked view of the same array (HALO_PAD divides TOH).
                pl.BlockSpec((1, P, HALO_PAD, WQ, Cin),
                             lambda n, t: (n, 0, (t + 1) * halo_blk, 0, 0)),
                # Weights / bias stay VMEM-resident (constant index maps).
                pl.BlockSpec((KH, KW, Cin, Coutp), lambda n, t: (0, 0, 0, 0)),
                pl.BlockSpec((1, Coutp), lambda n, t: (0, 0)),
            ],
            out_specs=pl.BlockSpec((1, TOH, OWP, Coutp), lambda n, t: (n, t, 0, 0)),
            scratch_shapes=[pltpu.VMEM((P, TOH + HALO_PAD, WQ, Cin), cdt)],
        ),
        compiler_params=pltpu.CompilerParams(
            dimension_semantics=("parallel", "parallel"),
            vmem_limit_bytes=vmem_limit,
        ),
        cost_estimate=pl.CostEstimate(flops=flops, transcendentals=0,
                                      bytes_accessed=bytes_accessed),
    )(xp, xp, wh, b2)

    # Crop lane/sublane/row padding, then back to NCHW.
    out = out[:, :OH, :OW, :Cout]
    # TODO(synk): in a layer stack, keep activations NHWC between layers and skip these
    #             NCHW<->NHWC transposes (each is a full extra HBM pass over the activation).
    return jnp.transpose(out, (0, 3, 1, 2))


def _reference_same_pad_conv2d(x, w, b, stride):
    """Pure-XLA reference replicating SamePadConvNd's F.pad + Conv2d."""
    SH, SW = stride
    KH, KW = w.shape[2], w.shape[3]
    pH, pW = KH - SH, KW - SW
    pad = ((pH // 2 + pH % 2, pH // 2), (pW // 2 + pW % 2, pW // 2))
    out = jax.lax.conv_general_dilated(
        x, w, window_strides=(SH, SW), padding=pad,
        dimension_numbers=("NCHW", "OIHW", "NCHW"),
        precision=jax.lax.Precision.HIGHEST)
    return out + b[None, :, None, None]


if __name__ == "__main__":
    key = jax.random.PRNGKey(0)
    k1, k2, k3, k4, k5 = jax.random.split(key, 5)

    N, Cin, H, W = 2, 4, 16, 16
    Cout = 8
    x = jax.random.normal(k1, (N, Cin, H, W), dtype=jnp.float32)

    # Case 1: kernel=3, stride=1 ("same" conv) — stride-1 fast path, auto row tile.
    w1 = jax.random.normal(k2, (Cout, Cin, 3, 3), dtype=jnp.float32) * 0.1
    b1 = jax.random.normal(k3, (Cout,), dtype=jnp.float32) * 0.1
    out1 = same_pad_conv2d(x, w1, b1, stride=1)
    jax.block_until_ready(out1)
    ref1 = _reference_same_pad_conv2d(x, w1, b1, (1, 1))
    assert out1.shape == (N, Cout, 16, 16) and out1.dtype == x.dtype
    assert jnp.allclose(out1, ref1, atol=5e-3, rtol=5e-3), "k=3,s=1 mismatch vs reference"

    # Case 2: kernel=4, stride=2 (downsampling, as used in videogpt encoders).
    w2 = jax.random.normal(k4, (Cout, Cin, 4, 4), dtype=jnp.float32) * 0.1
    b2 = jax.random.normal(k5, (Cout,), dtype=jnp.float32) * 0.1
    out2 = same_pad_conv2d(x, w2, b2, stride=2)
    jax.block_until_ready(out2)
    ref2 = _reference_same_pad_conv2d(x, w2, b2, (2, 2))
    assert out2.shape == (N, Cout, 8, 8) and out2.dtype == x.dtype
    assert jnp.allclose(out2, ref2, atol=5e-3, rtol=5e-3), "k=4,s=2 mismatch vs reference"

    # Case 3: forced 8-row tiles -> 2 spatial tiles per image + cross-tile halo path.
    out3 = same_pad_conv2d(x, w1, b1, stride=1, row_tile=8)
    jax.block_until_ready(out3)
    assert jnp.allclose(out3, ref1, atol=5e-3, rtol=5e-3), "row-tiled k=3,s=1 mismatch"

    # Case 4: odd spatial size -> exercises OW/OH sublane padding + output crop.
    x4 = jax.random.normal(k1, (N, Cin, 13, 13), dtype=jnp.float32)
    out4 = same_pad_conv2d(x4, w2, b2, stride=2)
    jax.block_until_ready(out4)
    ref4 = _reference_same_pad_conv2d(x4, w2, b2, (2, 2))
    assert out4.shape == ref4.shape
    assert jnp.allclose(out4, ref4, atol=5e-3, rtol=5e-3), "odd-size k=4,s=2 mismatch"

    # Case 5: bf16 MXU path with f32 accumulation (loose tolerance vs f32 reference).
    out5 = same_pad_conv2d(x, w1, b1, stride=1, compute_dtype=jnp.bfloat16)
    jax.block_until_ready(out5)
    assert jnp.allclose(out5, ref1, atol=1e-1, rtol=1e-1), "bf16 path mismatch"

    print("KERNEL_OK")
</pallas_src>

<mosaic_0001>
module attributes {stable_mosaic.version = 11 : i64} {
  func.func @kernel(%arg0: i32, %arg1: i32, %arg2: memref<1x1x16x18x4xf32, #tpu.memory_space<vmem>>, %arg3: memref<1x1x2x18x4xf32, #tpu.memory_space<vmem>>, %arg4: memref<3x3x4x128xf32, #tpu.memory_space<vmem>>, %arg5: memref<1x128xf32, #tpu.memory_space<vmem>>, %arg6: memref<1x16x16x128xf32, #tpu.memory_space<vmem>>, %arg7: memref<1x18x18x4xf32, #tpu.memory_space<vmem>>) attributes {dimension_semantics = [#tpu.dimension_semantics<parallel>, #tpu.dimension_semantics<parallel>], iteration_bounds = array<i64: 2, 1>, scalar_prefetch = 0 : i64, scratch_operands = 1 : i64, tpu.core_type = #tpu.core_type<tc>, window_params = [{transform_indices = @transform_0, window_bounds = array<i64: 1, 1, 16, 18, 4>}, {transform_indices = @transform_1, window_bounds = array<i64: 1, 1, 2, 18, 4>}, {pipeline_mode = #tpu.pipeline_mode<synchronous>, transform_indices = @transform_2, window_bounds = array<i64: 3, 3, 4, 128>}, {pipeline_mode = #tpu.pipeline_mode<synchronous>, transform_indices = @transform_3, window_bounds = array<i64: 1, 128>}, {transform_indices = @transform_4, window_bounds = array<i64: 1, 16, 16, 128>}]} {
    %c0 = arith.constant 0 : index
    %c0_0 = arith.constant 0 : index
    %c0_1 = arith.constant 0 : index
    %c0_2 = arith.constant 0 : index
    %c0_3 = arith.constant 0 : index
    %0 = vector.load %arg2[%c0, %c0_0, %c0_1, %c0_2, %c0_3] : memref<1x1x16x18x4xf32, #tpu.memory_space<vmem>>, vector<1x1x16x18x4xf32>
    %1 = vector.shape_cast %0 : vector<1x1x16x18x4xf32> to vector<1x16x18x4xf32>
    %c0_4 = arith.constant 0 : index
    %c0_5 = arith.constant 0 : index
    %c0_6 = arith.constant 0 : index
    %c0_7 = arith.constant 0 : index
    %2 = vector.load %arg7[%c0_4, %c0_5, %c0_6, %c0_7] : memref<1x18x18x4xf32, #tpu.memory_space<vmem>>, vector<1x16x18x4xf32>
    tpu.vector_store %arg7[%c0_4, %c0_5, %c0_6, %c0_7], %1 {strides = array<i32>} : memref<1x18x18x4xf32, #tpu.memory_space<vmem>>, vector<1x16x18x4xf32>,
    %c0_8 = arith.constant 0 : index
    %c0_9 = arith.constant 0 : index
    %c0_10 = arith.constant 0 : index
    %c0_11 = arith.constant 0 : index
    %c0_12 = arith.constant 0 : index
    %3 = vector.load %arg3[%c0_8, %c0_9, %c0_10, %c0_11, %c0_12] : memref<1x1x2x18x4xf32, #tpu.memory_space<vmem>>, vector<1x1x2x18x4xf32>
    %4 = vector.shape_cast %3 : vector<1x1x2x18x4xf32> to vector<1x2x18x4xf32>
    %c0_13 = arith.constant 0 : index
    %c16 = arith.constant 16 : index
    %c0_14 = arith.constant 0 : index
    %c0_15 = arith.constant 0 : index
    %5 = vector.load %arg7[%c0_13, %c16, %c0_14, %c0_15] : memref<1x18x18x4xf32, #tpu.memory_space<vmem>>, vector<1x2x18x4xf32>
    tpu.vector_store %arg7[%c0_13, %c16, %c0_14, %c0_15], %4 {strides = array<i32>} : memref<1x18x18x4xf32, #tpu.memory_space<vmem>>, vector<1x2x18x4xf32>,
    %cst = arith.constant 0.000000e+00 : f32
    %6 = vector.broadcast %cst : f32 to vector<256x128xf32>
    %c0_16 = arith.constant 0 : index
    %c0_17 = arith.constant 0 : index
    %c0_18 = arith.constant 0 : index
    %c0_19 = arith.constant 0 : index
    %7 = vector.load %arg7[%c0_16, %c0_17, %c0_18, %c0_19] : memref<1x18x18x4xf32, #tpu.memory_space<vmem>>, vector<1x16x16x4xf32>
    %8 = vector.shape_cast %7 : vector<1x16x16x4xf32> to vector<16x16x4xf32>
    %9 = vector.shape_cast %8 : vector<16x16x4xf32> to vector<256x4xf32>
    %c0_20 = arith.constant 0 : index
    %c0_21 = arith.constant 0 : index
    %c0_22 = arith.constant 0 : index
    %c0_23 = arith.constant 0 : index
    %10 = vector.load %arg4[%c0_20, %c0_21, %c0_22, %c0_23] : memref<3x3x4x128xf32, #tpu.memory_space<vmem>>, vector<1x1x4x128xf32>
    %11 = vector.shape_cast %10 : vector<1x1x4x128xf32> to vector<4x128xf32>
    %cst_24 = arith.constant dense<0.000000e+00> : vector<256x128xf32>
    %12 = tpu.matmul %9, %11, %cst_24 {dimension_numbers = #tpu.dot_dimension_numbers<[1], [0], [0], [1], [0, 0, 1, 1], [], []>} : vector<256x4xf32>, vector<4x128xf32>, vector<256x128xf32> -> vector<256x128xf32>
    %13 = arith.addf %6, %12 : vector<256x128xf32>
    %c0_25 = arith.constant 0 : index
    %c0_26 = arith.constant 0 : index
    %c1 = arith.constant 1 : index
    %c0_27 = arith.constant 0 : index
    %14 = vector.load %arg7[%c0_25, %c0_26, %c1, %c0_27] : memref<1x18x18x4xf32, #tpu.memory_space<vmem>>, vector<1x16x16x4xf32>
    %15 = vector.shape_cast %14 : vector<1x16x16x4xf32> to vector<16x16x4xf32>
    %16 = vector.shape_cast %15 : vector<16x16x4xf32> to vector<256x4xf32>
    %c0_28 = arith.constant 0 : index
    %c1_29 = arith.constant 1 : index
    %c0_30 = arith.constant 0 : index
    %c0_31 = arith.constant 0 : index
    %17 = vector.load %arg4[%c0_28, %c1_29, %c0_30, %c0_31] : memref<3x3x4x128xf32, #tpu.memory_space<vmem>>, vector<1x1x4x128xf32>
    %18 = vector.shape_cast %17 : vector<1x1x4x128xf32> to vector<4x128xf32>
    %cst_32 = arith.constant dense<0.000000e+00> : vector<256x128xf32>
    %19 = tpu.matmul %16, %18, %cst_32 {dimension_numbers = #tpu.dot_dimension_numbers<[1], [0], [0], [1], [0, 0, 1, 1], [], []>} : vector<256x4xf32>, vector<4x128xf32>, vector<256x128xf32> -> vector<256x128xf32>
    %20 = arith.addf %13, %19 : vector<256x128xf32>
    %c0_33 = arith.constant 0 : index
    %c0_34 = arith.constant 0 : index
    %c2 = arith.constant 2 : index
    %c0_35 = arith.constant 0 : index
    %21 = vector.load %arg7[%c0_33, %c0_34, %c2, %c0_35] : memref<1x18x18x4xf32, #tpu.memory_space<vmem>>, vector<1x16x16x4xf32>
    %22 = vector.shape_cast %21 : vector<1x16x16x4xf32> to vector<16x16x4xf32>
    %23 = vector.shape_cast %22 : vector<16x16x4xf32> to vector<256x4xf32>
    %c0_36 = arith.constant 0 : index
    %c2_37 = arith.constant 2 : index
    %c0_38 = arith.constant 0 : index
    %c0_39 = arith.constant 0 : index
    %24 = vector.load %arg4[%c0_36, %c2_37, %c0_38, %c0_39] : memref<3x3x4x128xf32, #tpu.memory_space<vmem>>, vector<1x1x4x128xf32>
    %25 = vector.shape_cast %24 : vector<1x1x4x128xf32> to vector<4x128xf32>
    %cst_40 = arith.constant dense<0.000000e+00> : vector<256x128xf32>
    %26 = tpu.matmul %23, %25, %cst_40 {dimension_numbers = #tpu.dot_dimension_numbers<[1], [0], [0], [1], [0, 0, 1, 1], [], []>} : vector<256x4xf32>, vector<4x128xf32>, vector<256x128xf32> -> vector<256x128xf32>
    %27 = arith.addf %20, %26 : vector<256x128xf32>
    %c0_41 = arith.constant 0 : index
    %c1_42 = arith.constant 1 : index
    %c0_43 = arith.constant 0 : index
    %c0_44 = arith.constant 0 : index
    %28 = vector.load %arg7[%c0_41, %c1_42, %c0_43, %c0_44] : memref<1x18x18x4xf32, #tpu.memory_space<vmem>>, vector<1x16x16x4xf32>
    %29 = vector.shape_cast %28 : vector<1x16x16x4xf32> to vector<16x16x4xf32>
    %30 = vector.shape_cast %29 : vector<16x16x4xf32> to vector<256x4xf32>
    %c1_45 = arith.constant 1 : index
    %c0_46 = arith.constant 0 : index
    %c0_47 = arith.constant 0 : index
    %c0_48 = arith.constant 0 : index
    %31 = vector.load %arg4[%c1_45, %c0_46, %c0_47, %c0_48] : memref<3x3x4x128xf32, #tpu.memory_space<vmem>>, vector<1x1x4x128xf32>
    %32 = vector.shape_cast %31 : vector<1x1x4x128xf32> to vector<4x128xf32>
    %cst_49 = arith.constant dense<0.000000e+00> : vector<256x128xf32>
    %33 = tpu.matmul %30, %32, %cst_49 {dimension_numbers = #tpu.dot_dimension_numbers<[1], [0], [0], [1], [0, 0, 1, 1], [], []>} : vector<256x4xf32>, vector<4x128xf32>, vector<256x128xf32> -> vector<256x128xf32>
    %34 = arith.addf %27, %33 : vector<256x128xf32>
    %c0_50 = arith.constant 0 : index
    %c1_51 = arith.constant 1 : index
    %c1_52 = arith.constant 1 : index
    %c0_53 = arith.constant 0 : index
    %35 = vector.load %arg7[%c0_50, %c1_51, %c1_52, %c0_53] : memref<1x18x18x4xf32, #tpu.memory_space<vmem>>, vector<1x16x16x4xf32>
    %36 = vector.shape_cast %35 : vector<1x16x16x4xf32> to vector<16x16x4xf32>
    %37 = vector.shape_cast %36 : vector<16x16x4xf32> to vector<256x4xf32>
    %c1_54 = arith.constant 1 : index
    %c1_55 = arith.constant 1 : index
    %c0_56 = arith.constant 0 : index
    %c0_57 = arith.constant 0 : index
    %38 = vector.load %arg4[%c1_54, %c1_55, %c0_56, %c0_57] : memref<3x3x4x128xf32, #tpu.memory_space<vmem>>, vector<1x1x4x128xf32>
    %39 = vector.shape_cast %38 : vector<1x1x4x128xf32> to vector<4x128xf32>
    %cst_58 = arith.constant dense<0.000000e+00> : vector<256x128xf32>
    %40 = tpu.matmul %37, %39, %cst_58 {dimension_numbers = #tpu.dot_dimension_numbers<[1], [0], [0], [1], [0, 0, 1, 1], [], []>} : vector<256x4xf32>, vector<4x128xf32>, vector<256x128xf32> -> vector<256x128xf32>
    %41 = arith.addf %34, %40 : vector<256x128xf32>
    %c0_59 = arith.constant 0 : index
    %c1_60 = arith.constant 1 : index
    %c2_61 = arith.constant 2 : index
    %c0_62 = arith.constant 0 : index
    %42 = vector.load %arg7[%c0_59, %c1_60, %c2_61, %c0_62] : memref<1x18x18x4xf32, #tpu.memory_space<vmem>>, vector<1x16x16x4xf32>
    %43 = vector.shape_cast %42 : vector<1x16x16x4xf32> to vector<16x16x4xf32>
    %44 = vector.shape_cast %43 : vector<16x16x4xf32> to vector<256x4xf32>
    %c1_63 = arith.constant 1 : index
    %c2_64 = arith.constant 2 : index
    %c0_65 = arith.constant 0 : index
    %c0_66 = arith.constant 0 : index
    %45 = vector.load %arg4[%c1_63, %c2_64, %c0_65, %c0_66] : memref<3x3x4x128xf32, #tpu.memory_space<vmem>>, vector<1x1x4x128xf32>
    %46 = vector.shape_cast %45 : vector<1x1x4x128xf32> to vector<4x128xf32>
    %cst_67 = arith.constant dense<0.000000e+00> : vector<256x128xf32>
    %47 = tpu.matmul %44, %46, %cst_67 {dimension_numbers = #tpu.dot_dimension_numbers<[1], [0], [0], [1], [0, 0, 1, 1], [], []>} : vector<256x4xf32>, vector<4x128xf32>, vector<256x128xf32> -> vector<256x128xf32>
    %48 = arith.addf %41, %47 : vector<256x128xf32>
    %c0_68 = arith.constant 0 : index
    %c2_69 = arith.constant 2 : index
    %c0_70 = arith.constant 0 : index
    %c0_71 = arith.constant 0 : index
    %49 = vector.load %arg7[%c0_68, %c2_69, %c0_70, %c0_71] : memref<1x18x18x4xf32, #tpu.memory_space<vmem>>, vector<1x16x16x4xf32>
    %50 = vector.shape_cast %49 : vector<1x16x16x4xf32> to vector<16x16x4xf32>
    %51 = vector.shape_cast %50 : vector<16x16x4xf32> to vector<256x4xf32>
    %c2_72 = arith.constant 2 : index
    %c0_73 = arith.constant 0 : index
    %c0_74 = arith.constant 0 : index
    %c0_75 = arith.constant 0 : index
    %52 = vector.load %arg4[%c2_72, %c0_73, %c0_74, %c0_75] : memref<3x3x4x128xf32, #tpu.memory_space<vmem>>, vector<1x1x4x128xf32>
    %53 = vector.shape_cast %52 : vector<1x1x4x128xf32> to vector<4x128xf32>
    %cst_76 = arith.constant dense<0.000000e+00> : vector<256x128xf32>
    %54 = tpu.matmul %51, %53, %cst_76 {dimension_numbers = #tpu.dot_dimension_numbers<[1], [0], [0], [1], [0, 0, 1, 1], [], []>} : vector<256x4xf32>, vector<4x128xf32>, vector<256x128xf32> -> vector<256x128xf32>
    %55 = arith.addf %48, %54 : vector<256x128xf32>
    %c0_77 = arith.constant 0 : index
    %c2_78 = arith.constant 2 : index
    %c1_79 = arith.constant 1 : index
    %c0_80 = arith.constant 0 : index
    %56 = vector.load %arg7[%c0_77, %c2_78, %c1_79, %c0_80] : memref<1x18x18x4xf32, #tpu.memory_space<vmem>>, vector<1x16x16x4xf32>
    %57 = vector.shape_cast %56 : vector<1x16x16x4xf32> to vector<16x16x4xf32>
    %58 = vector.shape_cast %57 : vector<16x16x4xf32> to vector<256x4xf32>
    %c2_81 = arith.constant 2 : index
    %c1_82 = arith.constant 1 : index
    %c0_83 = arith.constant 0 : index
    %c0_84 = arith.constant 0 : index
    %59 = vector.load %arg4[%c2_81, %c1_82, %c0_83, %c0_84] : memref<3x3x4x128xf32, #tpu.memory_space<vmem>>, vector<1x1x4x128xf32>
    %60 = vector.shape_cast %59 : vector<1x1x4x128xf32> to vector<4x128xf32>
    %cst_85 = arith.constant dense<0.000000e+00> : vector<256x128xf32>
    %61 = tpu.matmul %58, %60, %cst_85 {dimension_numbers = #tpu.dot_dimension_numbers<[1], [0], [0], [1], [0, 0, 1, 1], [], []>} : vector<256x4xf32>, vector<4x128xf32>, vector<256x128xf32> -> vector<256x128xf32>
    %62 = arith.addf %55, %61 : vector<256x128xf32>
    %c0_86 = arith.constant 0 : index
    %c2_87 = arith.constant 2 : index
    %c2_88 = arith.constant 2 : index
    %c0_89 = arith.constant 0 : index
    %63 = vector.load %arg7[%c0_86, %c2_87, %c2_88, %c0_89] : memref<1x18x18x4xf32, #tpu.memory_space<vmem>>, vector<1x16x16x4xf32>
    %64 = vector.shape_cast %63 : vector<1x16x16x4xf32> to vector<16x16x4xf32>
    %65 = vector.shape_cast %64 : vector<16x16x4xf32> to vector<256x4xf32>
    %c2_90 = arith.constant 2 : index
    %c2_91 = arith.constant 2 : index
    %c0_92 = arith.constant 0 : index
    %c0_93 = arith.constant 0 : index
    %66 = vector.load %arg4[%c2_90, %c2_91, %c0_92, %c0_93] : memref<3x3x4x128xf32, #tpu.memory_space<vmem>>, vector<1x1x4x128xf32>
    %67 = vector.shape_cast %66 : vector<1x1x4x128xf32> to vector<4x128xf32>
    %cst_94 = arith.constant dense<0.000000e+00> : vector<256x128xf32>
    %68 = tpu.matmul %65, %67, %cst_94 {dimension_numbers = #tpu.dot_dimension_numbers<[1], [0], [0], [1], [0, 0, 1, 1], [], []>} : vector<256x4xf32>, vector<4x128xf32>, vector<256x128xf32> -> vector<256x128xf32>
    %69 = arith.addf %62, %68 : vector<256x128xf32>
    %c0_95 = arith.constant 0 : index
    %c0_96 = arith.constant 0 : index
    %70 = vector.load %arg5[%c0_95, %c0_96] : memref<1x128xf32, #tpu.memory_space<vmem>>, vector<1x128xf32>
    %71 = vector.broadcast %70 : vector<1x128xf32> to vector<256x128xf32>
    %72 = arith.addf %69, %71 : vector<256x128xf32>
    %73 = vector.shape_cast %72 : vector<256x128xf32> to vector<16x16x128xf32>
    %c0_97 = arith.constant 0 : index
    %c0_98 = arith.constant 0 : index
    %c0_99 = arith.constant 0 : index
    %c0_100 = arith.constant 0 : index
    %74 = vector.load %arg6[%c0_97, %c0_98, %c0_99, %c0_100] : memref<1x16x16x128xf32, #tpu.memory_space<vmem>>, vector<1x16x16x128xf32>
    %75 = vector.shape_cast %74 : vector<1x16x16x128xf32> to vector<16x16x128xf32>
    %76 = vector.shape_cast %73 : vector<16x16x128xf32> to vector<1x16x16x128xf32>
    tpu.vector_store %arg6[%c0_97, %c0_98, %c0_99, %c0_100], %76 {strides = array<i32>} : memref<1x16x16x128xf32, #tpu.memory_space<vmem>>, vector<1x16x16x128xf32>,
    return
  }
  func.func @transform_0(%arg0: i32, %arg1: i32) -> (i32, i32, i32, i32, i32) {
    %c0_i32 = arith.constant 0 : i32
    %c0_i32_0 = arith.constant 0 : i32
    %c0_i32_1 = arith.constant 0 : i32
    %c0_i32_2 = arith.constant 0 : i32
    return %arg0, %c0_i32, %arg1, %c0_i32_0, %c0_i32_1 : i32, i32, i32, i32, i32
  }
  func.func @transform_1(%arg0: i32, %arg1: i32) -> (i32, i32, i32, i32, i32) {
    %c1_i32 = arith.constant 1 : i32
    %0 = arith.addi %arg1, %c1_i32 : i32
    %c8_i32 = arith.constant 8 : i32
    %1 = arith.muli %0, %c8_i32 : i32
    %c0_i32 = arith.constant 0 : i32
    %c0_i32_0 = arith.constant 0 : i32
    %c0_i32_1 = arith.constant 0 : i32
    %c0_i32_2 = arith.constant 0 : i32
    return %arg0, %c0_i32, %1, %c0_i32_0, %c0_i32_1 : i32, i32, i32, i32, i32
  }
  func.func @transform_2(%arg0: i32, %arg1: i32) -> (i32, i32, i32, i32) {
    %c0_i32 = arith.constant 0 : i32
    %c0_i32_0 = arith.constant 0 : i32
    %c0_i32_1 = arith.constant 0 : i32
    %c0_i32_2 = arith.constant 0 : i32
    %c0_i32_3 = arith.constant 0 : i32
    return %c0_i32, %c0_i32_0, %c0_i32_1, %c0_i32_2 : i32, i32, i32, i32
  }
  func.func @transform_3(%arg0: i32, %arg1: i32) -> (i32, i32) {
    %c0_i32 = arith.constant 0 : i32
    %c0_i32_0 = arith.constant 0 : i32
    %c0_i32_1 = arith.constant 0 : i32
    return %c0_i32, %c0_i32_0 : i32, i32
  }
  func.func @transform_4(%arg0: i32, %arg1: i32) -> (i32, i32, i32, i32) {
    %c0_i32 = arith.constant 0 : i32
    %c0_i32_0 = arith.constant 0 : i32
    %c0_i32_1 = arith.constant 0 : i32
    return %arg0, %arg1, %c0_i32, %c0_i32_0 : i32, i32, i32, i32
  }
}

</mosaic_0001>

<llo_original>
// kernel: tpu_custom_call.1
$region0: #{tpu_custom_call.1}
  #allocation0 [shape = 'u32[]', space=smem, size = 0x4, offset = 0x4, fixed_abs, tag = 'smem constant byte address 0x4 - core index']
  #allocation1 [shape = 'u32[144,128]{1,0:T(1,128)}', space=vmem, size = 0x12000, scoped, tag = 'internal scratch']
  #allocation2 [shape = 'f32[1,18,18,4]{3,2,1,0:T(8,128)}', space=vmem, size = 0x36000, scoped, tag = 'scratch operand']
  %s0 = inlined_call_operand.vmem [shape: f32[2,1,18,18,4], index: 0, kind: input, shape index: {}]
  %s1 = inlined_call_operand.vmem [shape: f32[2,1,18,18,4], index: 1, kind: input, shape index: {}]
  %s2 = inlined_call_operand.vmem [shape: f32[3,3,4,128], index: 2, kind: input, shape index: {}]
  %s3 = inlined_call_operand.vmem [shape: f32[1,128], index: 3, kind: input, shape index: {}]
  %s4 = inlined_call_operand.hbm [shape: f32[2,16,16,128], index: 4, kind: output, shape index: {}]
  %s5 = sld [smem:[#allocation0]]
  $region49: #{tpu_custom_call.1} parent=0
    _
  %s7 = ssub.s32 1, %s5
  %s8 = scalar_select 0, %s7, %s5
  $region1: #{tpu_custom_call.1} parent=0
    #allocation3 [shape = 'u8[262144]{0}', space=vmem, size = 0x40000, scoped, tag = 'output window, operand 0']
    #allocation4 [shape = 's32[2]{0}', space=sflag, size = 0x8, scoped, tag = 'scoped memory for tpu_custom_call.1']
    %9 = vsyncpa [#allocation4], 0
    %s10 = scalar_lea.sflag [#allocation4], 1
    %11 = vsyncpa %s10, 0
    loop: start=0, step=1, limit=4
    $region2: #{tpu_custom_call.1} parent=1 // loop_pre_header
      _
    $region3: #{tpu_custom_call.1} parent=1 // loop_header
      %s13 = sphi 0, %s17
      %p14 = scmp.ge.s32.totalorder %s13, 4
      %s20 = sphi 0, %s32
      %s21 = sphi 0, %s28
      %s22 = sphi 0, %s20
      %s23 = sphi 0, %s21
      %s24 = sphi 0, %s22
      %s25 = sphi 0, %s23
      %s37 = sphi 0, %s39
      %s40 = sphi 0, %s37
      %s41 = sphi 0, %s40
      %s57 = sphi 0, %s41
      %s69 = sphi 0, %s71
      %s72 = sphi 0, %s69
      %s73 = sphi 0, %s72
      %s89 = sphi 0, %s73
      %s93 = sphi 0, %s93
      %s95 = sphi 0, %s93
      %s96 = sphi 0, %s95
      %s110 = sphi 0, %s96
      %s114 = sphi 0, %s114
      %s116 = sphi 0, %s114
      %s117 = sphi 0, %s116
      %s131 = sphi 0, %s117
      %s139 = sphi 0, %s141
      %s142 = sphi 0, %s139
      %s143 = sphi 0, %s142
      %s159 = sphi 0, %s143
    $region4: #{tpu_custom_call.1} parent=1 // loop_header_branch
      %16 = sbr.rel (%p14) target = $region8
    $region5: #{tpu_custom_call.1} parent=1 // loop_body
      %s18 = ssub.s32 %s13, 1
      %s19 = ssub.s32 %s13, 2
      %s26 = sadd.s32 1, %s21
      %p27 = scmp.ge.s32.totalorder %s26, 1
      %s28 = scalar_select %p27, 0, %s26
      %s29 = sadd.s32 1, %s20
      %s30 = scalar_select %p27, %s29, %s20
      %p31 = scmp.ge.s32.totalorder %s30, 2
      %s32 = scalar_select %p31, 0, %s30
      %s33 = ssub.s32 %s20, %s32
      %s34 = ssub.s32 %s21, %s28
      %s35 = sor.u32 %s33, %s34
      %p36 = scmp.eq.s32.totalorder %s35, 0
      %s38 = sadd.s32 %s37, 1
      %s39 = scalar_select %p36, %s37, %s38
      %p42 = pneg %p36
      %p43 = scmp.eq.s32.totalorder %s13, 1
      %p44 = por %p42, %p43
      %p45 = scmp.ne.s32.totalorder %s37, %s40
      %p46 = scmp.eq.s32.totalorder %s13, 0
      %p47 = por %p45, %p46
      %p48 = scmp.ne.s32.totalorder %s37, %s40
      %p49 = scmp.eq.s32.totalorder %s18, 1
      %p50 = por %p48, %p49
      %p51 = scmp.ne.s32.totalorder %s40, %s41
      %p52 = scmp.eq.s32.totalorder %s18, 0
      %p53 = por %p51, %p52
      %p54 = scmp.ne.s32.totalorder %s40, %s41
      %p55 = scmp.eq.s32.totalorder %s19, 1
      %p56 = por %p54, %p55
      %p58 = scmp.ne.s32.totalorder %s41, %s57
      %p59 = scmp.eq.s32.totalorder %s19, 0
      %p60 = por %p58, %p59
      %s61 = sadd.s32 %s21, 1
      %s62 = smul.u32 %s61, 8
      %s63 = sadd.s32 %s28, 1
      %s64 = smul.u32 %s63, 8
      %s65 = ssub.s32 %s20, %s32
      %s66 = ssub.s32 %s62, %s64
      %s67 = sor.u32 %s65, %s66
      %p68 = scmp.eq.s32.totalorder %s67, 0
      %s70 = sadd.s32 %s69, 1
      %s71 = scalar_select %p68, %s69, %s70
      %p74 = pneg %p68
      %p75 = scmp.eq.s32.totalorder %s13, 1
      %p76 = por %p74, %p75
      %p77 = scmp.ne.s32.totalorder %s69, %s72
      %p78 = scmp.eq.s32.totalorder %s13, 0
      %p79 = por %p77, %p78
      %p80 = scmp.ne.s32.totalorder %s69, %s72
      %p81 = scmp.eq.s32.totalorder %s18, 1
      %p82 = por %p80, %p81
      %p83 = scmp.ne.s32.totalorder %s72, %s73
      %p84 = scmp.eq.s32.totalorder %s18, 0
      %p85 = por %p83, %p84
      %p86 = scmp.ne.s32.totalorder %s72, %s73
      %p87 = scmp.eq.s32.totalorder %s19, 1
      %p88 = por %p86, %p87
      %p90 = scmp.ne.s32.totalorder %s73, %s89
      %p91 = scmp.eq.s32.totalorder %s19, 0
      %p92 = por %p90, %p91
      %s94 = sadd.s32 %s93, 1
      %p97 = scmp.eq.s32.totalorder %s13, 1
      %p98 = scmp.ne.s32.totalorder %s93, %s95
      %p99 = scmp.eq.s32.totalorder %s13, 0
      %p100 = por %p98, %p99
      %p101 = scmp.ne.s32.totalorder %s93, %s95
      %p102 = scmp.eq.s32.totalorder %s18, 1
      %p103 = por %p101, %p102
      %p104 = scmp.ne.s32.totalorder %s95, %s96
      %p105 = scmp.eq.s32.totalorder %s18, 0
      %p106 = por %p104, %p105
      %p107 = scmp.ne.s32.totalorder %s95, %s96
      %p108 = scmp.eq.s32.totalorder %s19, 1
      %p109 = por %p107, %p108
      %p111 = scmp.ne.s32.totalorder %s96, %s110
      %p112 = scmp.eq.s32.totalorder %s19, 0
      %p113 = por %p111, %p112
      %s115 = sadd.s32 %s114, 1
      %p118 = scmp.eq.s32.totalorder %s13, 1
      %p119 = scmp.ne.s32.totalorder %s114, %s116
      %p120 = scmp.eq.s32.totalorder %s13, 0
      %p121 = por %p119, %p120
      %p122 = scmp.ne.s32.totalorder %s114, %s116
      %p123 = scmp.eq.s32.totalorder %s18, 1
      %p124 = por %p122, %p123
      %p125 = scmp.ne.s32.totalorder %s116, %s117
      %p126 = scmp.eq.s32.totalorder %s18, 0
      %p127 = por %p125, %p126
      %p128 = scmp.ne.s32.totalorder %s116, %s117
      %p129 = scmp.eq.s32.totalorder %s19, 1
      %p130 = por %p128, %p129
      %p132 = scmp.ne.s32.totalorder %s117, %s131
      %p133 = scmp.eq.s32.totalorder %s19, 0
      %p134 = por %p132, %p133
      %s135 = ssub.s32 %s20, %s32
      %s136 = ssub.s32 %s21, %s28
      %s137 = sor.u32 %s135, %s136
      %p138 = scmp.eq.s32.totalorder %s137, 0
      %s140 = sadd.s32 %s139, 1
      %s141 = scalar_select %p138, %s139, %s140
      %p144 = pneg %p138
      %p145 = scmp.eq.s32.totalorder %s13, 1
      %p146 = por %p144, %p145
      %p147 = scmp.ne.s32.totalorder %s139, %s142
      %p148 = scmp.eq.s32.totalorder %s13, 0
      %p149 = por %p147, %p148
      %p150 = scmp.ne.s32.totalorder %s139, %s142
      %p151 = scmp.eq.s32.totalorder %s18, 1
      %p152 = por %p150, %p151
      %p153 = scmp.ne.s32.totalorder %s142, %s143
      %p154 = scmp.eq.s32.totalorder %s18, 0
      %p155 = por %p153, %p154
      %p156 = scmp.ne.s32.totalorder %s142, %s143
      %p157 = scmp.eq.s32.totalorder %s19, 1
      %p158 = por %p156, %p157
      %p160 = scmp.ne.s32.totalorder %s143, %s159
      %p161 = scmp.eq.s32.totalorder %s19, 0
      %p162 = por %p160, %p161
      %p163 = scmp.le.s32.totalorder 1, %s13
      %p164 = scmp.lt.s32.totalorder %s13, 3
      %p165 = pnand %p163, %p164
      %p166 = pneg %p165
      // Predicated region
      $region9: #{tpu_custom_call.1} parent=5 // pred_check
        _
      $region10: #{tpu_custom_call.1} parent=5 // pred_check_branch
        %168 = sbr.rel (%p165) target = $region12
      $region11: #{tpu_custom_call.1} parent=5 // pred_region
        %s169 = ssub.s32 %s13, 1
        // Predicated region
        $region13: #{tpu_custom_call.1} parent=11 // pred_check
          %p170 = pneg %p106
        $region14: #{tpu_custom_call.1} parent=11 // pred_check_branch
          %172 = sbr.rel (%p170) target = $region16
        $region15: #{tpu_custom_call.1} parent=11 // pred_region
          _
        $region16: #{tpu_custom_call.1} parent=11 // pred_fallthru
          _
        // Predicated region
        $region17: #{tpu_custom_call.1} parent=11 // pred_check
          %p173 = pneg %p127
        $region18: #{tpu_custom_call.1} parent=11 // pred_check_branch
          %175 = sbr.rel (%p173) target = $region20
        $region19: #{tpu_custom_call.1} parent=11 // pred_region
          _
        $region20: #{tpu_custom_call.1} parent=11 // pred_fallthru
          _
      $region12: #{tpu_custom_call.1} parent=5 // pred_fallthru
        _
      %p176 = scmp.lt.s32.totalorder %s13, 2
      // Predicated region
      $region21: #{tpu_custom_call.1} parent=5 // pred_check
        %p177 = pneg %p176
      $region22: #{tpu_custom_call.1} parent=5 // pred_check_branch
        %179 = sbr.rel (%p177) target = $region24
      $region23: #{tpu_custom_call.1} parent=5 // pred_region
        // Predicated region
        $region25: #{tpu_custom_call.1} parent=23 // pred_check
          %p180 = pneg %p47
        $region26: #{tpu_custom_call.1} parent=23 // pred_check_branch
          %182 = sbr.rel (%p180) target = $region28
        $region27: #{tpu_custom_call.1} parent=23 // pred_region
          %s183 = smul.u32 16, %s21
          %s184 = ssub.s32 18, %s183
          %p185 = scmp.lt.s32.totalorder %s184, 16
          %s186 = scalar_select %p185, %s184, 16
          %s187 = smul.u32 128, %s186
          %s188 = smul.u32 %s187, 3
          %p189 = scmp.lt.s32.totalorder %s20, 1
          %s190 = scalar_select %p189, %s20, 1
          %p191 = scmp.lt.s32.totalorder %s183, 17
          %s192 = scalar_select %p191, %s183, 17
          %s193 = smul.addr %s192, 3
          %s194 = smul.addr %s190, 54
          %s195 = sadd.s32 %s193, %s194
          %s196 = smul.addr %s195, 8
          %s197 = scalar_lea.vmem %s0, %s196
          %s198 = smul.u32 16, %s21
          %s199 = ssub.s32 18, %s198
          %p200 = scmp.lt.s32.totalorder %s199, 16
          %s201 = scalar_select %p200, %s199, 16
          %s202 = smul.u32 128, %s201
          %s203 = smul.u32 %s202, 3
        $region28: #{tpu_custom_call.1} parent=23 // pred_fallthru
          _
        // Predicated region
        $region29: #{tpu_custom_call.1} parent=23 // pred_check
          %p204 = pneg %p79
        $region30: #{tpu_custom_call.1} parent=23 // pred_check_branch
          %206 = sbr.rel (%p204) target = $region32
        $region31: #{tpu_custom_call.1} parent=23 // pred_region
          %s207 = sadd.s32 %s21, 1
          %s208 = smul.u32 %s207, 8
          %s209 = smul.u32 2, %s208
          %p210 = scmp.lt.s32.totalorder %s20, 1
          %s211 = scalar_select %p210, %s20, 1
          %p212 = scmp.lt.s32.totalorder %s209, 17
          %s213 = scalar_select %p212, %s209, 17
          %s214 = smul.addr %s213, 3
          %s215 = smul.addr %s211, 54
          %s216 = sadd.s32 %s214, %s215
          %s217 = smul.addr %s216, 8
          %s218 = scalar_lea.vmem %s1, %s217
          %s219 = sadd.s32 %s21, 1
          %s220 = smul.u32 %s219, 8
          %s221 = smul.u32 2, %s220
        $region32: #{tpu_custom_call.1} parent=23 // pred_fallthru
          _
      $region24: #{tpu_custom_call.1} parent=5 // pred_fallthru
        _
      %p222 = scmp.le.s32.totalorder 1, %s13
      %p223 = scmp.lt.s32.totalorder %s13, 3
      %p224 = pnand %p222, %p223
      %p225 = pneg %p224
      // Predicated region
      $region33: #{tpu_custom_call.1} parent=5 // pred_check
        _
      $region34: #{tpu_custom_call.1} parent=5 // pred_check_branch
        %227 = sbr.rel (%p224) target = $region36
      $region35: #{tpu_custom_call.1} parent=5 // pred_region
        %s228 = ssub.s32 %s13, 1
        %s229 = smul.u32 16, %s23
        %s230 = ssub.s32 18, %s229
        %p231 = scmp.lt.s32.totalorder %s230, 16
        %s232 = scalar_select %p231, %s230, 16
        %s233 = smul.u32 128, %s232
        %s234 = smul.u32 %s233, 3
        %p235 = scmp.lt.s32.totalorder %s22, 1
        %s236 = scalar_select %p235, %s22, 1
        %p237 = scmp.lt.s32.totalorder %s229, 17
        %s238 = scalar_select %p237, %s229, 17
        %s239 = smul.addr %s238, 3
        %s240 = smul.addr %s236, 54
        %s241 = sadd.s32 %s239, %s240
        %s242 = smul.addr %s241, 8
        %s243 = scalar_lea.vmem %s0, %s242
        %p244 = pneg %p53
        %p245 = pneg %p50
        %s246 = sadd.s32 %s23, 1
        %s247 = smul.u32 %s246, 8
        %s248 = smul.u32 2, %s247
        %p249 = scmp.lt.s32.totalorder %s22, 1
        %s250 = scalar_select %p249, %s22, 1
        %p251 = scmp.lt.s32.totalorder %s248, 17
        %s252 = scalar_select %p251, %s248, 17
        %s253 = smul.addr %s252, 3
        %s254 = smul.addr %s250, 54
        %s255 = sadd.s32 %s253, %s254
        %s256 = smul.addr %s255, 8
        %s257 = scalar_lea.vmem %s1, %s256
        %p258 = pneg %p85
        %p259 = pneg %p82
        %p260 = pneg %p106
        %p261 = pneg %p103
        %p262 = pneg %p127
        %p263 = pneg %p124
        %p264 = pneg %p155
        %p265 = pneg %p152
        %s266 = sand.u32 %s142, 1
        %s267 = scalar_lea.sflag [#allocation4], %s266
        %s268 = sand.u32 %s142, 1
        %s269 = smul.addr %s268, 256
        %s270 = scalar_lea.vmem [#allocation3], %s269
        %s271 = smul.u32 16, %s23
        %s272 = ssub.s32 18, %s271
        %p273 = scmp.lt.s32.totalorder %s272, 16
        %s274 = scalar_select %p273, %s272, 16
        %s275 = smul.u32 128, %s274
        %s276 = smul.u32 %s275, 3
        %p277 = scmp.lt.s32.totalorder %s22, 1
        %s278 = scalar_select %p277, %s22, 1
        %p279 = scmp.lt.s32.totalorder %s271, 17
        %s280 = scalar_select %p279, %s271, 17
        %s281 = smul.addr %s280, 3
        %s282 = smul.addr %s278, 54
        %s283 = sadd.s32 %s281, %s282
        %s284 = smul.addr %s283, 8
        %s285 = scalar_lea.vmem %s0, %s284
        %s286 = smul.u32 16, %s23
        %s287 = ssub.s32 18, %s286
        %p288 = scmp.lt.s32.totalorder %s287, 16
        %s289 = scalar_select %p288, %s287, 16
        %s290 = smul.u32 128, %s289
        %s291 = smul.u32 %s290, 3
        %s292 = sadd.s32 %s23, 1
        %s293 = smul.u32 %s292, 8
        %s294 = smul.u32 2, %s293
        %p295 = scmp.lt.s32.totalorder %s22, 1
        %s296 = scalar_select %p295, %s22, 1
        %p297 = scmp.lt.s32.totalorder %s294, 17
        %s298 = scalar_select %p297, %s294, 17
        %s299 = smul.addr %s298, 3
        %s300 = smul.addr %s296, 54
        %s301 = sadd.s32 %s299, %s300
        %s302 = smul.addr %s301, 8
        %s303 = scalar_lea.vmem %s1, %s302
        %s304 = sadd.s32 %s23, 1
        %s305 = smul.u32 %s304, 8
        %s306 = smul.u32 2, %s305
        %s307 = smul.u32 16, %s23
        %v308 = vld [vmem:[%s285] sm:$0xff]
        %v309 = vld [vmem:[%s285 + $0x8] sm:$0xff]
        %v310 = vld [vmem:[%s285 + $0x10] sm:$0x3]
        %v311 = vld [vmem:[%s285 + $0x18] sm:$0xff]
        %v312 = vld [vmem:[%s285 + $0x20] sm:$0xff]
        %v313 = vld [vmem:[%s285 + $0x28] sm:$0x3]
        %v314 = vld [vmem:[%s285 + $0x30] sm:$0xff]
        %v315 = vld [vmem:[%s285 + $0x38] sm:$0xff]
        %v316 = vld [vmem:[%s285 + $0x40] sm:$0x3]
        %v317 = vld [vmem:[%s285 + $0x48] sm:$0xff]
        %v318 = vld [vmem:[%s285 + $0x50] sm:$0xff]
        %v319 = vld [vmem:[%s285 + $0x58] sm:$0x3]
        %v320 = vld [vmem:[%s285 + $0x60] sm:$0xff]
        %v321 = vld [vmem:[%s285 + $0x68] sm:$0xff]
        %v322 = vld [vmem:[%s285 + $0x70] sm:$0x3]
        %v323 = vld [vmem:[%s285 + $0x78] sm:$0xff]
        %v324 = vld [vmem:[%s285 + $0x80] sm:$0xff]
        %v325 = vld [vmem:[%s285 + $0x88] sm:$0x3]
        %v326 = vld [vmem:[%s285 + $0x90] sm:$0xff]
        %v327 = vld [vmem:[%s285 + $0x98] sm:$0xff]
        %v328 = vld [vmem:[%s285 + $0xa0] sm:$0x3]
        %v329 = vld [vmem:[%s285 + $0xa8] sm:$0xff]
        %v330 = vld [vmem:[%s285 + $0xb0] sm:$0xff]
        %v331 = vld [vmem:[%s285 + $0xb8] sm:$0x3]
        %v332 = vld [vmem:[%s285 + $0xc0] sm:$0xff]
        %v333 = vld [vmem:[%s285 + $0xc8] sm:$0xff]
        %v334 = vld [vmem:[%s285 + $0xd0] sm:$0x3]
        %v335 = vld [vmem:[%s285 + $0xd8] sm:$0xff]
        %v336 = vld [vmem:[%s285 + $0xe0] sm:$0xff]
        %v337 = vld [vmem:[%s285 + $0xe8] sm:$0x3]
        %v338 = vld [vmem:[%s285 + $0xf0] sm:$0xff]
        %v339 = vld [vmem:[%s285 + $0xf8] sm:$0xff]
        %v340 = vld [vmem:[%s285 + $0x100] sm:$0x3]
        %v341 = vld [vmem:[%s285 + $0x108] sm:$0xff]
        %v342 = vld [vmem:[%s285 + $0x110] sm:$0xff]
        %v343 = vld [vmem:[%s285 + $0x118] sm:$0x3]
        %v344 = vld [vmem:[%s285 + $0x120] sm:$0xff]
        %v345 = vld [vmem:[%s285 + $0x128] sm:$0xff]
        %v346 = vld [vmem:[%s285 + $0x130] sm:$0x3]
        %v347 = vld [vmem:[%s285 + $0x138] sm:$0xff]
        %v348 = vld [vmem:[%s285 + $0x140] sm:$0xff]
        %v349 = vld [vmem:[%s285 + $0x148] sm:$0x3]
        %v350 = vld [vmem:[%s285 + $0x150] sm:$0xff]
        %v351 = vld [vmem:[%s285 + $0x158] sm:$0xff]
        %v352 = vld [vmem:[%s285 + $0x160] sm:$0x3]
        %v353 = vld [vmem:[%s285 + $0x168] sm:$0xff]
        %v354 = vld [vmem:[%s285 + $0x170] sm:$0xff]
        %v355 = vld [vmem:[%s285 + $0x178] sm:$0x3]
        %vm356 = vcmask 31744
        %357 = vst.msk [vmem:[#allocation2] sm:$0xff] %vm356, %v308
        %358 = vst.msk [vmem:[#allocation2 + $0x8] sm:$0xff] %vm356, %v309
        %vm359 = vcmask 25600
        %360 = vst.msk [vmem:[#allocation2 + $0x10] sm:$0x3] %vm359, %v310
        %361 = vst.msk [vmem:[#allocation2 + $0x18] sm:$0xff] %vm356, %v311
        %362 = vst.msk [vmem:[#allocation2 + $0x20] sm:$0xff] %vm356, %v312
        %363 = vst.msk [vmem:[#allocation2 + $0x28] sm:$0x3] %vm359, %v313
        %364 = vst.msk [vmem:[#allocation2 + $0x30] sm:$0xff] %vm356, %v314
        %365 = vst.msk [vmem:[#allocation2 + $0x38] sm:$0xff] %vm356, %v315
        %366 = vst.msk [vmem:[#allocation2 + $0x40] sm:$0x3] %vm359, %v316
        %367 = vst.msk [vmem:[#allocation2 + $0x48] sm:$0xff] %vm356, %v317
        %368 = vst.msk [vmem:[#allocation2 + $0x50] sm:$0xff] %vm356, %v318
        %369 = vst.msk [vmem:[#allocation2 + $0x58] sm:$0x3] %vm359, %v319
        %370 = vst.msk [vmem:[#allocation2 + $0x60] sm:$0xff] %vm356, %v320
        %371 = vst.msk [vmem:[#allocation2 + $0x68] sm:$0xff] %vm356, %v321
        %372 = vst.msk [vmem:[#allocation2 + $0x70] sm:$0x3] %vm359, %v322
        %373 = vst.msk [vmem:[#allocation2 + $0x78] sm:$0xff] %vm356, %v323
        %374 = vst.msk [vmem:[#allocation2 + $0x80] sm:$0xff] %vm356, %v324
        %375 = vst.msk [vmem:[#allocation2 + $0x88] sm:$0x3] %vm359, %v325
        %376 = vst.msk [vmem:[#allocation2 + $0x90] sm:$0xff] %vm356, %v326
        %377 = vst.msk [vmem:[#allocation2 + $0x98] sm:$0xff] %vm356, %v327
        %378 = vst.msk [vmem:[#allocation2 + $0xa0] sm:$0x3] %vm359, %v328
        %379 = vst.msk [vmem:[#allocation2 + $0xa8] sm:$0xff] %vm356, %v329
        %380 = vst.msk [vmem:[#allocation2 + $0xb0] sm:$0xff] %vm356, %v330
        %381 = vst.msk [vmem:[#allocation2 + $0xb8] sm:$0x3] %vm359, %v331
        %382 = vst.msk [vmem:[#allocation2 + $0xc0] sm:$0xff] %vm356, %v332
        %383 = vst.msk [vmem:[#allocation2 + $0xc8] sm:$0xff] %vm356, %v333
        %384 = vst.msk [vmem:[#allocation2 + $0xd0] sm:$0x3] %vm359, %v334
        %385 = vst.msk [vmem:[#allocation2 + $0xd8] sm:$0xff] %vm356, %v335
        %386 = vst.msk [vmem:[#allocation2 + $0xe0] sm:$0xff] %vm356, %v336
        %387 = vst.msk [vmem:[#allocation2 + $0xe8] sm:$0x3] %vm359, %v337
        %388 = vst.msk [vmem:[#allocation2 + $0xf0] sm:$0xff] %vm356, %v338
        %389 = vst.msk [vmem:[#allocation2 + $0xf8] sm:$0xff] %vm356, %v339
        %390 = vst.msk [vmem:[#allocation2 + $0x100] sm:$0x3] %vm359, %v340
        %391 = vst.msk [vmem:[#allocation2 + $0x108] sm:$0xff] %vm356, %v341
        %392 = vst.msk [vmem:[#allocation2 + $0x110] sm:$0xff] %vm356, %v342
        %393 = vst.msk [vmem:[#allocation2 + $0x118] sm:$0x3] %vm359, %v343
        %394 = vst.msk [vmem:[#allocation2 + $0x120] sm:$0xff] %vm356, %v344
        %395 = vst.msk [vmem:[#allocation2 + $0x128] sm:$0xff] %vm356, %v345
        %396 = vst.msk [vmem:[#allocation2 + $0x130] sm:$0x3] %vm359, %v346
        %397 = vst.msk [vmem:[#allocation2 + $0x138] sm:$0xff] %vm356, %v347
        %398 = vst.msk [vmem:[#allocation2 + $0x140] sm:$0xff] %vm356, %v348
        %399 = vst.msk [vmem:[#allocation2 + $0x148] sm:$0x3] %vm359, %v349
        %400 = vst.msk [vmem:[#allocation2 + $0x150] sm:$0xff] %vm356, %v350
        %401 = vst.msk [vmem:[#allocation2 + $0x158] sm:$0xff] %vm356, %v351
        %402 = vst.msk [vmem:[#allocation2 + $0x160] sm:$0x3] %vm359, %v352
        %403 = vst.msk [vmem:[#allocation2 + $0x168] sm:$0xff] %vm356, %v353
        %404 = vst.msk [vmem:[#allocation2 + $0x170] sm:$0xff] %vm356, %v354
        %405 = vst.msk [vmem:[#allocation2 + $0x178] sm:$0x3] %vm359, %v355
        %v406 = vld [vmem:[%s303] sm:$0xff]
        %v407 = vld [vmem:[%s303 + $0x8] sm:$0xff]
        %v408 = vld [vmem:[%s303 + $0x10] sm:$0x3]
        %v409 = vld [vmem:[%s303 + $0x18] sm:$0xff]
        %v410 = vld [vmem:[%s303 + $0x20] sm:$0xff]
        %v411 = vld [vmem:[%s303 + $0x28] sm:$0x3]
        %s412 = scalar_lea.vmem [#allocation2], 384
        %413 = vst.msk [vmem:[%s412] sm:$0xff] %vm356, %v406
        %414 = vst.msk [vmem:[%s412 + $0x8] sm:$0xff] %vm356, %v407
        %415 = vst.msk [vmem:[%s412 + $0x10] sm:$0x3] %vm359, %v408
        %416 = vst.msk [vmem:[%s412 + $0x18] sm:$0xff] %vm356, %v409
        %417 = vst.msk [vmem:[%s412 + $0x20] sm:$0xff] %vm356, %v410
        %418 = vst.msk [vmem:[%s412 + $0x28] sm:$0x3] %vm359, %v411
        %v419 = vld [vmem:[#allocation2] sm:$0xff]
        %v420 = vld [vmem:[#allocation2 + $0x8] sm:$0xff]
        %v421 = vld [vmem:[#allocation2 + $0x18] sm:$0xff]
        %v422 = vld [vmem:[#allocation2 + $0x20] sm:$0xff]
        %v423 = vld [vmem:[#allocation2 + $0x30] sm:$0xff]
        %v424 = vld [vmem:[#allocation2 + $0x38] sm:$0xff]
        %v425 = vld [vmem:[#allocation2 + $0x48] sm:$0xff]
        %v426 = vld [vmem:[#allocation2 + $0x50] sm:$0xff]
        %v427 = vld [vmem:[#allocation2 + $0x60] sm:$0xff]
        %v428 = vld [vmem:[#allocation2 + $0x68] sm:$0xff]
        %v429 = vld [vmem:[#allocation2 + $0x78] sm:$0xff]
        %v430 = vld [vmem:[#allocation2 + $0x80] sm:$0xff]
        %v431 = vld [vmem:[#allocation2 + $0x90] sm:$0xff]
        %v432 = vld [vmem:[#allocation2 + $0x98] sm:$0xff]
        %v433 = vld [vmem:[#allocation2 + $0xa8] sm:$0xff]
        %v434 = vld [vmem:[#allocation2 + $0xb0] sm:$0xff]
        %v435 = vld [vmem:[#allocation2 + $0xc0] sm:$0xff]
        %v436 = vld [vmem:[#allocation2 + $0xc8] sm:$0xff]
        %v437 = vld [vmem:[#allocation2 + $0xd8] sm:$0xff]
        %v438 = vld [vmem:[#allocation2 + $0xe0] sm:$0xff]
        %v439 = vld [vmem:[#allocation2 + $0xf0] sm:$0xff]
        %v440 = vld [vmem:[#allocation2 + $0xf8] sm:$0xff]
        %v441 = vld [vmem:[#allocation2 + $0x108] sm:$0xff]
        %v442 = vld [vmem:[#allocation2 + $0x110] sm:$0xff]
        %v443 = vld [vmem:[#allocation2 + $0x120] sm:$0xff]
        %v444 = vld [vmem:[#allocation2 + $0x128] sm:$0xff]
        %v445 = vld [vmem:[#allocation2 + $0x138] sm:$0xff]
        %v446 = vld [vmem:[#allocation2 + $0x140] sm:$0xff]
        %v447 = vld [vmem:[#allocation2 + $0x150] sm:$0xff]
        %v448 = vld [vmem:[#allocation2 + $0x158] sm:$0xff]
        %v449 = vld [vmem:[#allocation2 + $0x168] sm:$0xff]
        %v450 = vld [vmem:[#allocation2 + $0x170] sm:$0xff]
        %v451 = vld [vmem:[%s2] sm:$0xf]
        %v452 = vld [vmem:[#allocation2 + $0x1] sm:$0xff]
        %v453 = vld [vmem:[#allocation2 + $0x9] sm:$0xff]
        %v454 = vld [vmem:[#allocation2 + $0x19] sm:$0xff]
        %v455 = vld [vmem:[#allocation2 + $0x21] sm:$0xff]
        %v456 = vld [vmem:[#allocation2 + $0x31] sm:$0xff]
        %v457 = vld [vmem:[#allocation2 + $0x39] sm:$0xff]
        %v458 = vld [vmem:[#allocation2 + $0x49] sm:$0xff]
        %v459 = vld [vmem:[#allocation2 + $0x51] sm:$0xff]
        %v460 = vld [vmem:[#allocation2 + $0x61] sm:$0xff]
        %v461 = vld [vmem:[#allocation2 + $0x69] sm:$0xff]
        %v462 = vld [vmem:[#allocation2 + $0x79] sm:$0xff]
        %v463 = vld [vmem:[#allocation2 + $0x81] sm:$0xff]
        %v464 = vld [vmem:[#allocation2 + $0x91] sm:$0xff]
        %v465 = vld [vmem:[#allocation2 + $0x99] sm:$0xff]
        %v466 = vld [vmem:[#allocation2 + $0xa9] sm:$0xff]
        %v467 = vld [vmem:[#allocation2 + $0xb1] sm:$0xff]
        %v468 = vld [vmem:[#allocation2 + $0xc1] sm:$0xff]
        %v469 = vld [vmem:[#allocation2 + $0xc9] sm:$0xff]
        %v470 = vld [vmem:[#allocation2 + $0xd9] sm:$0xff]
        %v471 = vld [vmem:[#allocation2 + $0xe1] sm:$0xff]
        %v472 = vld [vmem:[#allocation2 + $0xf1] sm:$0xff]
        %v473 = vld [vmem:[#allocation2 + $0xf9] sm:$0xff]
        %v474 = vld [vmem:[#allocation2 + $0x109] sm:$0xff]
        %v475 = vld [vmem:[#allocation2 + $0x111] sm:$0xff]
        %v476 = vld [vmem:[#allocation2 + $0x121] sm:$0xff]
        %v477 = vld [vmem:[#allocation2 + $0x129] sm:$0xff]
        %v478 = vld [vmem:[#allocation2 + $0x139] sm:$0xff]
        %v479 = vld [vmem:[#allocation2 + $0x141] sm:$0xff]
        %v480 = vld [vmem:[#allocation2 + $0x151] sm:$0xff]
        %v481 = vld [vmem:[#allocation2 + $0x159] sm:$0xff]
        %v482 = vld [vmem:[#allocation2 + $0x169] sm:$0xff]
        %v483 = vld [vmem:[#allocation2 + $0x171] sm:$0xff]
        %s484 = scalar_lea.vmem %s2, 4
        %v485 = vld [vmem:[%s484] sm:$0xf]
        %v487 = vsel %vm356, %v452, 0
        %v490 = vsel %vm356, %v453, 0
        %v493 = vsel %vm356, %v454, 0
        %v496 = vsel %vm356, %v455, 0
        %v499 = vsel %vm356, %v456, 0
        %v502 = vsel %vm356, %v457, 0
        %v505 = vsel %vm356, %v458, 0
        %v508 = vsel %vm356, %v459, 0
        %v511 = vsel %vm356, %v460, 0
        %v514 = vsel %vm356, %v461, 0
        %v517 = vsel %vm356, %v462, 0
        %v520 = vsel %vm356, %v463, 0
        %v523 = vsel %vm356, %v464, 0
        %v526 = vsel %vm356, %v465, 0
        %v529 = vsel %vm356, %v466, 0
        %v532 = vsel %vm356, %v467, 0
        %v535 = vsel %vm356, %v468, 0
        %v538 = vsel %vm356, %v469, 0
        %v541 = vsel %vm356, %v470, 0
        %v544 = vsel %vm356, %v471, 0
        %v547 = vsel %vm356, %v472, 0
        %v550 = vsel %vm356, %v473, 0
        %v553 = vsel %vm356, %v474, 0
        %v556 = vsel %vm356, %v475, 0
        %v559 = vsel %vm356, %v476, 0
        %v562 = vsel %vm356, %v477, 0
        %v565 = vsel %vm356, %v478, 0
        %v568 = vsel %vm356, %v479, 0
        %v571 = vsel %vm356, %v480, 0
        %v574 = vsel %vm356, %v481, 0
        %v577 = vsel %vm356, %v482, 0
        %v580 = vsel %vm356, %v483, 0
        %vm582 = vcmask 1043456
        %v584 = vsel %vm582, %v485, 0
        %586 = vmatprep.subr.mxu0 0.0
        %587 = vmatpush1.msra.mxu0 %v584
        %588 = vmatprep.subr.mxu0 0.0
        %589 = vmatpush1.msra.mxu0 0.0
        %590 = vmatprep.subr.mxu0 0.0
        %591 = vmatpush1.msra.mxu0 0.0
        %592 = vmatprep.subr.mxu0 0.0
        %593 = vmatpush1.msra.mxu0 0.0
        %594 = vmatprep.subr.mxu0 0.0
        %595 = vmatpush1.msra.mxu0 0.0
        %596 = vmatprep.subr.mxu0 0.0
        %597 = vmatpush1.msra.mxu0 0.0
        %598 = vmatprep.subr.mxu0 0.0
        %599 = vmatpush1.msra.mxu0 0.0
        %600 = vmatprep.subr.mxu0 0.0
        %601 = vmatpush1.msra.mxu0 0.0
        %602 = vmatprep.subr.mxu0 0.0
        %603 = vmatpush1.msra.mxu0 0.0
        %604 = vmatprep.subr.mxu0 0.0
        %605 = vmatpush1.msra.mxu0 0.0
        %606 = vmatprep.subr.mxu0 0.0
        %607 = vmatpush1.msra.mxu0 0.0
        %608 = vmatprep.subr.mxu0 0.0
        %609 = vmatpush1.msra.mxu0 0.0
        %610 = vmatprep.subr.mxu0 0.0
        %611 = vmatpush1.msra.mxu0 0.0
        %612 = vmatprep.subr.mxu0 0.0
        %613 = vmatpush1.msra.mxu0 0.0
        %614 = vmatprep.subr.mxu0 0.0
        %615 = vmatpush1.msra.mxu0 0.0
        %616 = vmatprep.subr.mxu0 0.0
        %617 = vmatpush1.msra.mxu0 0.0
        %618 = vmatprep.subr.mxu0 0.0
        %619 = vmatpush1.msra.mxu0 0.0
        %620 = vmatprep.subr.mxu0 0.0
        %621 = vmatpush1.msra.mxu0 0.0
        %622 = vmatprep.subr.mxu0 0.0
        %623 = vmatpush1.msra.mxu0 0.0
        %624 = vmatprep.subr.mxu0 0.0
        %625 = vmatpush1.msra.mxu0 0.0
        %626 = vmatprep.subr.mxu0 0.0
        %627 = vmatpush1.msra.mxu0 0.0
        %628 = vmatprep.subr.mxu0 0.0
        %629 = vmatpush1.msra.mxu0 0.0
        %630 = vmatprep.subr.mxu0 0.0
        %631 = vmatpush1.msra.mxu0 0.0
        %632 = vmatprep.subr.mxu0 0.0
        %633 = vmatpush1.msra.mxu0 0.0
        %634 = vmatprep.subr.mxu0 0.0
        %635 = vmatpush1.msra.mxu0 0.0
        %636 = vmatprep.subr.mxu0 0.0
        %637 = vmatpush1.msra.mxu0 0.0
        %638 = vmatprep.subr.mxu0 0.0
        %639 = vmatpush1.msra.mxu0 0.0
        %640 = vmatprep.subr.mxu0 0.0
        %641 = vmatpush1.msra.mxu0 0.0
        %642 = vmatprep.subr.mxu0 0.0
        %643 = vmatpush1.msra.mxu0 0.0
        %644 = vmatprep.subr.mxu0 0.0
        %645 = vmatpush1.msra.mxu0 0.0
        %646 = vmatprep.subr.mxu0 0.0
        %647 = vmatpush1.msra.mxu0 0.0
        %648 = vmatprep.subr.mxu0 0.0
        %649 = vmatpush1.msra.mxu0 0.0
        %650 = vmatprep.mubr.f32.mxu0 0.0
        %651 = vmatmul.mubr.f32.gmra.mrb[0].mxu0 %v487
        %v652 = vpop.f32.mrb[0].mxu0
        %v653 = vadd.f32 0.0, %v652
        %v654 = vpop.f32.mrb[0].mxu0
        %655 = vmatprep.mubr.f32.mxu0 0.0
        %656 = vmatmul.mubr.f32.gmra.mrb[0].mxu0 %v490
        %v657 = vpop.f32.mrb[0].mxu0
        %v658 = vadd.f32 0.0, %v657
        %v659 = vpop.f32.mrb[0].mxu0
        %660 = vmatprep.mubr.f32.mxu0 0.0
        %661 = vmatmul.mubr.f32.gmra.mrb[0].mxu0 %v493
        %v662 = vpop.f32.mrb[0].mxu0
        %v663 = vadd.f32 0.0, %v662
        %v664 = vpop.f32.mrb[0].mxu0
        %665 = vmatprep.mubr.f32.mxu0 0.0
        %666 = vmatmul.mubr.f32.gmra.mrb[0].mxu0 %v496
        %v667 = vpop.f32.mrb[0].mxu0
        %v668 = vadd.f32 0.0, %v667
        %v669 = vpop.f32.mrb[0].mxu0
        %670 = vmatprep.mubr.f32.mxu0 0.0
        %671 = vmatmul.mubr.f32.gmra.mrb[0].mxu0 %v499
        %v672 = vpop.f32.mrb[0].mxu0
        %v673 = vadd.f32 0.0, %v672
        %v674 = vpop.f32.mrb[0].mxu0
        %675 = vmatprep.mubr.f32.mxu0 0.0
        %676 = vmatmul.mubr.f32.gmra.mrb[0].mxu0 %v502
        %v677 = vpop.f32.mrb[0].mxu0
        %v678 = vadd.f32 0.0, %v677
        %v679 = vpop.f32.mrb[0].mxu0
        %680 = vmatprep.mubr.f32.mxu0 0.0
        %681 = vmatmul.mubr.f32.gmra.mrb[0].mxu0 %v505
        %v682 = vpop.f32.mrb[0].mxu0
        %v683 = vadd.f32 0.0, %v682
        %v684 = vpop.f32.mrb[0].mxu0
        %685 = vmatprep.mubr.f32.mxu0 0.0
        %686 = vmatmul.mubr.f32.gmra.mrb[0].mxu0 %v508
        %v687 = vpop.f32.mrb[0].mxu0
        %v688 = vadd.f32 0.0, %v687
        %v689 = vpop.f32.mrb[0].mxu0
        %690 = vmatprep.mubr.f32.mxu0 0.0
        %691 = vmatmul.mubr.f32.gmra.mrb[0].mxu0 %v511
        %v692 = vpop.f32.mrb[0].mxu0
        %v693 = vadd.f32 0.0, %v692
        %v694 = vpop.f32.mrb[0].mxu0
        %695 = vmatprep.mubr.f32.mxu0 0.0
        %696 = vmatmul.mubr.f32.gmra.mrb[0].mxu0 %v514
        %v697 = vpop.f32.mrb[0].mxu0
        %v698 = vadd.f32 0.0, %v697
        %v699 = vpop.f32.mrb[0].mxu0
        %700 = vmatprep.mubr.f32.mxu0 0.0
        %701 = vmatmul.mubr.f32.gmra.mrb[0].mxu0 %v517
        %v702 = vpop.f32.mrb[0].mxu0
        %v703 = vadd.f32 0.0, %v702
        %v704 = vpop.f32.mrb[0].mxu0
        %705 = vmatprep.mubr.f32.mxu0 0.0
        %706 = vmatmul.mubr.f32.gmra.mrb[0].mxu0 %v520
        %v707 = vpop.f32.mrb[0].mxu0
        %v708 = vadd.f32 0.0, %v707
        %v709 = vpop.f32.mrb[0].mxu0
        %710 = vmatprep.mubr.f32.mxu0 0.0
        %711 = vmatmul.mubr.f32.gmra.mrb[0].mxu0 %v523
        %v712 = vpop.f32.mrb[0].mxu0
        %v713 = vadd.f32 0.0, %v712
        %v714 = vpop.f32.mrb[0].mxu0
        %715 = vmatprep.mubr.f32.mxu0 0.0
        %716 = vmatmul.mubr.f32.gmra.mrb[0].mxu0 %v526
        %v717 = vpop.f32.mrb[0].mxu0
        %v718 = vadd.f32 0.0, %v717
        %v719 = vpop.f32.mrb[0].mxu0
        %720 = vmatprep.mubr.f32.mxu0 0.0
        %721 = vmatmul.mubr.f32.gmra.mrb[0].mxu0 %v529
        %v722 = vpop.f32.mrb[0].mxu0
        %v723 = vadd.f32 0.0, %v722
        %v724 = vpop.f32.mrb[0].mxu0
        %725 = vmatprep.mubr.f32.mxu0 0.0
        %726 = vmatmul.mubr.f32.gmra.mrb[0].mxu0 %v532
        %v727 = vpop.f32.mrb[0].mxu0
        %v728 = vadd.f32 0.0, %v727
        %v729 = vpop.f32.mrb[0].mxu0
        %730 = vmatprep.mubr.f32.mxu0 0.0
        %731 = vmatmul.mubr.f32.gmra.mrb[0].mxu0 %v535
        %v732 = vpop.f32.mrb[0].mxu0
        %v733 = vadd.f32 0.0, %v732
        %v734 = vpop.f32.mrb[0].mxu0
        %735 = vmatprep.mubr.f32.mxu0 0.0
        %736 = vmatmul.mubr.f32.gmra.mrb[0].mxu0 %v538
        %v737 = vpop.f32.mrb[0].mxu0
        %v738 = vadd.f32 0.0, %v737
        %v739 = vpop.f32.mrb[0].mxu0
        %740 = vmatprep.mubr.f32.mxu0 0.0
        %741 = vmatmul.mubr.f32.gmra.mrb[0].mxu0 %v541
        %v742 = vpop.f32.mrb[0].mxu0
        %v743 = vadd.f32 0.0, %v742
        %v744 = vpop.f32.mrb[0].mxu0
        %745 = vmatprep.mubr.f32.mxu0 0.0
        %746 = vmatmul.mubr.f32.gmra.mrb[0].mxu0 %v544
        %v747 = vpop.f32.mrb[0].mxu0
        %v748 = vadd.f32 0.0, %v747
        %v749 = vpop.f32.mrb[0].mxu0
        %750 = vmatprep.mubr.f32.mxu0 0.0
        %751 = vmatmul.mubr.f32.gmra.mrb[0].mxu0 %v547
        %v752 = vpop.f32.mrb[0].mxu0
        %v753 = vadd.f32 0.0, %v752
        %v754 = vpop.f32.mrb[0].mxu0
        %755 = vmatprep.mubr.f32.mxu0 0.0
        %756 = vmatmul.mubr.f32.gmra.mrb[0].mxu0 %v550
        %v757 = vpop.f32.mrb[0].mxu0
        %v758 = vadd.f32 0.0, %v757
        %v759 = vpop.f32.mrb[0].mxu0
        %760 = vmatprep.mubr.f32.mxu0 0.0
        %761 = vmatmul.mubr.f32.gmra.mrb[0].mxu0 %v553
        %v762 = vpop.f32.mrb[0].mxu0
        %v763 = vadd.f32 0.0, %v762
        %v764 = vpop.f32.mrb[0].mxu0
        %765 = vmatprep.mubr.f32.mxu0 0.0
        %766 = vmatmul.mubr.f32.gmra.mrb[0].mxu0 %v556
        %v767 = vpop.f32.mrb[0].mxu0
        %v768 = vadd.f32 0.0, %v767
        %v769 = vpop.f32.mrb[0].mxu0
        %770 = vmatprep.mubr.f32.mxu0 0.0
        %771 = vmatmul.mubr.f32.gmra.mrb[0].mxu0 %v559
        %v772 = vpop.f32.mrb[0].mxu0
        %v773 = vadd.f32 0.0, %v772
        %v774 = vpop.f32.mrb[0].mxu0
        %775 = vmatprep.mubr.f32.mxu0 0.0
        %776 = vmatmul.mubr.f32.gmra.mrb[0].mxu0 %v562
        %v777 = vpop.f32.mrb[0].mxu0
        %v778 = vadd.f32 0.0, %v777
        %v779 = vpop.f32.mrb[0].mxu0
        %780 = vmatprep.mubr.f32.mxu0 0.0
        %781 = vmatmul.mubr.f32.gmra.mrb[0].mxu0 %v565
        %v782 = vpop.f32.mrb[0].mxu0
        %v783 = vadd.f32 0.0, %v782
        %v784 = vpop.f32.mrb[0].mxu0
        %785 = vmatprep.mubr.f32.mxu0 0.0
        %786 = vmatmul.mubr.f32.gmra.mrb[0].mxu0 %v568
        %v787 = vpop.f32.mrb[0].mxu0
        %v788 = vadd.f32 0.0, %v787
        %v789 = vpop.f32.mrb[0].mxu0
        %790 = vmatprep.mubr.f32.mxu0 0.0
        %791 = vmatmul.mubr.f32.gmra.mrb[0].mxu0 %v571
        %v792 = vpop.f32.mrb[0].mxu0
        %v793 = vadd.f32 0.0, %v792
        %v794 = vpop.f32.mrb[0].mxu0
        %795 = vmatprep.mubr.f32.mxu0 0.0
        %796 = vmatmul.mubr.f32.gmra.mrb[0].mxu0 %v574
        %v797 = vpop.f32.mrb[0].mxu0
        %v798 = vadd.f32 0.0, %v797
        %v799 = vpop.f32.mrb[0].mxu0
        %800 = vmatprep.mubr.f32.mxu0 0.0
        %801 = vmatmul.mubr.f32.gmra.mrb[0].mxu0 %v577
        %v802 = vpop.f32.mrb[0].mxu0
        %v803 = vadd.f32 0.0, %v802
        %v804 = vpop.f32.mrb[0].mxu0
        %805 = vmatprep.mubr.f32.mxu0 0.0
        %806 = vmatmul.mubr.f32.gmra.mrb[0].mxu0 %v580
        %v807 = vpop.f32.mrb[0].mxu0
        %v808 = vadd.f32 0.0, %v807
        %v809 = vpop.f32.mrb[0].mxu0
        %810 = vdwg.mxu0
        %v812 = vsel %vm356, %v419, 0
        %v815 = vsel %vm356, %v420, 0
        %v818 = vsel %vm356, %v421, 0
        %v821 = vsel %vm356, %v422, 0
        %v824 = vsel %vm356, %v423, 0
        %v827 = vsel %vm356, %v424, 0
        %v830 = vsel %vm356, %v425, 0
        %v833 = vsel %vm356, %v426, 0
        %v836 = vsel %vm356, %v427, 0
        %v839 = vsel %vm356, %v428, 0
        %v842 = vsel %vm356, %v429, 0
        %v845 = vsel %vm356, %v430, 0
        %v848 = vsel %vm356, %v431, 0
        %v851 = vsel %vm356, %v432, 0
        %v854 = vsel %vm356, %v433, 0
        %v857 = vsel %vm356, %v434, 0
        %v860 = vsel %vm356, %v435, 0
        %v863 = vsel %vm356, %v436, 0
        %v866 = vsel %vm356, %v437, 0
        %v869 = vsel %vm356, %v438, 0
        %v872 = vsel %vm356, %v439, 0
        %v875 = vsel %vm356, %v440, 0
        %v878 = vsel %vm356, %v441, 0
        %v881 = vsel %vm356, %v442, 0
        %v884 = vsel %vm356, %v443, 0
        %v887 = vsel %vm356, %v444, 0
        %v890 = vsel %vm356, %v445, 0
        %v893 = vsel %vm356, %v446, 0
        %v896 = vsel %vm356, %v447, 0
        %v899 = vsel %vm356, %v448, 0
        %v902 = vsel %vm356, %v449, 0
        %v905 = vsel %vm356, %v450, 0
        %v908 = vsel %vm582, %v451, 0
        %910 = vmatprep.subr.mxu0 0.0
        %911 = vmatpush1.msra.mxu0 %v908
        %912 = vmatprep.subr.mxu0 0.0
        %913 = vmatpush1.msra.mxu0 0.0
        %914 = vmatprep.subr.mxu0 0.0
        %915 = vmatpush1.msra.mxu0 0.0
        %916 = vmatprep.subr.mxu0 0.0
        %917 = vmatpush1.msra.mxu0 0.0
        %918 = vmatprep.subr.mxu0 0.0
        %919 = vmatpush1.msra.mxu0 0.0
        %920 = vmatprep.subr.mxu0 0.0
        %921 = vmatpush1.msra.mxu0 0.0
        %922 = vmatprep.subr.mxu0 0.0
        %923 = vmatpush1.msra.mxu0 0.0
        %924 = vmatprep.subr.mxu0 0.0
        %925 = vmatpush1.msra.mxu0 0.0
        %926 = vmatprep.subr.mxu0 0.0
        %927 = vmatpush1.msra.mxu0 0.0
        %928 = vmatprep.subr.mxu0 0.0
        %929 = vmatpush1.msra.mxu0 0.0
        %930 = vmatprep.subr.mxu0 0.0
        %931 = vmatpush1.msra.mxu0 0.0
        %932 = vmatprep.subr.mxu0 0.0
        %933 = vmatpush1.msra.mxu0 0.0
        %934 = vmatprep.subr.mxu0 0.0
        %935 = vmatpush1.msra.mxu0 0.0
        %936 = vmatprep.subr.mxu0 0.0
        %937 = vmatpush1.msra.mxu0 0.0
        %938 = vmatprep.subr.mxu0 0.0
        %939 = vmatpush1.msra.mxu0 0.0
        %940 = vmatprep.subr.mxu0 0.0
        %941 = vmatpush1.msra.mxu0 0.0
        %942 = vmatprep.subr.mxu0 0.0
        %943 = vmatpush1.msra.mxu0 0.0
        %944 = vmatprep.subr.mxu0 0.0
        %945 = vmatpush1.msra.mxu0 0.0
        %946 = vmatprep.subr.mxu0 0.0
        %947 = vmatpush1.msra.mxu0 0.0
        %948 = vmatprep.subr.mxu0 0.0
        %949 = vmatpush1.msra.mxu0 0.0
        %950 = vmatprep.subr.mxu0 0.0
        %951 = vmatpush1.msra.mxu0 0.0
        %952 = vmatprep.subr.mxu0 0.0
        %953 = vmatpush1.msra.mxu0 0.0
        %954 = vmatprep.subr.mxu0 0.0
        %955 = vmatpush1.msra.mxu0 0.0
        %956 = vmatprep.subr.mxu0 0.0
        %957 = vmatpush1.msra.mxu0 0.0
        %958 = vmatprep.subr.mxu0 0.0
        %959 = vmatpush1.msra.mxu0 0.0
        %960 = vmatprep.subr.mxu0 0.0
        %961 = vmatpush1.msra.mxu0 0.0
        %962 = vmatprep.subr.mxu0 0.0
        %963 = vmatpush1.msra.mxu0 0.0
        %964 = vmatprep.subr.mxu0 0.0
        %965 = vmatpush1.msra.mxu0 0.0
        %966 = vmatprep.subr.mxu0 0.0
        %967 = vmatpush1.msra.mxu0 0.0
        %968 = vmatprep.subr.mxu0 0.0
        %969 = vmatpush1.msra.mxu0 0.0
        %970 = vmatprep.subr.mxu0 0.0
        %971 = vmatpush1.msra.mxu0 0.0
        %972 = vmatprep.subr.mxu0 0.0
        %973 = vmatpush1.msra.mxu0 0.0
        %974 = vmatprep.mubr.f32.mxu0 0.0
        %975 = vmatmul.mubr.f32.gmra.mrb[0].mxu0 %v812
        %v976 = vpop.f32.mrb[0].mxu0
        %v977 = vadd.f32 %v653, %v976
        %v978 = vpop.f32.mrb[0].mxu0
        %979 = vmatprep.mubr.f32.mxu0 0.0
        %980 = vmatmul.mubr.f32.gmra.mrb[0].mxu0 %v815
        %v981 = vpop.f32.mrb[0].mxu0
        %v982 = vadd.f32 %v658, %v981
        %v983 = vpop.f32.mrb[0].mxu0
        %984 = vmatprep.mubr.f32.mxu0 0.0
        %985 = vmatmul.mubr.f32.gmra.mrb[0].mxu0 %v818
        %v986 = vpop.f32.mrb[0].mxu0
        %v987 = vadd.f32 %v663, %v986
        %v988 = vpop.f32.mrb[0].mxu0
        %989 = vmatprep.mubr.f32.mxu0 0.0
        %990 = vmatmul.mubr.f32.gmra.mrb[0].mxu0 %v821
        %v991 = vpop.f32.mrb[0].mxu0
        %v992 = vadd.f32 %v668, %v991
        %v993 = vpop.f32.mrb[0].mxu0
        %994 = vmatprep.mubr.f32.mxu0 0.0
        %995 = vmatmul.mubr.f32.gmra.mrb[0].mxu0 %v824
        %v996 = vpop.f32.mrb[0].mxu0
        %v997 = vadd.f32 %v673, %v996
        %v998 = vpop.f32.mrb[0].mxu0
        %999 = vmatprep.mubr.f32.mxu0 0.0
        %1000 = vmatmul.mubr.f32.gmra.mrb[0].mxu0 %v827
        %v1001 = vpop.f32.mrb[0].mxu0
        %v1002 = vadd.f32 %v678, %v1001
        %v1003 = vpop.f32.mrb[0].mxu0
        %1004 = vmatprep.mubr.f32.mxu0 0.0
        %1005 = vmatmul.mubr.f32.gmra.mrb[0].mxu0 %v830
        %v1006 = vpop.f32.mrb[0].mxu0
        %v1007 = vadd.f32 %v683, %v1006
        %v1008 = vpop.f32.mrb[0].mxu0
        %1009 = vmatprep.mubr.f32.mxu0 0.0
        %1010 = vmatmul.mubr.f32.gmra.mrb[0].mxu0 %v833
        %v1011 = vpop.f32.mrb[0].mxu0
        %v1012 = vadd.f32 %v688, %v1011
        %v1013 = vpop.f32.mrb[0].mxu0
        %1014 = vmatprep.mubr.f32.mxu0 0.0
        %1015 = vmatmul.mubr.f32.gmra.mrb[0].mxu0 %v836
        %v1016 = vpop.f32.mrb[0].mxu0
        %v1017 = vadd.f32 %v693, %v1016
        %v1018 = vpop.f32.mrb[0].mxu0
        %1019 = vmatprep.mubr.f32.mxu0 0.0
        %1020 = vmatmul.mubr.f32.gmra.mrb[0].mxu0 %v839
        %v1021 = vpop.f32.mrb[0].mxu0
        %v1022 = vadd.f32 %v698, %v1021
        %v1023 = vpop.f32.mrb[0].mxu0
        %1024 = vmatprep.mubr.f32.mxu0 0.0
        %1025 = vmatmul.mubr.f32.gmra.mrb[0].mxu0 %v842
        %v1026 = vpop.f32.mrb[0].mxu0
        %v1027 = vadd.f32 %v703, %v1026
        %v1028 = vpop.f32.mrb[0].mxu0
        %1029 = vmatprep.mubr.f32.mxu0 0.0
        %1030 = vmatmul.mubr.f32.gmra.mrb[0].mxu0 %v845
        %v1031 = vpop.f32.mrb[0].mxu0
        %v1032 = vadd.f32 %v708, %v1031
        %v1033 = vpop.f32.mrb[0].mxu0
        %1034 = vmatprep.mubr.f32.mxu0 0.0
        %1035 = vmatmul.mubr.f32.gmra.mrb[0].mxu0 %v848
        %v1036 = vpop.f32.mrb[0].mxu0
        %v1037 = vadd.f32 %v713, %v1036
        %v1038 = vpop.f32.mrb[0].mxu0
        %1039 = vmatprep.mubr.f32.mxu0 0.0
        %1040 = vmatmul.mubr.f32.gmra.mrb[0].mxu0 %v851
        %v1041 = vpop.f32.mrb[0].mxu0
        %v1042 = vadd.f32 %v718, %v1041
        %v1043 = vpop.f32.mrb[0].mxu0
        %1044 = vmatprep.mubr.f32.mxu0 0.0
        %1045 = vmatmul.mubr.f32.gmra.mrb[0].mxu0 %v854
        %v1046 = vpop.f32.mrb[0].mxu0
        %v1047 = vadd.f32 %v723, %v1046
        %v1048 = vpop.f32.mrb[0].mxu0
        %1049 = vmatprep.mubr.f32.mxu0 0.0
        %1050 = vmatmul.mubr.f32.gmra.mrb[0].mxu0 %v857
        %v1051 = vpop.f32.mrb[0].mxu0
        %v1052 = vadd.f32 %v728, %v1051
        %v1053 = vpop.f32.mrb[0].mxu0
        %1054 = vmatprep.mubr.f32.mxu0 0.0
        %1055 = vmatmul.mubr.f32.gmra.mrb[0].mxu0 %v860
        %v1056 = vpop.f32.mrb[0].mxu0
        %v1057 = vadd.f32 %v733, %v1056
        %v1058 = vpop.f32.mrb[0].mxu0
        %1059 = vmatprep.mubr.f32.mxu0 0.0
        %1060 = vmatmul.mubr.f32.gmra.mrb[0].mxu0 %v863
        %v1061 = vpop.f32.mrb[0].mxu0
        %v1062 = vadd.f32 %v738, %v1061
        %v1063 = vpop.f32.mrb[0].mxu0
        %1064 = vmatprep.mubr.f32.mxu0 0.0
        %1065 = vmatmul.mubr.f32.gmra.mrb[0].mxu0 %v866
        %v1066 = vpop.f32.mrb[0].mxu0
        %v1067 = vadd.f32 %v743, %v1066
        %v1068 = vpop.f32.mrb[0].mxu0
        %1069 = vmatprep.mubr.f32.mxu0 0.0
        %1070 = vmatmul.mubr.f32.gmra.mrb[0].mxu0 %v869
        %v1071 = vpop.f32.mrb[0].mxu0
        %v1072 = vadd.f32 %v748, %v1071
        %v1073 = vpop.f32.mrb[0].mxu0
        %1074 = vmatprep.mubr.f32.mxu0 0.0
        %1075 = vmatmul.mubr.f32.gmra.mrb[0].mxu0 %v872
        %v1076 = vpop.f32.mrb[0].mxu0
        %v1077 = vadd.f32 %v753, %v1076
        %v1078 = vpop.f32.mrb[0].mxu0
        %1079 = vmatprep.mubr.f32.mxu0 0.0
        %1080 = vmatmul.mubr.f32.gmra.mrb[0].mxu0 %v875
        %v1081 = vpop.f32.mrb[0].mxu0
        %v1082 = vadd.f32 %v758, %v1081
        %v1083 = vpop.f32.mrb[0].mxu0
        %1084 = vmatprep.mubr.f32.mxu0 0.0
        %1085 = vmatmul.mubr.f32.gmra.mrb[0].mxu0 %v878
        %v1086 = vpop.f32.mrb[0].mxu0
        %v1087 = vadd.f32 %v763, %v1086
        %v1088 = vpop.f32.mrb[0].mxu0
        %1089 = vmatprep.mubr.f32.mxu0 0.0
        %1090 = vmatmul.mubr.f32.gmra.mrb[0].mxu0 %v881
        %v1091 = vpop.f32.mrb[0].mxu0
        %v1092 = vadd.f32 %v768, %v1091
        %v1093 = vpop.f32.mrb[0].mxu0
        %1094 = vmatprep.mubr.f32.mxu0 0.0
        %1095 = vmatmul.mubr.f32.gmra.mrb[0].mxu0 %v884
        %v1096 = vpop.f32.mrb[0].mxu0
        %v1097 = vadd.f32 %v773, %v1096
        %v1098 = vpop.f32.mrb[0].mxu0
        %1099 = vmatprep.mubr.f32.mxu0 0.0
        %1100 = vmatmul.mubr.f32.gmra.mrb[0].mxu0 %v887
        %v1101 = vpop.f32.mrb[0].mxu0
        %v1102 = vadd.f32 %v778, %v1101
        %v1103 = vpop.f32.mrb[0].mxu0
        %1104 = vmatprep.mubr.f32.mxu0 0.0
        %1105 = vmatmul.mubr.f32.gmra.mrb[0].mxu0 %v890
        %v1106 = vpop.f32.mrb[0].mxu0
        %v1107 = vadd.f32 %v783, %v1106
        %v1108 = vpop.f32.mrb[0].mxu0
        %1109 = vmatprep.mubr.f32.mxu0 0.0
        %1110 = vmatmul.mubr.f32.gmra.mrb[0].mxu0 %v893
        %v1111 = vpop.f32.mrb[0].mxu0
        %v1112 = vadd.f32 %v788, %v1111
        %v1113 = vpop.f32.mrb[0].mxu0
        %1114 = vmatprep.mubr.f32.mxu0 0.0
        %1115 = vmatmul.mubr.f32.gmra.mrb[0].mxu0 %v896
        %v1116 = vpop.f32.mrb[0].mxu0
        %v1117 = vadd.f32 %v793, %v1116
        %v1118 = vpop.f32.mrb[0].mxu0
        %1119 = vmatprep.mubr.f32.mxu0 0.0
        %1120 = vmatmul.mubr.f32.gmra.mrb[0].mxu0 %v899
        %v1121 = vpop.f32.mrb[0].mxu0
        %v1122 = vadd.f32 %v798, %v1121
        %v1123 = vpop.f32.mrb[0].mxu0
        %1124 = vmatprep.mubr.f32.mxu0 0.0
        %1125 = vmatmul.mubr.f32.gmra.mrb[0].mxu0 %v902
        %v1126 = vpop.f32.mrb[0].mxu0
        %v1127 = vadd.f32 %v803, %v1126
        %v1128 = vpop.f32.mrb[0].mxu0
        %1129 = vmatprep.mubr.f32.mxu0 0.0
        %1130 = vmatmul.mubr.f32.gmra.mrb[0].mxu0 %v905
        %v1131 = vpop.f32.mrb[0].mxu0
        %v1132 = vadd.f32 %v808, %v1131
        %v1133 = vpop.f32.mrb[0].mxu0
        %1134 = vdwg.mxu0
        %v1135 = vld [vmem:[#allocation2 + $0x2] sm:$0xff]
        %v1136 = vld [vmem:[#allocation2 + $0xa] sm:$0xff]
        %v1137 = vld [vmem:[#allocation2 + $0x1a] sm:$0xff]
        %v1138 = vld [vmem:[#allocation2 + $0x22] sm:$0xff]
        %v1139 = vld [vmem:[#allocation2 + $0x32] sm:$0xff]
        %v1140 = vld [vmem:[#allocation2 + $0x3a] sm:$0xff]
        %v1141 = vld [vmem:[#allocation2 + $0x4a] sm:$0xff]
        %v1142 = vld [vmem:[#allocation2 + $0x52] sm:$0xff]
        %v1143 = vld [vmem:[#allocation2 + $0x62] sm:$0xff]
        %v1144 = vld [vmem:[#allocation2 + $0x6a] sm:$0xff]
        %v1145 = vld [vmem:[#allocation2 + $0x7a] sm:$0xff]
        %v1146 = vld [vmem:[#allocation2 + $0x82] sm:$0xff]
        %v1147 = vld [vmem:[#allocation2 + $0x92] sm:$0xff]
        %v1148 = vld [vmem:[#allocation2 + $0x9a] sm:$0xff]
        %v1149 = vld [vmem:[#allocation2 + $0xaa] sm:$0xff]
        %v1150 = vld [vmem:[#allocation2 + $0xb2] sm:$0xff]
        %v1151 = vld [vmem:[#allocation2 + $0xc2] sm:$0xff]
        %v1152 = vld [vmem:[#allocation2 + $0xca] sm:$0xff]
        %v1153 = vld [vmem:[#allocation2 + $0xda] sm:$0xff]
        %v1154 = vld [vmem:[#allocation2 + $0xe2] sm:$0xff]
        %v1155 = vld [vmem:[#allocation2 + $0xf2] sm:$0xff]
        %v1156 = vld [vmem:[#allocation2 + $0xfa] sm:$0xff]
        %v1157 = vld [vmem:[#allocation2 + $0x10a] sm:$0xff]
        %v1158 = vld [vmem:[#allocation2 + $0x112] sm:$0xff]
        %v1159 = vld [vmem:[#allocation2 + $0x122] sm:$0xff]
        %v1160 = vld [vmem:[#allocation2 + $0x12a] sm:$0xff]
        %v1161 = vld [vmem:[#allocation2 + $0x13a] sm:$0xff]
        %v1162 = vld [vmem:[#allocation2 + $0x142] sm:$0xff]
        %v1163 = vld [vmem:[#allocation2 + $0x152] sm:$0xff]
        %v1164 = vld [vmem:[#allocation2 + $0x15a] sm:$0xff]
        %v1165 = vld [vmem:[#allocation2 + $0x16a] sm:$0xff]
        %v1166 = vld [vmem:[#allocation2 + $0x172] sm:$0xff]
        %s1167 = scalar_lea.vmem %s2, 8
        %v1168 = vld [vmem:[%s1167] sm:$0xf]
        %v1170 = vsel %vm356, %v1135, 0
        %v1173 = vsel %vm356, %v1136, 0
        %v1176 = vsel %vm356, %v1137, 0
        %v1179 = vsel %vm356, %v1138, 0
        %v1182 = vsel %vm356, %v1139, 0
        %v1185 = vsel %vm356, %v1140, 0
        %v1188 = vsel %vm356, %v1141, 0
        %v1191 = vsel %vm356, %v1142, 0
        %v1194 = vsel %vm356, %v1143, 0
        %v1197 = vsel %vm356, %v1144, 0
        %v1200 = vsel %vm356, %v1145, 0
        %v1203 = vsel %vm356, %v1146, 0
        %v1206 = vsel %vm356, %v1147, 0
        %v1209 = vsel %vm356, %v1148, 0
        %v1212 = vsel %vm356, %v1149, 0
        %v1215 = vsel %vm356, %v1150, 0
        %v1218 = vsel %vm356, %v1151, 0
        %v1221 = vsel %vm356, %v1152, 0
        %v1224 = vsel %vm356, %v1153, 0
        %v1227 = vsel %vm356, %v1154, 0
        %v1230 = vsel %vm356, %v1155, 0
        %v1233 = vsel %vm356, %v1156, 0
        %v1236 = vsel %vm356, %v1157, 0
        %v1239 = vsel %vm356, %v1158, 0
        %v1242 = vsel %vm356, %v1159, 0
        %v1245 = vsel %vm356, %v1160, 0
        %v1248 = vsel %vm356, %v1161, 0
        %v1251 = vsel %vm356, %v1162, 0
        %v1254 = vsel %vm356, %v1163, 0
        %v1257 = vsel %vm356, %v1164, 0
        %v1260 = vsel %vm356, %v1165, 0
        %v1263 = vsel %vm356, %v1166, 0
        %v1266 = vsel %vm582, %v1168, 0
        %1268 = vmatprep.subr.mxu0 0.0
        %1269 = vmatpush1.msra.mxu0 %v1266
        %1270 = vmatprep.subr.mxu0 0.0
        %1271 = vmatpush1.msra.mxu0 0.0
        %1272 = vmatprep.subr.mxu0 0.0
        %1273 = vmatpush1.msra.mxu0 0.0
        %1274 = vmatprep.subr.mxu0 0.0
        %1275 = vmatpush1.msra.mxu0 0.0
        %1276 = vmatprep.subr.mxu0 0.0
        %1277 = vmatpush1.msra.mxu0 0.0
        %1278 = vmatprep.subr.mxu0 0.0
        %1279 = vmatpush1.msra.mxu0 0.0
        %1280 = vmatprep.subr.mxu0 0.0
        %1281 = vmatpush1.msra.mxu0 0.0
        %1282 = vmatprep.subr.mxu0 0.0
        %1283 = vmatpush1.msra.mxu0 0.0
        %1284 = vmatprep.subr.mxu0 0.0
        %1285 = vmatpush1.msra.mxu0 0.0
        %1286 = vmatprep.subr.mxu0 0.0
        %1287 = vmatpush1.msra.mxu0 0.0
        %1288 = vmatprep.subr.mxu0 0.0
        %1289 = vmatpush1.msra.mxu0 0.0
        %1290 = vmatprep.subr.mxu0 0.0
        %1291 = vmatpush1.msra.mxu0 0.0
        %1292 = vmatprep.subr.mxu0 0.0
        %1293 = vmatpush1.msra.mxu0 0.0
        %1294 = vmatprep.subr.mxu0 0.0
        %1295 = vmatpush1.msra.mxu0 0.0
        %1296 = vmatprep.subr.mxu0 0.0
        %1297 = vmatpush1.msra.mxu0 0.0
        %1298 = vmatprep.subr.mxu0 0.0
        %1299 = vmatpush1.msra.mxu0 0.0
        %1300 = vmatprep.subr.mxu0 0.0
        %1301 = vmatpush1.msra.mxu0 0.0
        %1302 = vmatprep.subr.mxu0 0.0
        %1303 = vmatpush1.msra.mxu0 0.0
        %1304 = vmatprep.subr.mxu0 0.0
        %1305 = vmatpush1.msra.mxu0 0.0
        %1306 = vmatprep.subr.mxu0 0.0
        %1307 = vmatpush1.msra.mxu0 0.0
        %1308 = vmatprep.subr.mxu0 0.0
        %1309 = vmatpush1.msra.mxu0 0.0
        %1310 = vmatprep.subr.mxu0 0.0
        %1311 = vmatpush1.msra.mxu0 0.0
        %1312 = vmatprep.subr.mxu0 0.0
        %1313 = vmatpush1.msra.mxu0 0.0
        %1314 = vmatprep.subr.mxu0 0.0
        %1315 = vmatpush1.msra.mxu0 0.0
        %1316 = vmatprep.subr.mxu0 0.0
        %1317 = vmatpush1.msra.mxu0 0.0
        %1318 = vmatprep.subr.mxu0 0.0
        %1319 = vmatpush1.msra.mxu0 0.0
        %1320 = vmatprep.subr.mxu0 0.0
        %1321 = vmatpush1.msra.mxu0 0.0
        %1322 = vmatprep.subr.mxu0 0.0
        %1323 = vmatpush1.msra.mxu0 0.0
        %1324 = vmatprep.subr.mxu0 0.0
        %1325 = vmatpush1.msra.mxu0 0.0
        %1326 = vmatprep.subr.mxu0 0.0
        %1327 = vmatpush1.msra.mxu0 0.0
        %1328 = vmatprep.subr.mxu0 0.0
        %1329 = vmatpush1.msra.mxu0 0.0
        %1330 = vmatprep.subr.mxu0 0.0
        %1331 = vmatpush1.msra.mxu0 0.0
        %1332 = vmatprep.mubr.f32.mxu0 0.0
        %1333 = vmatmul.mubr.f32.gmra.mrb[0].mxu0 %v1170
        %v1334 = vpop.f32.mrb[0].mxu0
        %v1335 = vadd.f32 0.0, %v1334
        %v1336 = vpop.f32.mrb[0].mxu0
        %1337 = vmatprep.mubr.f32.mxu0 0.0
        %1338 = vmatmul.mubr.f32.gmra.mrb[0].mxu0 %v1173
        %v1339 = vpop.f32.mrb[0].mxu0
        %v1340 = vadd.f32 0.0, %v1339
        %v1341 = vpop.f32.mrb[0].mxu0
        %1342 = vmatprep.mubr.f32.mxu0 0.0
        %1343 = vmatmul.mubr.f32.gmra.mrb[0].mxu0 %v1176
        %v1344 = vpop.f32.mrb[0].mxu0
        %v1345 = vadd.f32 0.0, %v1344
        %v1346 = vpop.f32.mrb[0].mxu0
        %1347 = vmatprep.mubr.f32.mxu0 0.0
        %1348 = vmatmul.mubr.f32.gmra.mrb[0].mxu0 %v1179
        %v1349 = vpop.f32.mrb[0].mxu0
        %v1350 = vadd.f32 0.0, %v1349
        %v1351 = vpop.f32.mrb[0].mxu0
        %1352 = vmatprep.mubr.f32.mxu0 0.0
        %1353 = vmatmul.mubr.f32.gmra.mrb[0].mxu0 %v1182
        %v1354 = vpop.f32.mrb[0].mxu0
        %v1355 = vadd.f32 0.0, %v1354
        %v1356 = vpop.f32.mrb[0].mxu0
        %1357 = vmatprep.mubr.f32.mxu0 0.0
        %1358 = vmatmul.mubr.f32.gmra.mrb[0].mxu0 %v1185
        %v1359 = vpop.f32.mrb[0].mxu0
        %v1360 = vadd.f32 0.0, %v1359
        %v1361 = vpop.f32.mrb[0].mxu0
        %1362 = vmatprep.mubr.f32.mxu0 0.0
        %1363 = vmatmul.mubr.f32.gmra.mrb[0].mxu0 %v1188
        %v1364 = vpop.f32.mrb[0].mxu0
        %v1365 = vadd.f32 0.0, %v1364
        %v1366 = vpop.f32.mrb[0].mxu0
        %1367 = vmatprep.mubr.f32.mxu0 0.0
        %1368 = vmatmul.mubr.f32.gmra.mrb[0].mxu0 %v1191
        %v1369 = vpop.f32.mrb[0].mxu0
        %v1370 = vadd.f32 0.0, %v1369
        %v1371 = vpop.f32.mrb[0].mxu0
        %1372 = vmatprep.mubr.f32.mxu0 0.0
        %1373 = vmatmul.mubr.f32.gmra.mrb[0].mxu0 %v1194
        %v1374 = vpop.f32.mrb[0].mxu0
        %v1375 = vadd.f32 0.0, %v1374
        %v1376 = vpop.f32.mrb[0].mxu0
        %1377 = vmatprep.mubr.f32.mxu0 0.0
        %1378 = vmatmul.mubr.f32.gmra.mrb[0].mxu0 %v1197
        %v1379 = vpop.f32.mrb[0].mxu0
        %v1380 = vadd.f32 0.0, %v1379
        %v1381 = vpop.f32.mrb[0].mxu0
        %1382 = vmatprep.mubr.f32.mxu0 0.0
        %1383 = vmatmul.mubr.f32.gmra.mrb[0].mxu0 %v1200
        %v1384 = vpop.f32.mrb[0].mxu0
        %v1385 = vadd.f32 0.0, %v1384
        %v1386 = vpop.f32.mrb[0].mxu0
        %1387 = vmatprep.mubr.f32.mxu0 0.0
        %1388 = vmatmul.mubr.f32.gmra.mrb[0].mxu0 %v1203
        %v1389 = vpop.f32.mrb[0].mxu0
        %v1390 = vadd.f32 0.0, %v1389
        %v1391 = vpop.f32.mrb[0].mxu0
        %1392 = vmatprep.mubr.f32.mxu0 0.0
        %1393 = vmatmul.mubr.f32.gmra.mrb[0].mxu0 %v1206
        %v1394 = vpop.f32.mrb[0].mxu0
        %v1395 = vadd.f32 0.0, %v1394
        %v1396 = vpop.f32.mrb[0].mxu0
        %1397 = vmatprep.mubr.f32.mxu0 0.0
        %1398 = vmatmul.mubr.f32.gmra.mrb[0].mxu0 %v1209
        %v1399 = vpop.f32.mrb[0].mxu0
        %v1400 = vadd.f32 0.0, %v1399
        %v1401 = vpop.f32.mrb[0].mxu0
        %1402 = vmatprep.mubr.f32.mxu0 0.0
        %1403 = vmatmul.mubr.f32.gmra.mrb[0].mxu0 %v1212
        %v1404 = vpop.f32.mrb[0].mxu0
        %v1405 = vadd.f32 0.0, %v1404
        %v1406 = vpop.f32.mrb[0].mxu0
        %1407 = vmatprep.mubr.f32.mxu0 0.0
        %1408 = vmatmul.mubr.f32.gmra.mrb[0].mxu0 %v1215
        %v1409 = vpop.f32.mrb[0].mxu0
        %v1410 = vadd.f32 0.0, %v1409
        %v1411 = vpop.f32.mrb[0].mxu0
        %1412 = vmatprep.mubr.f32.mxu0 0.0
        %1413 = vmatmul.mubr.f32.gmra.mrb[0].mxu0 %v1218
        %v1414 = vpop.f32.mrb[0].mxu0
        %v1415 = vadd.f32 0.0, %v1414
        %v1416 = vpop.f32.mrb[0].mxu0
        %1417 = vmatprep.mubr.f32.mxu0 0.0
        %1418 = vmatmul.mubr.f32.gmra.mrb[0].mxu0 %v1221
        %v1419 = vpop.f32.mrb[0].mxu0
        %v1420 = vadd.f32 0.0, %v1419
        %v1421 = vpop.f32.mrb[0].mxu0
        %1422 = vmatprep.mubr.f32.mxu0 0.0
        %1423 = vmatmul.mubr.f32.gmra.mrb[0].mxu0 %v1224
        %v1424 = vpop.f32.mrb[0].mxu0
        %v1425 = vadd.f32 0.0, %v1424
        %v1426 = vpop.f32.mrb[0].mxu0
        %1427 = vmatprep.mubr.f32.mxu0 0.0
        %1428 = vmatmul.mubr.f32.gmra.mrb[0].mxu0 %v1227
        %v1429 = vpop.f32.mrb[0].mxu0
        %v1430 = vadd.f32 0.0, %v1429
        %v1431 = vpop.f32.mrb[0].mxu0
        %1432 = vmatprep.mubr.f32.mxu0 0.0
        %1433 = vmatmul.mubr.f32.gmra.mrb[0].mxu0 %v1230
        %v1434 = vpop.f32.mrb[0].mxu0
        %v1435 = vadd.f32 0.0, %v1434
        %v1436 = vpop.f32.mrb[0].mxu0
        %1437 = vmatprep.mubr.f32.mxu0 0.0
        %1438 = vmatmul.mubr.f32.gmra.mrb[0].mxu0 %v1233
        %v1439 = vpop.f32.mrb[0].mxu0
        %v1440 = vadd.f32 0.0, %v1439
        %v1441 = vpop.f32.mrb[0].mxu0
        %1442 = vmatprep.mubr.f32.mxu0 0.0
        %1443 = vmatmul.mubr.f32.gmra.mrb[0].mxu0 %v1236
        %v1444 = vpop.f32.mrb[0].mxu0
        %v1445 = vadd.f32 0.0, %v1444
        %v1446 = vpop.f32.mrb[0].mxu0
        %1447 = vmatprep.mubr.f32.mxu0 0.0
        %1448 = vmatmul.mubr.f32.gmra.mrb[0].mxu0 %v1239
        %v1449 = vpop.f32.mrb[0].mxu0
        %v1450 = vadd.f32 0.0, %v1449
        %v1451 = vpop.f32.mrb[0].mxu0
        %1452 = vmatprep.mubr.f32.mxu0 0.0
        %1453 = vmatmul.mubr.f32.gmra.mrb[0].mxu0 %v1242
        %v1454 = vpop.f32.mrb[0].mxu0
        %v1455 = vadd.f32 0.0, %v1454
        %v1456 = vpop.f32.mrb[0].mxu0
        %1457 = vmatprep.mubr.f32.mxu0 0.0
        %1458 = vmatmul.mubr.f32.gmra.mrb[0].mxu0 %v1245
        %v1459 = vpop.f32.mrb[0].mxu0
        %v1460 = vadd.f32 0.0, %v1459
        %v1461 = vpop.f32.mrb[0].mxu0
        %1462 = vmatprep.mubr.f32.mxu0 0.0
        %1463 = vmatmul.mubr.f32.gmra.mrb[0].mxu0 %v1248
        %v1464 = vpop.f32.mrb[0].mxu0
        %v1465 = vadd.f32 0.0, %v1464
        %v1466 = vpop.f32.mrb[0].mxu0
        %1467 = vmatprep.mubr.f32.mxu0 0.0
        %1468 = vmatmul.mubr.f32.gmra.mrb[0].mxu0 %v1251
        %v1469 = vpop.f32.mrb[0].mxu0
        %v1470 = vadd.f32 0.0, %v1469
        %v1471 = vpop.f32.mrb[0].mxu0
        %1472 = vmatprep.mubr.f32.mxu0 0.0
        %1473 = vmatmul.mubr.f32.gmra.mrb[0].mxu0 %v1254
        %v1474 = vpop.f32.mrb[0].mxu0
        %v1475 = vadd.f32 0.0, %v1474
        %v1476 = vpop.f32.mrb[0].mxu0
        %1477 = vmatprep.mubr.f32.mxu0 0.0
        %1478 = vmatmul.mubr.f32.gmra.mrb[0].mxu0 %v1257
        %v1479 = vpop.f32.mrb[0].mxu0
        %v1480 = vadd.f32 0.0, %v1479
        %v1481 = vpop.f32.mrb[0].mxu0
        %1482 = vmatprep.mubr.f32.mxu0 0.0
        %1483 = vmatmul.mubr.f32.gmra.mrb[0].mxu0 %v1260
        %v1484 = vpop.f32.mrb[0].mxu0
        %v1485 = vadd.f32 0.0, %v1484
        %v1486 = vpop.f32.mrb[0].mxu0
        %1487 = vmatprep.mubr.f32.mxu0 0.0
        %1488 = vmatmul.mubr.f32.gmra.mrb[0].mxu0 %v1263
        %v1489 = vpop.f32.mrb[0].mxu0
        %v1490 = vadd.f32 0.0, %v1489
        %v1491 = vpop.f32.mrb[0].mxu0
        %1492 = vdwg.mxu0
        %v1493 = vadd.f32 %v977, %v1335
        %v1494 = vadd.f32 %v982, %v1340
        %v1495 = vadd.f32 %v987, %v1345
        %v1496 = vadd.f32 %v992, %v1350
        %v1497 = vadd.f32 %v997, %v1355
        %v1498 = vadd.f32 %v1002, %v1360
        %v1499 = vadd.f32 %v1007, %v1365
        %v1500 = vadd.f32 %v1012, %v1370
        %v1501 = vadd.f32 %v1017, %v1375
        %v1502 = vadd.f32 %v1022, %v1380
        %v1503 = vadd.f32 %v1027, %v1385
        %v1504 = vadd.f32 %v1032, %v1390
        %v1505 = vadd.f32 %v1037, %v1395
        %v1506 = vadd.f32 %v1042, %v1400
        %v1507 = vadd.f32 %v1047, %v1405
        %v1508 = vadd.f32 %v1052, %v1410
        %v1509 = vadd.f32 %v1057, %v1415
        %v1510 = vadd.f32 %v1062, %v1420
        %v1511 = vadd.f32 %v1067, %v1425
        %v1512 = vadd.f32 %v1072, %v1430
        %v1513 = vadd.f32 %v1077, %v1435
        %v1514 = vadd.f32 %v1082, %v1440
        %v1515 = vadd.f32 %v1087, %v1445
        %v1516 = vadd.f32 %v1092, %v1450
        %v1517 = vadd.f32 %v1097, %v1455
        %v1518 = vadd.f32 %v1102, %v1460
        %v1519 = vadd.f32 %v1107, %v1465
        %v1520 = vadd.f32 %v1112, %v1470
        %v1521 = vadd.f32 %v1117, %v1475
        %v1522 = vadd.f32 %v1122, %v1480
        %v1523 = vadd.f32 %v1127, %v1485
        %v1524 = vadd.f32 %v1132, %v1490
        %s1525 = scalar_lea.vmem [#allocation2], 24
        %v1526 = vld [vmem:[%s1525] sm:$0xff]
        %v1527 = vld [vmem:[%s1525 + $0x8] sm:$0xff]
        %v1528 = vld [vmem:[%s1525 + $0x18] sm:$0xff]
        %v1529 = vld [vmem:[%s1525 + $0x20] sm:$0xff]
        %v1530 = vld [vmem:[%s1525 + $0x30] sm:$0xff]
        %v1531 = vld [vmem:[%s1525 + $0x38] sm:$0xff]
        %v1532 = vld [vmem:[%s1525 + $0x48] sm:$0xff]
        %v1533 = vld [vmem:[%s1525 + $0x50] sm:$0xff]
        %v1534 = vld [vmem:[%s1525 + $0x60] sm:$0xff]
        %v1535 = vld [vmem:[%s1525 + $0x68] sm:$0xff]
        %v1536 = vld [vmem:[%s1525 + $0x78] sm:$0xff]
        %v1537 = vld [vmem:[%s1525 + $0x80] sm:$0xff]
        %v1538 = vld [vmem:[%s1525 + $0x90] sm:$0xff]
        %v1539 = vld [vmem:[%s1525 + $0x98] sm:$0xff]
        %v1540 = vld [vmem:[%s1525 + $0xa8] sm:$0xff]
        %v1541 = vld [vmem:[%s1525 + $0xb0] sm:$0xff]
        %v1542 = vld [vmem:[%s1525 + $0xc0] sm:$0xff]
        %v1543 = vld [vmem:[%s1525 + $0xc8] sm:$0xff]
        %v1544 = vld [vmem:[%s1525 + $0xd8] sm:$0xff]
        %v1545 = vld [vmem:[%s1525 + $0xe0] sm:$0xff]
        %v1546 = vld [vmem:[%s1525 + $0xf0] sm:$0xff]
        %v1547 = vld [vmem:[%s1525 + $0xf8] sm:$0xff]
        %v1548 = vld [vmem:[%s1525 + $0x108] sm:$0xff]
        %v1549 = vld [vmem:[%s1525 + $0x110] sm:$0xff]
        %v1550 = vld [vmem:[%s1525 + $0x120] sm:$0xff]
        %v1551 = vld [vmem:[%s1525 + $0x128] sm:$0xff]
        %v1552 = vld [vmem:[%s1525 + $0x138] sm:$0xff]
        %v1553 = vld [vmem:[%s1525 + $0x140] sm:$0xff]
        %v1554 = vld [vmem:[%s1525 + $0x150] sm:$0xff]
        %v1555 = vld [vmem:[%s1525 + $0x158] sm:$0xff]
        %v1556 = vld [vmem:[%s1525 + $0x168] sm:$0xff]
        %v1557 = vld [vmem:[%s1525 + $0x170] sm:$0xff]
        %s1558 = scalar_lea.vmem %s2, 12
        %v1559 = vld [vmem:[%s1558] sm:$0xf]
        %v1561 = vsel %vm356, %v1526, 0
        %v1564 = vsel %vm356, %v1527, 0
        %v1567 = vsel %vm356, %v1528, 0
        %v1570 = vsel %vm356, %v1529, 0
        %v1573 = vsel %vm356, %v1530, 0
        %v1576 = vsel %vm356, %v1531, 0
        %v1579 = vsel %vm356, %v1532, 0
        %v1582 = vsel %vm356, %v1533, 0
        %v1585 = vsel %vm356, %v1534, 0
        %v1588 = vsel %vm356, %v1535, 0
        %v1591 = vsel %vm356, %v1536, 0
        %v1594 = vsel %vm356, %v1537, 0
        %v1597 = vsel %vm356, %v1538, 0
        %v1600 = vsel %vm356, %v1539, 0
        %v1603 = vsel %vm356, %v1540, 0
        %v1606 = vsel %vm356, %v1541, 0
        %v1609 = vsel %vm356, %v1542, 0
        %v1612 = vsel %vm356, %v1543, 0
        %v1615 = vsel %vm356, %v1544, 0
        %v1618 = vsel %vm356, %v1545, 0
        %v1621 = vsel %vm356, %v1546, 0
        %v1624 = vsel %vm356, %v1547, 0
        %v1627 = vsel %vm356, %v1548, 0
        %v1630 = vsel %vm356, %v1549, 0
        %v1633 = vsel %vm356, %v1550, 0
        %v1636 = vsel %vm356, %v1551, 0
        %v1639 = vsel %vm356, %v1552, 0
        %v1642 = vsel %vm356, %v1553, 0
        %v1645 = vsel %vm356, %v1554, 0
        %v1648 = vsel %vm356, %v1555, 0
        %v1651 = vsel %vm356, %v1556, 0
        %v1654 = vsel %vm356, %v1557, 0
        %v1657 = vsel %vm582, %v1559, 0
        %1659 = vmatprep.subr.mxu0 0.0
        %1660 = vmatpush1.msra.mxu0 %v1657
        %1661 = vmatprep.subr.mxu0 0.0
        %1662 = vmatpush1.msra.mxu0 0.0
        %1663 = vmatprep.subr.mxu0 0.0
        %1664 = vmatpush1.msra.mxu0 0.0
        %1665 = vmatprep.subr.mxu0 0.0
        %1666 = vmatpush1.msra.mxu0 0.0
        %1667 = vmatprep.subr.mxu0 0.0
        %1668 = vmatpush1.msra.mxu0 0.0
        %1669 = vmatprep.subr.mxu0 0.0
        %1670 = vmatpush1.msra.mxu0 0.0
        %1671 = vmatprep.subr.mxu0 0.0
        %1672 = vmatpush1.msra.mxu0 0.0
        %1673 = vmatprep.subr.mxu0 0.0
        %1674 = vmatpush1.msra.mxu0 0.0
        %1675 = vmatprep.subr.mxu0 0.0
        %1676 = vmatpush1.msra.mxu0 0.0
        %1677 = vmatprep.subr.mxu0 0.0
        %1678 = vmatpush1.msra.mxu0 0.0
        %1679 = vmatprep.subr.mxu0 0.0
        %1680 = vmatpush1.msra.mxu0 0.0
        %1681 = vmatprep.subr.mxu0 0.0
        %1682 = vmatpush1.msra.mxu0 0.0
        %1683 = vmatprep.subr.mxu0 0.0
        %1684 = vmatpush1.msra.mxu0 0.0
        %1685 = vmatprep.subr.mxu0 0.0
        %1686 = vmatpush1.msra.mxu0 0.0
        %1687 = vmatprep.subr.mxu0 0.0
        %1688 = vmatpush1.msra.mxu0 0.0
        %1689 = vmatprep.subr.mxu0 0.0
        %1690 = vmatpush1.msra.mxu0 0.0
        %1691 = vmatprep.subr.mxu0 0.0
        %1692 = vmatpush1.msra.mxu0 0.0
        %1693 = vmatprep.subr.mxu0 0.0
        %1694 = vmatpush1.msra.mxu0 0.0
        %1695 = vmatprep.subr.mxu0 0.0
        %1696 = vmatpush1.msra.mxu0 0.0
        %1697 = vmatprep.subr.mxu0 0.0
        %1698 = vmatpush1.msra.mxu0 0.0
        %1699 = vmatprep.subr.mxu0 0.0
        %1700 = vmatpush1.msra.mxu0 0.0
        %1701 = vmatprep.subr.mxu0 0.0
        %1702 = vmatpush1.msra.mxu0 0.0
        %1703 = vmatprep.subr.mxu0 0.0
        %1704 = vmatpush1.msra.mxu0 0.0
        %1705 = vmatprep.subr.mxu0 0.0
        %1706 = vmatpush1.msra.mxu0 0.0
        %1707 = vmatprep.subr.mxu0 0.0
        %1708 = vmatpush1.msra.mxu0 0.0
        %1709 = vmatprep.subr.mxu0 0.0
        %1710 = vmatpush1.msra.mxu0 0.0
        %1711 = vmatprep.subr.mxu0 0.0
        %1712 = vmatpush1.msra.mxu0 0.0
        %1713 = vmatprep.subr.mxu0 0.0
        %1714 = vmatpush1.msra.mxu0 0.0
        %1715 = vmatprep.subr.mxu0 0.0
        %1716 = vmatpush1.msra.mxu0 0.0
        %1717 = vmatprep.subr.mxu0 0.0
        %1718 = vmatpush1.msra.mxu0 0.0
        %1719 = vmatprep.subr.mxu0 0.0
        %1720 = vmatpush1.msra.mxu0 0.0
        %1721 = vmatprep.subr.mxu0 0.0
        %1722 = vmatpush1.msra.mxu0 0.0
        %1723 = vmatprep.mubr.f32.mxu0 0.0
        %1724 = vmatmul.mubr.f32.gmra.mrb[0].mxu0 %v1561
        %v1725 = vpop.f32.mrb[0].mxu0
        %v1726 = vadd.f32 0.0, %v1725
        %v1727 = vpop.f32.mrb[0].mxu0
        %1728 = vmatprep.mubr.f32.mxu0 0.0
        %1729 = vmatmul.mubr.f32.gmra.mrb[0].mxu0 %v1564
        %v1730 = vpop.f32.mrb[0].mxu0
        %v1731 = vadd.f32 0.0, %v1730
        %v1732 = vpop.f32.mrb[0].mxu0
        %1733 = vmatprep.mubr.f32.mxu0 0.0
        %1734 = vmatmul.mubr.f32.gmra.mrb[0].mxu0 %v1567
        %v1735 = vpop.f32.mrb[0].mxu0
        %v1736 = vadd.f32 0.0, %v1735
        %v1737 = vpop.f32.mrb[0].mxu0
        %1738 = vmatprep.mubr.f32.mxu0 0.0
        %1739 = vmatmul.mubr.f32.gmra.mrb[0].mxu0 %v1570
        %v1740 = vpop.f32.mrb[0].mxu0
        %v1741 = vadd.f32 0.0, %v1740
        %v1742 = vpop.f32.mrb[0].mxu0
        %1743 = vmatprep.mubr.f32.mxu0 0.0
        %1744 = vmatmul.mubr.f32.gmra.mrb[0].mxu0 %v1573
        %v1745 = vpop.f32.mrb[0].mxu0
        %v1746 = vadd.f32 0.0, %v1745
        %v1747 = vpop.f32.mrb[0].mxu0
        %1748 = vmatprep.mubr.f32.mxu0 0.0
        %1749 = vmatmul.mubr.f32.gmra.mrb[0].mxu0 %v1576
        %v1750 = vpop.f32.mrb[0].mxu0
        %v1751 = vadd.f32 0.0, %v1750
        %v1752 = vpop.f32.mrb[0].mxu0
        %1753 = vmatprep.mubr.f32.mxu0 0.0
        %1754 = vmatmul.mubr.f32.gmra.mrb[0].mxu0 %v1579
        %v1755 = vpop.f32.mrb[0].mxu0
        %v1756 = vadd.f32 0.0, %v1755
        %v1757 = vpop.f32.mrb[0].mxu0
        %1758 = vmatprep.mubr.f32.mxu0 0.0
        %1759 = vmatmul.mubr.f32.gmra.mrb[0].mxu0 %v1582
        %v1760 = vpop.f32.mrb[0].mxu0
        %v1761 = vadd.f32 0.0, %v1760
        %v1762 = vpop.f32.mrb[0].mxu0
        %1763 = vmatprep.mubr.f32.mxu0 0.0
        %1764 = vmatmul.mubr.f32.gmra.mrb[0].mxu0 %v1585
        %v1765 = vpop.f32.mrb[0].mxu0
        %v1766 = vadd.f32 0.0, %v1765
        %v1767 = vpop.f32.mrb[0].mxu0
        %1768 = vmatprep.mubr.f32.mxu0 0.0
        %1769 = vmatmul.mubr.f32.gmra.mrb[0].mxu0 %v1588
        %v1770 = vpop.f32.mrb[0].mxu0
        %v1771 = vadd.f32 0.0, %v1770
        %v1772 = vpop.f32.mrb[0].mxu0
        %1773 = vmatprep.mubr.f32.mxu0 0.0
        %1774 = vmatmul.mubr.f32.gmra.mrb[0].mxu0 %v1591
        %v1775 = vpop.f32.mrb[0].mxu0
        %v1776 = vadd.f32 0.0, %v1775
        %v1777 = vpop.f32.mrb[0].mxu0
        %1778 = vmatprep.mubr.f32.mxu0 0.0
        %1779 = vmatmul.mubr.f32.gmra.mrb[0].mxu0 %v1594
        %v1780 = vpop.f32.mrb[0].mxu0
        %v1781 = vadd.f32 0.0, %v1780
        %v1782 = vpop.f32.mrb[0].mxu0
        %1783 = vmatprep.mubr.f32.mxu0 0.0
        %1784 = vmatmul.mubr.f32.gmra.mrb[0].mxu0 %v1597
        %v1785 = vpop.f32.mrb[0].mxu0
        %v1786 = vadd.f32 0.0, %v1785
        %v1787 = vpop.f32.mrb[0].mxu0
        %1788 = vmatprep.mubr.f32.mxu0 0.0
        %1789 = vmatmul.mubr.f32.gmra.mrb[0].mxu0 %v1600
        %v1790 = vpop.f32.mrb[0].mxu0
        %v1791 = vadd.f32 0.0, %v1790
        %v1792 = vpop.f32.mrb[0].mxu0
        %1793 = vmatprep.mubr.f32.mxu0 0.0
        %1794 = vmatmul.mubr.f32.gmra.mrb[0].mxu0 %v1603
        %v1795 = vpop.f32.mrb[0].mxu0
        %v1796 = vadd.f32 0.0, %v1795
        %v1797 = vpop.f32.mrb[0].mxu0
        %1798 = vmatprep.mubr.f32.mxu0 0.0
        %1799 = vmatmul.mubr.f32.gmra.mrb[0].mxu0 %v1606
        %v1800 = vpop.f32.mrb[0].mxu0
        %v1801 = vadd.f32 0.0, %v1800
        %v1802 = vpop.f32.mrb[0].mxu0
        %1803 = vmatprep.mubr.f32.mxu0 0.0
        %1804 = vmatmul.mubr.f32.gmra.mrb[0].mxu0 %v1609
        %v1805 = vpop.f32.mrb[0].mxu0
        %v1806 = vadd.f32 0.0, %v1805
        %v1807 = vpop.f32.mrb[0].mxu0
        %1808 = vmatprep.mubr.f32.mxu0 0.0
        %1809 = vmatmul.mubr.f32.gmra.mrb[0].mxu0 %v1612
        %v1810 = vpop.f32.mrb[0].mxu0
        %v1811 = vadd.f32 0.0, %v1810
        %v1812 = vpop.f32.mrb[0].mxu0
        %1813 = vmatprep.mubr.f32.mxu0 0.0
        %1814 = vmatmul.mubr.f32.gmra.mrb[0].mxu0 %v1615
        %v1815 = vpop.f32.mrb[0].mxu0
        %v1816 = vadd.f32 0.0, %v1815
        %v1817 = vpop.f32.mrb[0].mxu0
        %1818 = vmatprep.mubr.f32.mxu0 0.0
        %1819 = vmatmul.mubr.f32.gmra.mrb[0].mxu0 %v1618
        %v1820 = vpop.f32.mrb[0].mxu0
        %v1821 = vadd.f32 0.0, %v1820
        %v1822 = vpop.f32.mrb[0].mxu0
        %1823 = vmatprep.mubr.f32.mxu0 0.0
        %1824 = vmatmul.mubr.f32.gmra.mrb[0].mxu0 %v1621
        %v1825 = vpop.f32.mrb[0].mxu0
        %v1826 = vadd.f32 0.0, %v1825
        %v1827 = vpop.f32.mrb[0].mxu0
        %1828 = vmatprep.mubr.f32.mxu0 0.0
        %1829 = vmatmul.mubr.f32.gmra.mrb[0].mxu0 %v1624
        %v1830 = vpop.f32.mrb[0].mxu0
        %v1831 = vadd.f32 0.0, %v1830
        %v1832 = vpop.f32.mrb[0].mxu0
        %1833 = vmatprep.mubr.f32.mxu0 0.0
        %1834 = vmatmul.mubr.f32.gmra.mrb[0].mxu0 %v1627
        %v1835 = vpop.f32.mrb[0].mxu0
        %v1836 = vadd.f32 0.0, %v1835
        %v1837 = vpop.f32.mrb[0].mxu0
        %1838 = vmatprep.mubr.f32.mxu0 0.0
        %1839 = vmatmul.mubr.f32.gmra.mrb[0].mxu0 %v1630
        %v1840 = vpop.f32.mrb[0].mxu0
        %v1841 = vadd.f32 0.0, %v1840
        %v1842 = vpop.f32.mrb[0].mxu0
        %1843 = vmatprep.mubr.f32.mxu0 0.0
        %1844 = vmatmul.mubr.f32.gmra.mrb[0].mxu0 %v1633
        %v1845 = vpop.f32.mrb[0].mxu0
        %v1846 = vadd.f32 0.0, %v1845
        %v1847 = vpop.f32.mrb[0].mxu0
        %1848 = vmatprep.mubr.f32.mxu0 0.0
        %1849 = vmatmul.mubr.f32.gmra.mrb[0].mxu0 %v1636
        %v1850 = vpop.f32.mrb[0].mxu0
        %v1851 = vadd.f32 0.0, %v1850
        %v1852 = vpop.f32.mrb[0].mxu0
        %1853 = vmatprep.mubr.f32.mxu0 0.0
        %1854 = vmatmul.mubr.f32.gmra.mrb[0].mxu0 %v1639
        %v1855 = vpop.f32.mrb[0].mxu0
        %v1856 = vadd.f32 0.0, %v1855
        %v1857 = vpop.f32.mrb[0].mxu0
        %1858 = vmatprep.mubr.f32.mxu0 0.0
        %1859 = vmatmul.mubr.f32.gmra.mrb[0].mxu0 %v1642
        %v1860 = vpop.f32.mrb[0].mxu0
        %v1861 = vadd.f32 0.0, %v1860
        %v1862 = vpop.f32.mrb[0].mxu0
        %1863 = vmatprep.mubr.f32.mxu0 0.0
        %1864 = vmatmul.mubr.f32.gmra.mrb[0].mxu0 %v1645
        %v1865 = vpop.f32.mrb[0].mxu0
        %v1866 = vadd.f32 0.0, %v1865
        %v1867 = vpop.f32.mrb[0].mxu0
        %1868 = vmatprep.mubr.f32.mxu0 0.0
        %1869 = vmatmul.mubr.f32.gmra.mrb[0].mxu0 %v1648
        %v1870 = vpop.f32.mrb[0].mxu0
        %v1871 = vadd.f32 0.0, %v1870
        %v1872 = vpop.f32.mrb[0].mxu0
        %1873 = vmatprep.mubr.f32.mxu0 0.0
        %1874 = vmatmul.mubr.f32.gmra.mrb[0].mxu0 %v1651
        %v1875 = vpop.f32.mrb[0].mxu0
        %v1876 = vadd.f32 0.0, %v1875
        %v1877 = vpop.f32.mrb[0].mxu0
        %1878 = vmatprep.mubr.f32.mxu0 0.0
        %1879 = vmatmul.mubr.f32.gmra.mrb[0].mxu0 %v1654
        %v1880 = vpop.f32.mrb[0].mxu0
        %v1881 = vadd.f32 0.0, %v1880
        %v1882 = vpop.f32.mrb[0].mxu0
        %1883 = vdwg.mxu0
        %v1884 = vadd.f32 %v1493, %v1726
        %v1885 = vadd.f32 %v1494, %v1731
        %v1886 = vadd.f32 %v1495, %v1736
        %v1887 = vadd.f32 %v1496, %v1741
        %v1888 = vadd.f32 %v1497, %v1746
        %v1889 = vadd.f32 %v1498, %v1751
        %v1890 = vadd.f32 %v1499, %v1756
        %v1891 = vadd.f32 %v1500, %v1761
        %v1892 = vadd.f32 %v1501, %v1766
        %v1893 = vadd.f32 %v1502, %v1771
        %v1894 = vadd.f32 %v1503, %v1776
        %v1895 = vadd.f32 %v1504, %v1781
        %v1896 = vadd.f32 %v1505, %v1786
        %v1897 = vadd.f32 %v1506, %v1791
        %v1898 = vadd.f32 %v1507, %v1796
        %v1899 = vadd.f32 %v1508, %v1801
        %v1900 = vadd.f32 %v1509, %v1806
        %v1901 = vadd.f32 %v1510, %v1811
        %v1902 = vadd.f32 %v1511, %v1816
        %v1903 = vadd.f32 %v1512, %v1821
        %v1904 = vadd.f32 %v1513, %v1826
        %v1905 = vadd.f32 %v1514, %v1831
        %v1906 = vadd.f32 %v1515, %v1836
        %v1907 = vadd.f32 %v1516, %v1841
        %v1908 = vadd.f32 %v1517, %v1846
        %v1909 = vadd.f32 %v1518, %v1851
        %v1910 = vadd.f32 %v1519, %v1856
        %v1911 = vadd.f32 %v1520, %v1861
        %v1912 = vadd.f32 %v1521, %v1866
        %v1913 = vadd.f32 %v1522, %v1871
        %v1914 = vadd.f32 %v1523, %v1876
        %v1915 = vadd.f32 %v1524, %v1881
        %v1916 = vld [vmem:[%s1525 + $0x1] sm:$0xff]
        %v1917 = vld [vmem:[%s1525 + $0x9] sm:$0xff]
        %v1918 = vld [vmem:[%s1525 + $0x19] sm:$0xff]
        %v1919 = vld [vmem:[%s1525 + $0x21] sm:$0xff]
        %v1920 = vld [vmem:[%s1525 + $0x31] sm:$0xff]
        %v1921 = vld [vmem:[%s1525 + $0x39] sm:$0xff]
        %v1922 = vld [vmem:[%s1525 + $0x49] sm:$0xff]
        %v1923 = vld [vmem:[%s1525 + $0x51] sm:$0xff]
        %v1924 = vld [vmem:[%s1525 + $0x61] sm:$0xff]
        %v1925 = vld [vmem:[%s1525 + $0x69] sm:$0xff]
        %v1926 = vld [vmem:[%s1525 + $0x79] sm:$0xff]
        %v1927 = vld [vmem:[%s1525 + $0x81] sm:$0xff]
        %v1928 = vld [vmem:[%s1525 + $0x91] sm:$0xff]
        %v1929 = vld [vmem:[%s1525 + $0x99] sm:$0xff]
        %v1930 = vld [vmem:[%s1525 + $0xa9] sm:$0xff]
        %v1931 = vld [vmem:[%s1525 + $0xb1] sm:$0xff]
        %v1932 = vld [vmem:[%s1525 + $0xc1] sm:$0xff]
        %v1933 = vld [vmem:[%s1525 + $0xc9] sm:$0xff]
        %v1934 = vld [vmem:[%s1525 + $0xd9] sm:$0xff]
        %v1935 = vld [vmem:[%s1525 + $0xe1] sm:$0xff]
        %v1936 = vld [vmem:[%s1525 + $0xf1] sm:$0xff]
        %v1937 = vld [vmem:[%s1525 + $0xf9] sm:$0xff]
        %v1938 = vld [vmem:[%s1525 + $0x109] sm:$0xff]
        %v1939 = vld [vmem:[%s1525 + $0x111] sm:$0xff]
        %v1940 = vld [vmem:[%s1525 + $0x121] sm:$0xff]
        %v1941 = vld [vmem:[%s1525 + $0x129] sm:$0xff]
        %v1942 = vld [vmem:[%s1525 + $0x139] sm:$0xff]
        %v1943 = vld [vmem:[%s1525 + $0x141] sm:$0xff]
        %v1944 = vld [vmem:[%s1525 + $0x151] sm:$0xff]
        %v1945 = vld [vmem:[%s1525 + $0x159] sm:$0xff]
        %v1946 = vld [vmem:[%s1525 + $0x169] sm:$0xff]
        %v1947 = vld [vmem:[%s1525 + $0x171] sm:$0xff]
        %s1948 = scalar_lea.vmem %s2, 16
        %v1949 = vld [vmem:[%s1948] sm:$0xf]
        %v1951 = vsel %vm356, %v1916, 0
        %v1954 = vsel %vm356, %v1917, 0
        %v1957 = vsel %vm356, %v1918, 0
        %v1960 = vsel %vm356, %v1919, 0
        %v1963 = vsel %vm356, %v1920, 0
        %v1966 = vsel %vm356, %v1921, 0
        %v1969 = vsel %vm356, %v1922, 0
        %v1972 = vsel %vm356, %v1923, 0
        %v1975 = vsel %vm356, %v1924, 0
        %v1978 = vsel %vm356, %v1925, 0
        %v1981 = vsel %vm356, %v1926, 0
        %v1984 = vsel %vm356, %v1927, 0
        %v1987 = vsel %vm356, %v1928, 0
        %v1990 = vsel %vm356, %v1929, 0
        %v1993 = vsel %vm356, %v1930, 0
        %v1996 = vsel %vm356, %v1931, 0
        %v1999 = vsel %vm356, %v1932, 0
        %v2002 = vsel %vm356, %v1933, 0
        %v2005 = vsel %vm356, %v1934, 0
        %v2008 = vsel %vm356, %v1935, 0
        %v2011 = vsel %vm356, %v1936, 0
        %v2014 = vsel %vm356, %v1937, 0
        %v2017 = vsel %vm356, %v1938, 0
        %v2020 = vsel %vm356, %v1939, 0
        %v2023 = vsel %vm356, %v1940, 0
        %v2026 = vsel %vm356, %v1941, 0
        %v2029 = vsel %vm356, %v1942, 0
        %v2032 = vsel %vm356, %v1943, 0
        %v2035 = vsel %vm356, %v1944, 0
        %v2038 = vsel %vm356, %v1945, 0
        %v2041 = vsel %vm356, %v1946, 0
        %v2044 = vsel %vm356, %v1947, 0
        %v2047 = vsel %vm582, %v1949, 0
        %2049 = vmatprep.subr.mxu0 0.0
        %2050 = vmatpush1.msra.mxu0 %v2047
        %2051 = vmatprep.subr.mxu0 0.0
        %2052 = vmatpush1.msra.mxu0 0.0
        %2053 = vmatprep.subr.mxu0 0.0
        %2054 = vmatpush1.msra.mxu0 0.0
        %2055 = vmatprep.subr.mxu0 0.0
        %2056 = vmatpush1.msra.mxu0 0.0
        %2057 = vmatprep.subr.mxu0 0.0
        %2058 = vmatpush1.msra.mxu0 0.0
        %2059 = vmatprep.subr.mxu0 0.0
        %2060 = vmatpush1.msra.mxu0 0.0
        %2061 = vmatprep.subr.mxu0 0.0
        %2062 = vmatpush1.msra.mxu0 0.0
        %2063 = vmatprep.subr.mxu0 0.0
        %2064 = vmatpush1.msra.mxu0 0.0
        %2065 = vmatprep.subr.mxu0 0.0
        %2066 = vmatpush1.msra.mxu0 0.0
        %2067 = vmatprep.subr.mxu0 0.0
        %2068 = vmatpush1.msra.mxu0 0.0
        %2069 = vmatprep.subr.mxu0 0.0
        %2070 = vmatpush1.msra.mxu0 0.0
        %2071 = vmatprep.subr.mxu0 0.0
        %2072 = vmatpush1.msra.mxu0 0.0
        %2073 = vmatprep.subr.mxu0 0.0
        %2074 = vmatpush1.msra.mxu0 0.0
        %2075 = vmatprep.subr.mxu0 0.0
        %2076 = vmatpush1.msra.mxu0 0.0
        %2077 = vmatprep.subr.mxu0 0.0
        %2078 = vmatpush1.msra.mxu0 0.0
        %2079 = vmatprep.subr.mxu0 0.0
        %2080 = vmatpush1.msra.mxu0 0.0
        %2081 = vmatprep.subr.mxu0 0.0
        %2082 = vmatpush1.msra.mxu0 0.0
        %2083 = vmatprep.subr.mxu0 0.0
        %2084 = vmatpush1.msra.mxu0 0.0
        %2085 = vmatprep.subr.mxu0 0.0
        %2086 = vmatpush1.msra.mxu0 0.0
        %2087 = vmatprep.subr.mxu0 0.0
        %2088 = vmatpush1.msra.mxu0 0.0
        %2089 = vmatprep.subr.mxu0 0.0
        %2090 = vmatpush1.msra.mxu0 0.0
        %2091 = vmatprep.subr.mxu0 0.0
        %2092 = vmatpush1.msra.mxu0 0.0
        %2093 = vmatprep.subr.mxu0 0.0
        %2094 = vmatpush1.msra.mxu0 0.0
        %2095 = vmatprep.subr.mxu0 0.0
        %2096 = vmatpush1.msra.mxu0 0.0
        %2097 = vmatprep.subr.mxu0 0.0
        %2098 = vmatpush1.msra.mxu0 0.0
        %2099 = vmatprep.subr.mxu0 0.0
        %2100 = vmatpush1.msra.mxu0 0.0
        %2101 = vmatprep.subr.mxu0 0.0
        %2102 = vmatpush1.msra.mxu0 0.0
        %2103 = vmatprep.subr.mxu0 0.0
        %2104 = vmatpush1.msra.mxu0 0.0
        %2105 = vmatprep.subr.mxu0 0.0
        %2106 = vmatpush1.msra.mxu0 0.0
        %2107 = vmatprep.subr.mxu0 0.0
        %2108 = vmatpush1.msra.mxu0 0.0
        %2109 = vmatprep.subr.mxu0 0.0
        %2110 = vmatpush1.msra.mxu0 0.0
        %2111 = vmatprep.subr.mxu0 0.0
        %2112 = vmatpush1.msra.mxu0 0.0
        %2113 = vmatprep.mubr.f32.mxu0 0.0
        %2114 = vmatmul.mubr.f32.gmra.mrb[0].mxu0 %v1951
        %v2115 = vpop.f32.mrb[0].mxu0
        %v2116 = vadd.f32 0.0, %v2115
        %v2117 = vpop.f32.mrb[0].mxu0
        %2118 = vmatprep.mubr.f32.mxu0 0.0
        %2119 = vmatmul.mubr.f32.gmra.mrb[0].mxu0 %v1954
        %v2120 = vpop.f32.mrb[0].mxu0
        %v2121 = vadd.f32 0.0, %v2120
        %v2122 = vpop.f32.mrb[0].mxu0
        %2123 = vmatprep.mubr.f32.mxu0 0.0
        %2124 = vmatmul.mubr.f32.gmra.mrb[0].mxu0 %v1957
        %v2125 = vpop.f32.mrb[0].mxu0
        %v2126 = vadd.f32 0.0, %v2125
        %v2127 = vpop.f32.mrb[0].mxu0
        %2128 = vmatprep.mubr.f32.mxu0 0.0
        %2129 = vmatmul.mubr.f32.gmra.mrb[0].mxu0 %v1960
        %v2130 = vpop.f32.mrb[0].mxu0
        %v2131 = vadd.f32 0.0, %v2130
        %v2132 = vpop.f32.mrb[0].mxu0
        %2133 = vmatprep.mubr.f32.mxu0 0.0
        %2134 = vmatmul.mubr.f32.gmra.mrb[0].mxu0 %v1963
        %v2135 = vpop.f32.mrb[0].mxu0
        %v2136 = vadd.f32 0.0, %v2135
        %v2137 = vpop.f32.mrb[0].mxu0
        %2138 = vmatprep.mubr.f32.mxu0 0.0
        %2139 = vmatmul.mubr.f32.gmra.mrb[0].mxu0 %v1966
        %v2140 = vpop.f32.mrb[0].mxu0
        %v2141 = vadd.f32 0.0, %v2140
        %v2142 = vpop.f32.mrb[0].mxu0
        %2143 = vmatprep.mubr.f32.mxu0 0.0
        %2144 = vmatmul.mubr.f32.gmra.mrb[0].mxu0 %v1969
        %v2145 = vpop.f32.mrb[0].mxu0
        %v2146 = vadd.f32 0.0, %v2145
        %v2147 = vpop.f32.mrb[0].mxu0
        %2148 = vmatprep.mubr.f32.mxu0 0.0
        %2149 = vmatmul.mubr.f32.gmra.mrb[0].mxu0 %v1972
        %v2150 = vpop.f32.mrb[0].mxu0
        %v2151 = vadd.f32 0.0, %v2150
        %v2152 = vpop.f32.mrb[0].mxu0
        %2153 = vmatprep.mubr.f32.mxu0 0.0
        %2154 = vmatmul.mubr.f32.gmra.mrb[0].mxu0 %v1975
        %v2155 = vpop.f32.mrb[0].mxu0
        %v2156 = vadd.f32 0.0, %v2155
        %v2157 = vpop.f32.mrb[0].mxu0
        %2158 = vmatprep.mubr.f32.mxu0 0.0
        %2159 = vmatmul.mubr.f32.gmra.mrb[0].mxu0 %v1978
        %v2160 = vpop.f32.mrb[0].mxu0
        %v2161 = vadd.f32 0.0, %v2160
        %v2162 = vpop.f32.mrb[0].mxu0
        %2163 = vmatprep.mubr.f32.mxu0 0.0
        %2164 = vmatmul.mubr.f32.gmra.mrb[0].mxu0 %v1981
        %v2165 = vpop.f32.mrb[0].mxu0
        %v2166 = vadd.f32 0.0, %v2165
        %v2167 = vpop.f32.mrb[0].mxu0
        %2168 = vmatprep.mubr.f32.mxu0 0.0
        %2169 = vmatmul.mubr.f32.gmra.mrb[0].mxu0 %v1984
        %v2170 = vpop.f32.mrb[0].mxu0
        %v2171 = vadd.f32 0.0, %v2170
        %v2172 = vpop.f32.mrb[0].mxu0
        %2173 = vmatprep.mubr.f32.mxu0 0.0
        %2174 = vmatmul.mubr.f32.gmra.mrb[0].mxu0 %v1987
        %v2175 = vpop.f32.mrb[0].mxu0
        %v2176 = vadd.f32 0.0, %v2175
        %v2177 = vpop.f32.mrb[0].mxu0
        %2178 = vmatprep.mubr.f32.mxu0 0.0
        %2179 = vmatmul.mubr.f32.gmra.mrb[0].mxu0 %v1990
        %v2180 = vpop.f32.mrb[0].mxu0
        %v2181 = vadd.f32 0.0, %v2180
        %v2182 = vpop.f32.mrb[0].mxu0
        %2183 = vmatprep.mubr.f32.mxu0 0.0
        %2184 = vmatmul.mubr.f32.gmra.mrb[0].mxu0 %v1993
        %v2185 = vpop.f32.mrb[0].mxu0
        %v2186 = vadd.f32 0.0, %v2185
        %v2187 = vpop.f32.mrb[0].mxu0
        %2188 = vmatprep.mubr.f32.mxu0 0.0
        %2189 = vmatmul.mubr.f32.gmra.mrb[0].mxu0 %v1996
        %v2190 = vpop.f32.mrb[0].mxu0
        %v2191 = vadd.f32 0.0, %v2190
        %v2192 = vpop.f32.mrb[0].mxu0
        %2193 = vmatprep.mubr.f32.mxu0 0.0
        %2194 = vmatmul.mubr.f32.gmra.mrb[0].mxu0 %v1999
        %v2195 = vpop.f32.mrb[0].mxu0
        %v2196 = vadd.f32 0.0, %v2195
        %v2197 = vpop.f32.mrb[0].mxu0
        %2198 = vmatprep.mubr.f32.mxu0 0.0
        %2199 = vmatmul.mubr.f32.gmra.mrb[0].mxu0 %v2002
        %v2200 = vpop.f32.mrb[0].mxu0
        %v2201 = vadd.f32 0.0, %v2200
        %v2202 = vpop.f32.mrb[0].mxu0
        %2203 = vmatprep.mubr.f32.mxu0 0.0
        %2204 = vmatmul.mubr.f32.gmra.mrb[0].mxu0 %v2005
        %v2205 = vpop.f32.mrb[0].mxu0
        %v2206 = vadd.f32 0.0, %v2205
        %v2207 = vpop.f32.mrb[0].mxu0
        %2208 = vmatprep.mubr.f32.mxu0 0.0
        %2209 = vmatmul.mubr.f32.gmra.mrb[0].mxu0 %v2008
        %v2210 = vpop.f32.mrb[0].mxu0
        %v2211 = vadd.f32 0.0, %v2210
        %v2212 = vpop.f32.mrb[0].mxu0
        %2213 = vmatprep.mubr.f32.mxu0 0.0
        %2214 = vmatmul.mubr.f32.gmra.mrb[0].mxu0 %v2011
        %v2215 = vpop.f32.mrb[0].mxu0
        %v2216 = vadd.f32 0.0, %v2215
        %v2217 = vpop.f32.mrb[0].mxu0
        %2218 = vmatprep.mubr.f32.mxu0 0.0
        %2219 = vmatmul.mubr.f32.gmra.mrb[0].mxu0 %v2014
        %v2220 = vpop.f32.mrb[0].mxu0
        %v2221 = vadd.f32 0.0, %v2220
        %v2222 = vpop.f32.mrb[0].mxu0
        %2223 = vmatprep.mubr.f32.mxu0 0.0
        %2224 = vmatmul.mubr.f32.gmra.mrb[0].mxu0 %v2017
        %v2225 = vpop.f32.mrb[0].mxu0
        %v2226 = vadd.f32 0.0, %v2225
        %v2227 = vpop.f32.mrb[0].mxu0
        %2228 = vmatprep.mubr.f32.mxu0 0.0
        %2229 = vmatmul.mubr.f32.gmra.mrb[0].mxu0 %v2020
        %v2230 = vpop.f32.mrb[0].mxu0
        %v2231 = vadd.f32 0.0, %v2230
        %v2232 = vpop.f32.mrb[0].mxu0
        %2233 = vmatprep.mubr.f32.mxu0 0.0
        %2234 = vmatmul.mubr.f32.gmra.mrb[0].mxu0 %v2023
        %v2235 = vpop.f32.mrb[0].mxu0
        %v2236 = vadd.f32 0.0, %v2235
        %v2237 = vpop.f32.mrb[0].mxu0
        %2238 = vmatprep.mubr.f32.mxu0 0.0
        %2239 = vmatmul.mubr.f32.gmra.mrb[0].mxu0 %v2026
        %v2240 = vpop.f32.mrb[0].mxu0
        %v2241 = vadd.f32 0.0, %v2240
        %v2242 = vpop.f32.mrb[0].mxu0
        %2243 = vmatprep.mubr.f32.mxu0 0.0
        %2244 = vmatmul.mubr.f32.gmra.mrb[0].mxu0 %v2029
        %v2245 = vpop.f32.mrb[0].mxu0
        %v2246 = vadd.f32 0.0, %v2245
        %v2247 = vpop.f32.mrb[0].mxu0
        %2248 = vmatprep.mubr.f32.mxu0 0.0
        %2249 = vmatmul.mubr.f32.gmra.mrb[0].mxu0 %v2032
        %v2250 = vpop.f32.mrb[0].mxu0
        %v2251 = vadd.f32 0.0, %v2250
        %v2252 = vpop.f32.mrb[0].mxu0
        %2253 = vmatprep.mubr.f32.mxu0 0.0
        %2254 = vmatmul.mubr.f32.gmra.mrb[0].mxu0 %v2035
        %v2255 = vpop.f32.mrb[0].mxu0
        %v2256 = vadd.f32 0.0, %v2255
        %v2257 = vpop.f32.mrb[0].mxu0
        %2258 = vmatprep.mubr.f32.mxu0 0.0
        %2259 = vmatmul.mubr.f32.gmra.mrb[0].mxu0 %v2038
        %v2260 = vpop.f32.mrb[0].mxu0
        %v2261 = vadd.f32 0.0, %v2260
        %v2262 = vpop.f32.mrb[0].mxu0
        %2263 = vmatprep.mubr.f32.mxu0 0.0
        %2264 = vmatmul.mubr.f32.gmra.mrb[0].mxu0 %v2041
        %v2265 = vpop.f32.mrb[0].mxu0
        %v2266 = vadd.f32 0.0, %v2265
        %v2267 = vpop.f32.mrb[0].mxu0
        %2268 = vmatprep.mubr.f32.mxu0 0.0
        %2269 = vmatmul.mubr.f32.gmra.mrb[0].mxu0 %v2044
        %v2270 = vpop.f32.mrb[0].mxu0
        %v2271 = vadd.f32 0.0, %v2270
        %v2272 = vpop.f32.mrb[0].mxu0
        %2273 = vdwg.mxu0
        %v2274 = vadd.f32 %v1884, %v2116
        %v2275 = vadd.f32 %v1885, %v2121
        %v2276 = vadd.f32 %v1886, %v2126
        %v2277 = vadd.f32 %v1887, %v2131
        %v2278 = vadd.f32 %v1888, %v2136
        %v2279 = vadd.f32 %v1889, %v2141
        %v2280 = vadd.f32 %v1890, %v2146
        %v2281 = vadd.f32 %v1891, %v2151
        %v2282 = vadd.f32 %v1892, %v2156
        %v2283 = vadd.f32 %v1893, %v2161
        %v2284 = vadd.f32 %v1894, %v2166
        %v2285 = vadd.f32 %v1895, %v2171
        %v2286 = vadd.f32 %v1896, %v2176
        %v2287 = vadd.f32 %v1897, %v2181
        %v2288 = vadd.f32 %v1898, %v2186
        %v2289 = vadd.f32 %v1899, %v2191
        %v2290 = vadd.f32 %v1900, %v2196
        %v2291 = vadd.f32 %v1901, %v2201
        %v2292 = vadd.f32 %v1902, %v2206
        %v2293 = vadd.f32 %v1903, %v2211
        %v2294 = vadd.f32 %v1904, %v2216
        %v2295 = vadd.f32 %v1905, %v2221
        %v2296 = vadd.f32 %v1906, %v2226
        %v2297 = vadd.f32 %v1907, %v2231
        %v2298 = vadd.f32 %v1908, %v2236
        %v2299 = vadd.f32 %v1909, %v2241
        %v2300 = vadd.f32 %v1910, %v2246
        %v2301 = vadd.f32 %v1911, %v2251
        %v2302 = vadd.f32 %v1912, %v2256
        %v2303 = vadd.f32 %v1913, %v2261
        %v2304 = vadd.f32 %v1914, %v2266
        %v2305 = vadd.f32 %v1915, %v2271
        %v2306 = vld [vmem:[%s1525 + $0x2] sm:$0xff]
        %v2307 = vld [vmem:[%s1525 + $0xa] sm:$0xff]
        %v2308 = vld [vmem:[%s1525 + $0x1a] sm:$0xff]
        %v2309 = vld [vmem:[%s1525 + $0x22] sm:$0xff]
        %v2310 = vld [vmem:[%s1525 + $0x32] sm:$0xff]
        %v2311 = vld [vmem:[%s1525 + $0x3a] sm:$0xff]
        %v2312 = vld [vmem:[%s1525 + $0x4a] sm:$0xff]
        %v2313 = vld [vmem:[%s1525 + $0x52] sm:$0xff]
        %v2314 = vld [vmem:[%s1525 + $0x62] sm:$0xff]
        %v2315 = vld [vmem:[%s1525 + $0x6a] sm:$0xff]
        %v2316 = vld [vmem:[%s1525 + $0x7a] sm:$0xff]
        %v2317 = vld [vmem:[%s1525 + $0x82] sm:$0xff]
        %v2318 = vld [vmem:[%s1525 + $0x92] sm:$0xff]
        %v2319 = vld [vmem:[%s1525 + $0x9a] sm:$0xff]
        %v2320 = vld [vmem:[%s1525 + $0xaa] sm:$0xff]
        %v2321 = vld [vmem:[%s1525 + $0xb2] sm:$0xff]
        %v2322 = vld [vmem:[%s1525 + $0xc2] sm:$0xff]
        %v2323 = vld [vmem:[%s1525 + $0xca] sm:$0xff]
        %v2324 = vld [vmem:[%s1525 + $0xda] sm:$0xff]
        %v2325 = vld [vmem:[%s1525 + $0xe2] sm:$0xff]
        %v2326 = vld [vmem:[%s1525 + $0xf2] sm:$0xff]
        %v2327 = vld [vmem:[%s1525 + $0xfa] sm:$0xff]
        %v2328 = vld [vmem:[%s1525 + $0x10a] sm:$0xff]
        %v2329 = vld [vmem:[%s1525 + $0x112] sm:$0xff]
        %v2330 = vld [vmem:[%s1525 + $0x122] sm:$0xff]
        %v2331 = vld [vmem:[%s1525 + $0x12a] sm:$0xff]
        %v2332 = vld [vmem:[%s1525 + $0x13a] sm:$0xff]
        %v2333 = vld [vmem:[%s1525 + $0x142] sm:$0xff]
        %v2334 = vld [vmem:[%s1525 + $0x152] sm:$0xff]
        %v2335 = vld [vmem:[%s1525 + $0x15a] sm:$0xff]
        %v2336 = vld [vmem:[%s1525 + $0x16a] sm:$0xff]
        %v2337 = vld [vmem:[%s1525 + $0x172] sm:$0xff]
        %s2338 = scalar_lea.vmem %s2, 20
        %v2339 = vld [vmem:[%s2338] sm:$0xf]
        %v2341 = vsel %vm356, %v2306, 0
        %v2344 = vsel %vm356, %v2307, 0
        %v2347 = vsel %vm356, %v2308, 0
        %v2350 = vsel %vm356, %v2309, 0
        %v2353 = vsel %vm356, %v2310, 0
        %v2356 = vsel %vm356, %v2311, 0
        %v2359 = vsel %vm356, %v2312, 0
        %v2362 = vsel %vm356, %v2313, 0
        %v2365 = vsel %vm356, %v2314, 0
        %v2368 = vsel %vm356, %v2315, 0
        %v2371 = vsel %vm356, %v2316, 0
        %v2374 = vsel %vm356, %v2317, 0
        %v2377 = vsel %vm356, %v2318, 0
        %v2380 = vsel %vm356, %v2319, 0
        %v2383 = vsel %vm356, %v2320, 0
        %v2386 = vsel %vm356, %v2321, 0
        %v2389 = vsel %vm356, %v2322, 0
        %v2392 = vsel %vm356, %v2323, 0
        %v2395 = vsel %vm356, %v2324, 0
        %v2398 = vsel %vm356, %v2325, 0
        %v2401 = vsel %vm356, %v2326, 0
        %v2404 = vsel %vm356, %v2327, 0
        %v2407 = vsel %vm356, %v2328, 0
        %v2410 = vsel %vm356, %v2329, 0
        %v2413 = vsel %vm356, %v2330, 0
        %v2416 = vsel %vm356, %v2331, 0
        %v2419 = vsel %vm356, %v2332, 0
        %v2422 = vsel %vm356, %v2333, 0
        %v2425 = vsel %vm356, %v2334, 0
        %v2428 = vsel %vm356, %v2335, 0
        %v2431 = vsel %vm356, %v2336, 0
        %v2434 = vsel %vm356, %v2337, 0
        %v2437 = vsel %vm582, %v2339, 0
        %2439 = vmatprep.subr.mxu0 0.0
        %2440 = vmatpush1.msra.mxu0 %v2437
        %2441 = vmatprep.subr.mxu0 0.0
        %2442 = vmatpush1.msra.mxu0 0.0
        %2443 = vmatprep.subr.mxu0 0.0
        %2444 = vmatpush1.msra.mxu0 0.0
        %2445 = vmatprep.subr.mxu0 0.0
        %2446 = vmatpush1.msra.mxu0 0.0
        %2447 = vmatprep.subr.mxu0 0.0
        %2448 = vmatpush1.msra.mxu0 0.0
        %2449 = vmatprep.subr.mxu0 0.0
        %2450 = vmatpush1.msra.mxu0 0.0
        %2451 = vmatprep.subr.mxu0 0.0
        %2452 = vmatpush1.msra.mxu0 0.0
        %2453 = vmatprep.subr.mxu0 0.0
        %2454 = vmatpush1.msra.mxu0 0.0
        %2455 = vmatprep.subr.mxu0 0.0
        %2456 = vmatpush1.msra.mxu0 0.0
        %2457 = vmatprep.subr.mxu0 0.0
        %2458 = vmatpush1.msra.mxu0 0.0
        %2459 = vmatprep.subr.mxu0 0.0
        %2460 = vmatpush1.msra.mxu0 0.0
        %2461 = vmatprep.subr.mxu0 0.0
        %2462 = vmatpush1.msra.mxu0 0.0
        %2463 = vmatprep.subr.mxu0 0.0
        %2464 = vmatpush1.msra.mxu0 0.0
        %2465 = vmatprep.subr.mxu0 0.0
        %2466 = vmatpush1.msra.mxu0 0.0
        %2467 = vmatprep.subr.mxu0 0.0
        %2468 = vmatpush1.msra.mxu0 0.0
        %2469 = vmatprep.subr.mxu0 0.0
        %2470 = vmatpush1.msra.mxu0 0.0
        %2471 = vmatprep.subr.mxu0 0.0
        %2472 = vmatpush1.msra.mxu0 0.0
        %2473 = vmatprep.subr.mxu0 0.0
        %2474 = vmatpush1.msra.mxu0 0.0
        %2475 = vmatprep.subr.mxu0 0.0
        %2476 = vmatpush1.msra.mxu0 0.0
        %2477 = vmatprep.subr.mxu0 0.0
        %2478 = vmatpush1.msra.mxu0 0.0
        %2479 = vmatprep.subr.mxu0 0.0
        %2480 = vmatpush1.msra.mxu0 0.0
        %2481 = vmatprep.subr.mxu0 0.0
        %2482 = vmatpush1.msra.mxu0 0.0
        %2483 = vmatprep.subr.mxu0 0.0
        %2484 = vmatpush1.msra.mxu0 0.0
        %2485 = vmatprep.subr.mxu0 0.0
        %2486 = vmatpush1.msra.mxu0 0.0
        %2487 = vmatprep.subr.mxu0 0.0
        %2488 = vmatpush1.msra.mxu0 0.0
        %2489 = vmatprep.subr.mxu0 0.0
        %2490 = vmatpush1.msra.mxu0 0.0
        %2491 = vmatprep.subr.mxu0 0.0
        %2492 = vmatpush1.msra.mxu0 0.0
        %2493 = vmatprep.subr.mxu0 0.0
        %2494 = vmatpush1.msra.mxu0 0.0
        %2495 = vmatprep.subr.mxu0 0.0
        %2496 = vmatpush1.msra.mxu0 0.0
        %2497 = vmatprep.subr.mxu0 0.0
        %2498 = vmatpush1.msra.mxu0 0.0
        %2499 = vmatprep.subr.mxu0 0.0
        %2500 = vmatpush1.msra.mxu0 0.0
        %2501 = vmatprep.subr.mxu0 0.0
        %2502 = vmatpush1.msra.mxu0 0.0
        %2503 = vmatprep.mubr.f32.mxu0 0.0
        %2504 = vmatmul.mubr.f32.gmra.mrb[0].mxu0 %v2341
        %v2505 = vpop.f32.mrb[0].mxu0
        %v2506 = vadd.f32 0.0, %v2505
        %v2507 = vpop.f32.mrb[0].mxu0
        %2508 = vmatprep.mubr.f32.mxu0 0.0
        %2509 = vmatmul.mubr.f32.gmra.mrb[0].mxu0 %v2344
        %v2510 = vpop.f32.mrb[0].mxu0
        %v2511 = vadd.f32 0.0, %v2510
        %v2512 = vpop.f32.mrb[0].mxu0
        %2513 = vmatprep.mubr.f32.mxu0 0.0
        %2514 = vmatmul.mubr.f32.gmra.mrb[0].mxu0 %v2347
        %v2515 = vpop.f32.mrb[0].mxu0
        %v2516 = vadd.f32 0.0, %v2515
        %v2517 = vpop.f32.mrb[0].mxu0
        %2518 = vmatprep.mubr.f32.mxu0 0.0
        %2519 = vmatmul.mubr.f32.gmra.mrb[0].mxu0 %v2350
        %v2520 = vpop.f32.mrb[0].mxu0
        %v2521 = vadd.f32 0.0, %v2520
        %v2522 = vpop.f32.mrb[0].mxu0
        %2523 = vmatprep.mubr.f32.mxu0 0.0
        %2524 = vmatmul.mubr.f32.gmra.mrb[0].mxu0 %v2353
        %v2525 = vpop.f32.mrb[0].mxu0
        %v2526 = vadd.f32 0.0, %v2525
        %v2527 = vpop.f32.mrb[0].mxu0
        %2528 = vmatprep.mubr.f32.mxu0 0.0
        %2529 = vmatmul.mubr.f32.gmra.mrb[0].mxu0 %v2356
        %v2530 = vpop.f32.mrb[0].mxu0
        %v2531 = vadd.f32 0.0, %v2530
        %v2532 = vpop.f32.mrb[0].mxu0
        %2533 = vmatprep.mubr.f32.mxu0 0.0
        %2534 = vmatmul.mubr.f32.gmra.mrb[0].mxu0 %v2359
        %v2535 = vpop.f32.mrb[0].mxu0
        %v2536 = vadd.f32 0.0, %v2535
        %v2537 = vpop.f32.mrb[0].mxu0
        %2538 = vmatprep.mubr.f32.mxu0 0.0
        %2539 = vmatmul.mubr.f32.gmra.mrb[0].mxu0 %v2362
        %v2540 = vpop.f32.mrb[0].mxu0
        %v2541 = vadd.f32 0.0, %v2540
        %v2542 = vpop.f32.mrb[0].mxu0
        %2543 = vmatprep.mubr.f32.mxu0 0.0
        %2544 = vmatmul.mubr.f32.gmra.mrb[0].mxu0 %v2365
        %v2545 = vpop.f32.mrb[0].mxu0
        %v2546 = vadd.f32 0.0, %v2545
        %v2547 = vpop.f32.mrb[0].mxu0
        %2548 = vmatprep.mubr.f32.mxu0 0.0
        %2549 = vmatmul.mubr.f32.gmra.mrb[0].mxu0 %v2368
        %v2550 = vpop.f32.mrb[0].mxu0
        %v2551 = vadd.f32 0.0, %v2550
        %v2552 = vpop.f32.mrb[0].mxu0
        %2553 = vmatprep.mubr.f32.mxu0 0.0
        %2554 = vmatmul.mubr.f32.gmra.mrb[0].mxu0 %v2371
        %v2555 = vpop.f32.mrb[0].mxu0
        %v2556 = vadd.f32 0.0, %v2555
        %v2557 = vpop.f32.mrb[0].mxu0
        %2558 = vmatprep.mubr.f32.mxu0 0.0
        %2559 = vmatmul.mubr.f32.gmra.mrb[0].mxu0 %v2374
        %v2560 = vpop.f32.mrb[0].mxu0
        %v2561 = vadd.f32 0.0, %v2560
        %v2562 = vpop.f32.mrb[0].mxu0
        %2563 = vmatprep.mubr.f32.mxu0 0.0
        %2564 = vmatmul.mubr.f32.gmra.mrb[0].mxu0 %v2377
        %v2565 = vpop.f32.mrb[0].mxu0
        %v2566 = vadd.f32 0.0, %v2565
        %v2567 = vpop.f32.mrb[0].mxu0
        %2568 = vmatprep.mubr.f32.mxu0 0.0
        %2569 = vmatmul.mubr.f32.gmra.mrb[0].mxu0 %v2380
        %v2570 = vpop.f32.mrb[0].mxu0
        %v2571 = vadd.f32 0.0, %v2570
        %v2572 = vpop.f32.mrb[0].mxu0
        %2573 = vmatprep.mubr.f32.mxu0 0.0
        %2574 = vmatmul.mubr.f32.gmra.mrb[0].mxu0 %v2383
        %v2575 = vpop.f32.mrb[0].mxu0
        %v2576 = vadd.f32 0.0, %v2575
        %v2577 = vpop.f32.mrb[0].mxu0
        %2578 = vmatprep.mubr.f32.mxu0 0.0
        %2579 = vmatmul.mubr.f32.gmra.mrb[0].mxu0 %v2386
        %v2580 = vpop.f32.mrb[0].mxu0
        %v2581 = vadd.f32 0.0, %v2580
        %v2582 = vpop.f32.mrb[0].mxu0
        %2583 = vmatprep.mubr.f32.mxu0 0.0
        %2584 = vmatmul.mubr.f32.gmra.mrb[0].mxu0 %v2389
        %v2585 = vpop.f32.mrb[0].mxu0
        %v2586 = vadd.f32 0.0, %v2585
        %v2587 = vpop.f32.mrb[0].mxu0
        %2588 = vmatprep.mubr.f32.mxu0 0.0
        %2589 = vmatmul.mubr.f32.gmra.mrb[0].mxu0 %v2392
        %v2590 = vpop.f32.mrb[0].mxu0
        %v2591 = vadd.f32 0.0, %v2590
        %v2592 = vpop.f32.mrb[0].mxu0
        %2593 = vmatprep.mubr.f32.mxu0 0.0
        %2594 = vmatmul.mubr.f32.gmra.mrb[0].mxu0 %v2395
        %v2595 = vpop.f32.mrb[0].mxu0
        %v2596 = vadd.f32 0.0, %v2595
        %v2597 = vpop.f32.mrb[0].mxu0
        %2598 = vmatprep.mubr.f32.mxu0 0.0
        %2599 = vmatmul.mubr.f32.gmra.mrb[0].mxu0 %v2398
        %v2600 = vpop.f32.mrb[0].mxu0
        %v2601 = vadd.f32 0.0, %v2600
        %v2602 = vpop.f32.mrb[0].mxu0
        %2603 = vmatprep.mubr.f32.mxu0 0.0
        %2604 = vmatmul.mubr.f32.gmra.mrb[0].mxu0 %v2401
        %v2605 = vpop.f32.mrb[0].mxu0
        %v2606 = vadd.f32 0.0, %v2605
        %v2607 = vpop.f32.mrb[0].mxu0
        %2608 = vmatprep.mubr.f32.mxu0 0.0
        %2609 = vmatmul.mubr.f32.gmra.mrb[0].mxu0 %v2404
        %v2610 = vpop.f32.mrb[0].mxu0
        %v2611 = vadd.f32 0.0, %v2610
        %v2612 = vpop.f32.mrb[0].mxu0
        %2613 = vmatprep.mubr.f32.mxu0 0.0
        %2614 = vmatmul.mubr.f32.gmra.mrb[0].mxu0 %v2407
        %v2615 = vpop.f32.mrb[0].mxu0
        %v2616 = vadd.f32 0.0, %v2615
        %v2617 = vpop.f32.mrb[0].mxu0
        %2618 = vmatprep.mubr.f32.mxu0 0.0
        %2619 = vmatmul.mubr.f32.gmra.mrb[0].mxu0 %v2410
        %v2620 = vpop.f32.mrb[0].mxu0
        %v2621 = vadd.f32 0.0, %v2620
        %v2622 = vpop.f32.mrb[0].mxu0
        %2623 = vmatprep.mubr.f32.mxu0 0.0
        %2624 = vmatmul.mubr.f32.gmra.mrb[0].mxu0 %v2413
        %v2625 = vpop.f32.mrb[0].mxu0
        %v2626 = vadd.f32 0.0, %v2625
        %v2627 = vpop.f32.mrb[0].mxu0
        %2628 = vmatprep.mubr.f32.mxu0 0.0
        %2629 = vmatmul.mubr.f32.gmra.mrb[0].mxu0 %v2416
        %v2630 = vpop.f32.mrb[0].mxu0
        %v2631 = vadd.f32 0.0, %v2630
        %v2632 = vpop.f32.mrb[0].mxu0
        %2633 = vmatprep.mubr.f32.mxu0 0.0
        %2634 = vmatmul.mubr.f32.gmra.mrb[0].mxu0 %v2419
        %v2635 = vpop.f32.mrb[0].mxu0
        %v2636 = vadd.f32 0.0, %v2635
        %v2637 = vpop.f32.mrb[0].mxu0
        %2638 = vmatprep.mubr.f32.mxu0 0.0
        %2639 = vmatmul.mubr.f32.gmra.mrb[0].mxu0 %v2422
        %v2640 = vpop.f32.mrb[0].mxu0
        %v2641 = vadd.f32 0.0, %v2640
        %v2642 = vpop.f32.mrb[0].mxu0
        %2643 = vmatprep.mubr.f32.mxu0 0.0
        %2644 = vmatmul.mubr.f32.gmra.mrb[0].mxu0 %v2425
        %v2645 = vpop.f32.mrb[0].mxu0
        %v2646 = vadd.f32 0.0, %v2645
        %v2647 = vpop.f32.mrb[0].mxu0
        %2648 = vmatprep.mubr.f32.mxu0 0.0
        %2649 = vmatmul.mubr.f32.gmra.mrb[0].mxu0 %v2428
        %v2650 = vpop.f32.mrb[0].mxu0
        %v2651 = vadd.f32 0.0, %v2650
        %v2652 = vpop.f32.mrb[0].mxu0
        %2653 = vmatprep.mubr.f32.mxu0 0.0
        %2654 = vmatmul.mubr.f32.gmra.mrb[0].mxu0 %v2431
        %v2655 = vpop.f32.mrb[0].mxu0
        %v2656 = vadd.f32 0.0, %v2655
        %v2657 = vpop.f32.mrb[0].mxu0
        %2658 = vmatprep.mubr.f32.mxu0 0.0
        %2659 = vmatmul.mubr.f32.gmra.mrb[0].mxu0 %v2434
        %v2660 = vpop.f32.mrb[0].mxu0
        %v2661 = vadd.f32 0.0, %v2660
        %v2662 = vpop.f32.mrb[0].mxu0
        %2663 = vdwg.mxu0
        %v2664 = vadd.f32 %v2274, %v2506
        %v2665 = vadd.f32 %v2275, %v2511
        %v2666 = vadd.f32 %v2276, %v2516
        %v2667 = vadd.f32 %v2277, %v2521
        %v2668 = vadd.f32 %v2278, %v2526
        %v2669 = vadd.f32 %v2279, %v2531
        %v2670 = vadd.f32 %v2280, %v2536
        %v2671 = vadd.f32 %v2281, %v2541
        %v2672 = vadd.f32 %v2282, %v2546
        %v2673 = vadd.f32 %v2283, %v2551
        %v2674 = vadd.f32 %v2284, %v2556
        %v2675 = vadd.f32 %v2285, %v2561
        %v2676 = vadd.f32 %v2286, %v2566
        %v2677 = vadd.f32 %v2287, %v2571
        %v2678 = vadd.f32 %v2288, %v2576
        %v2679 = vadd.f32 %v2289, %v2581
        %v2680 = vadd.f32 %v2290, %v2586
        %v2681 = vadd.f32 %v2291, %v2591
        %v2682 = vadd.f32 %v2292, %v2596
        %v2683 = vadd.f32 %v2293, %v2601
        %v2684 = vadd.f32 %v2294, %v2606
        %v2685 = vadd.f32 %v2295, %v2611
        %v2686 = vadd.f32 %v2296, %v2616
        %v2687 = vadd.f32 %v2297, %v2621
        %v2688 = vadd.f32 %v2298, %v2626
        %v2689 = vadd.f32 %v2299, %v2631
        %v2690 = vadd.f32 %v2300, %v2636
        %v2691 = vadd.f32 %v2301, %v2641
        %v2692 = vadd.f32 %v2302, %v2646
        %v2693 = vadd.f32 %v2303, %v2651
        %v2694 = vadd.f32 %v2304, %v2656
        %v2695 = vadd.f32 %v2305, %v2661
        %s2696 = scalar_lea.vmem [#allocation2], 48
        %v2697 = vld [vmem:[%s2696] sm:$0xff]
        %v2698 = vld [vmem:[%s2696 + $0x8] sm:$0xff]
        %v2699 = vld [vmem:[%s2696 + $0x18] sm:$0xff]
        %v2700 = vld [vmem:[%s2696 + $0x20] sm:$0xff]
        %v2701 = vld [vmem:[%s2696 + $0x30] sm:$0xff]
        %v2702 = vld [vmem:[%s2696 + $0x38] sm:$0xff]
        %v2703 = vld [vmem:[%s2696 + $0x48] sm:$0xff]
        %v2704 = vld [vmem:[%s2696 + $0x50] sm:$0xff]
        %v2705 = vld [vmem:[%s2696 + $0x60] sm:$0xff]
        %v2706 = vld [vmem:[%s2696 + $0x68] sm:$0xff]
        %v2707 = vld [vmem:[%s2696 + $0x78] sm:$0xff]
        %v2708 = vld [vmem:[%s2696 + $0x80] sm:$0xff]
        %v2709 = vld [vmem:[%s2696 + $0x90] sm:$0xff]
        %v2710 = vld [vmem:[%s2696 + $0x98] sm:$0xff]
        %v2711 = vld [vmem:[%s2696 + $0xa8] sm:$0xff]
        %v2712 = vld [vmem:[%s2696 + $0xb0] sm:$0xff]
        %v2713 = vld [vmem:[%s2696 + $0xc0] sm:$0xff]
        %v2714 = vld [vmem:[%s2696 + $0xc8] sm:$0xff]
        %v2715 = vld [vmem:[%s2696 + $0xd8] sm:$0xff]
        %v2716 = vld [vmem:[%s2696 + $0xe0] sm:$0xff]
        %v2717 = vld [vmem:[%s2696 + $0xf0] sm:$0xff]
        %v2718 = vld [vmem:[%s2696 + $0xf8] sm:$0xff]
        %v2719 = vld [vmem:[%s2696 + $0x108] sm:$0xff]
        %v2720 = vld [vmem:[%s2696 + $0x110] sm:$0xff]
        %v2721 = vld [vmem:[%s2696 + $0x120] sm:$0xff]
        %v2722 = vld [vmem:[%s2696 + $0x128] sm:$0xff]
        %v2723 = vld [vmem:[%s2696 + $0x138] sm:$0xff]
        %v2724 = vld [vmem:[%s2696 + $0x140] sm:$0xff]
        %v2725 = vld [vmem:[%s2696 + $0x150] sm:$0xff]
        %v2726 = vld [vmem:[%s2696 + $0x158] sm:$0xff]
        %v2727 = vld [vmem:[%s2696 + $0x168] sm:$0xff]
        %v2728 = vld [vmem:[%s2696 + $0x170] sm:$0xff]
        %s2729 = scalar_lea.vmem %s2, 24
        %v2730 = vld [vmem:[%s2729] sm:$0xf]
        %v2732 = vsel %vm356, %v2697, 0
        %v2735 = vsel %vm356, %v2698, 0
        %v2738 = vsel %vm356, %v2699, 0
        %v2741 = vsel %vm356, %v2700, 0
        %v2744 = vsel %vm356, %v2701, 0
        %v2747 = vsel %vm356, %v2702, 0
        %v2750 = vsel %vm356, %v2703, 0
        %v2753 = vsel %vm356, %v2704, 0
        %v2756 = vsel %vm356, %v2705, 0
        %v2759 = vsel %vm356, %v2706, 0
        %v2762 = vsel %vm356, %v2707, 0
        %v2765 = vsel %vm356, %v2708, 0
        %v2768 = vsel %vm356, %v2709, 0
        %v2771 = vsel %vm356, %v2710, 0
        %v2774 = vsel %vm356, %v2711, 0
        %v2777 = vsel %vm356, %v2712, 0
        %v2780 = vsel %vm356, %v2713, 0
        %v2783 = vsel %vm356, %v2714, 0
        %v2786 = vsel %vm356, %v2715, 0
        %v2789 = vsel %vm356, %v2716, 0
        %v2792 = vsel %vm356, %v2717, 0
        %v2795 = vsel %vm356, %v2718, 0
        %v2798 = vsel %vm356, %v2719, 0
        %v2801 = vsel %vm356, %v2720, 0
        %v2804 = vsel %vm356, %v2721, 0
        %v2807 = vsel %vm356, %v2722, 0
        %v2810 = vsel %vm356, %v2723, 0
        %v2813 = vsel %vm356, %v2724, 0
        %v2816 = vsel %vm356, %v2725, 0
        %v2819 = vsel %vm356, %v2726, 0
        %v2822 = vsel %vm356, %v2727, 0
        %v2825 = vsel %vm356, %v2728, 0
        %v2828 = vsel %vm582, %v2730, 0
        %2830 = vmatprep.subr.mxu0 0.0
        %2831 = vmatpush1.msra.mxu0 %v2828
        %2832 = vmatprep.subr.mxu0 0.0
        %2833 = vmatpush1.msra.mxu0 0.0
        %2834 = vmatprep.subr.mxu0 0.0
        %2835 = vmatpush1.msra.mxu0 0.0
        %2836 = vmatprep.subr.mxu0 0.0
        %2837 = vmatpush1.msra.mxu0 0.0
        %2838 = vmatprep.subr.mxu0 0.0
        %2839 = vmatpush1.msra.mxu0 0.0
        %2840 = vmatprep.subr.mxu0 0.0
        %2841 = vmatpush1.msra.mxu0 0.0
        %2842 = vmatprep.subr.mxu0 0.0
        %2843 = vmatpush1.msra.mxu0 0.0
        %2844 = vmatprep.subr.mxu0 0.0
        %2845 = vmatpush1.msra.mxu0 0.0
        %2846 = vmatprep.subr.mxu0 0.0
        %2847 = vmatpush1.msra.mxu0 0.0
        %2848 = vmatprep.subr.mxu0 0.0
        %2849 = vmatpush1.msra.mxu0 0.0
        %2850 = vmatprep.subr.mxu0 0.0
        %2851 = vmatpush1.msra.mxu0 0.0
        %2852 = vmatprep.subr.mxu0 0.0
        %2853 = vmatpush1.msra.mxu0 0.0
        %2854 = vmatprep.subr.mxu0 0.0
        %2855 = vmatpush1.msra.mxu0 0.0
        %2856 = vmatprep.subr.mxu0 0.0
        %2857 = vmatpush1.msra.mxu0 0.0
        %2858 = vmatprep.subr.mxu0 0.0
        %2859 = vmatpush1.msra.mxu0 0.0
        %2860 = vmatprep.subr.mxu0 0.0
        %2861 = vmatpush1.msra.mxu0 0.0
        %2862 = vmatprep.subr.mxu0 0.0
        %2863 = vmatpush1.msra.mxu0 0.0
        %2864 = vmatprep.subr.mxu0 0.0
        %2865 = vmatpush1.msra.mxu0 0.0
        %2866 = vmatprep.subr.mxu0 0.0
        %2867 = vmatpush1.msra.mxu0 0.0
        %2868 = vmatprep.subr.mxu0 0.0
        %2869 = vmatpush1.msra.mxu0 0.0
        %2870 = vmatprep.subr.mxu0 0.0
        %2871 = vmatpush1.msra.mxu0 0.0
        %2872 = vmatprep.subr.mxu0 0.0
        %2873 = vmatpush1.msra.mxu0 0.0
        %2874 = vmatprep.subr.mxu0 0.0
        %2875 = vmatpush1.msra.mxu0 0.0
        %2876 = vmatprep.subr.mxu0 0.0
        %2877 = vmatpush1.msra.mxu0 0.0
        %2878 = vmatprep.subr.mxu0 0.0
        %2879 = vmatpush1.msra.mxu0 0.0
        %2880 = vmatprep.subr.mxu0 0.0
        %2881 = vmatpush1.msra.mxu0 0.0
        %2882 = vmatprep.subr.mxu0 0.0
        %2883 = vmatpush1.msra.mxu0 0.0
        %2884 = vmatprep.subr.mxu0 0.0
        %2885 = vmatpush1.msra.mxu0 0.0
        %2886 = vmatprep.subr.mxu0 0.0
        %2887 = vmatpush1.msra.mxu0 0.0
        %2888 = vmatprep.subr.mxu0 0.0
        %2889 = vmatpush1.msra.mxu0 0.0
        %2890 = vmatprep.subr.mxu0 0.0
        %2891 = vmatpush1.msra.mxu0 0.0
        %2892 = vmatprep.subr.mxu0 0.0
        %2893 = vmatpush1.msra.mxu0 0.0
        %2894 = vmatprep.mubr.f32.mxu0 0.0
        %2895 = vmatmul.mubr.f32.gmra.mrb[0].mxu0 %v2732
        %v2896 = vpop.f32.mrb[0].mxu0
        %v2897 = vadd.f32 0.0, %v2896
        %v2898 = vpop.f32.mrb[0].mxu0
        %2899 = vmatprep.mubr.f32.mxu0 0.0
        %2900 = vmatmul.mubr.f32.gmra.mrb[0].mxu0 %v2735
        %v2901 = vpop.f32.mrb[0].mxu0
        %v2902 = vadd.f32 0.0, %v2901
        %v2903 = vpop.f32.mrb[0].mxu0
        %2904 = vmatprep.mubr.f32.mxu0 0.0
        %2905 = vmatmul.mubr.f32.gmra.mrb[0].mxu0 %v2738
        %v2906 = vpop.f32.mrb[0].mxu0
        %v2907 = vadd.f32 0.0, %v2906
        %v2908 = vpop.f32.mrb[0].mxu0
        %2909 = vmatprep.mubr.f32.mxu0 0.0
        %2910 = vmatmul.mubr.f32.gmra.mrb[0].mxu0 %v2741
        %v2911 = vpop.f32.mrb[0].mxu0
        %v2912 = vadd.f32 0.0, %v2911
        %v2913 = vpop.f32.mrb[0].mxu0
        %2914 = vmatprep.mubr.f32.mxu0 0.0
        %2915 = vmatmul.mubr.f32.gmra.mrb[0].mxu0 %v2744
        %v2916 = vpop.f32.mrb[0].mxu0
        %v2917 = vadd.f32 0.0, %v2916
        %v2918 = vpop.f32.mrb[0].mxu0
        %2919 = vmatprep.mubr.f32.mxu0 0.0
        %2920 = vmatmul.mubr.f32.gmra.mrb[0].mxu0 %v2747
        %v2921 = vpop.f32.mrb[0].mxu0
        %v2922 = vadd.f32 0.0, %v2921
        %v2923 = vpop.f32.mrb[0].mxu0
        %2924 = vmatprep.mubr.f32.mxu0 0.0
        %2925 = vmatmul.mubr.f32.gmra.mrb[0].mxu0 %v2750
        %v2926 = vpop.f32.mrb[0].mxu0
        %v2927 = vadd.f32 0.0, %v2926
        %v2928 = vpop.f32.mrb[0].mxu0
        %2929 = vmatprep.mubr.f32.mxu0 0.0
        %2930 = vmatmul.mubr.f32.gmra.mrb[0].mxu0 %v2753
        %v2931 = vpop.f32.mrb[0].mxu0
        %v2932 = vadd.f32 0.0, %v2931
        %v2933 = vpop.f32.mrb[0].mxu0
        %2934 = vmatprep.mubr.f32.mxu0 0.0
        %2935 = vmatmul.mubr.f32.gmra.mrb[0].mxu0 %v2756
        %v2936 = vpop.f32.mrb[0].mxu0
        %v2937 = vadd.f32 0.0, %v2936
        %v2938 = vpop.f32.mrb[0].mxu0
        %2939 = vmatprep.mubr.f32.mxu0 0.0
        %2940 = vmatmul.mubr.f32.gmra.mrb[0].mxu0 %v2759
        %v2941 = vpop.f32.mrb[0].mxu0
        %v2942 = vadd.f32 0.0, %v2941
        %v2943 = vpop.f32.mrb[0].mxu0
        %2944 = vmatprep.mubr.f32.mxu0 0.0
        %2945 = vmatmul.mubr.f32.gmra.mrb[0].mxu0 %v2762
        %v2946 = vpop.f32.mrb[0].mxu0
        %v2947 = vadd.f32 0.0, %v2946
        %v2948 = vpop.f32.mrb[0].mxu0
        %2949 = vmatprep.mubr.f32.mxu0 0.0
        %2950 = vmatmul.mubr.f32.gmra.mrb[0].mxu0 %v2765
        %v2951 = vpop.f32.mrb[0].mxu0
        %v2952 = vadd.f32 0.0, %v2951
        %v2953 = vpop.f32.mrb[0].mxu0
        %2954 = vmatprep.mubr.f32.mxu0 0.0
        %2955 = vmatmul.mubr.f32.gmra.mrb[0].mxu0 %v2768
        %v2956 = vpop.f32.mrb[0].mxu0
        %v2957 = vadd.f32 0.0, %v2956
        %v2958 = vpop.f32.mrb[0].mxu0
        %2959 = vmatprep.mubr.f32.mxu0 0.0
        %2960 = vmatmul.mubr.f32.gmra.mrb[0].mxu0 %v2771
        %v2961 = vpop.f32.mrb[0].mxu0
        %v2962 = vadd.f32 0.0, %v2961
        %v2963 = vpop.f32.mrb[0].mxu0
        %2964 = vmatprep.mubr.f32.mxu0 0.0
        %2965 = vmatmul.mubr.f32.gmra.mrb[0].mxu0 %v2774
        %v2966 = vpop.f32.mrb[0].mxu0
        %v2967 = vadd.f32 0.0, %v2966
        %v2968 = vpop.f32.mrb[0].mxu0
        %2969 = vmatprep.mubr.f32.mxu0 0.0
        %2970 = vmatmul.mubr.f32.gmra.mrb[0].mxu0 %v2777
        %v2971 = vpop.f32.mrb[0].mxu0
        %v2972 = vadd.f32 0.0, %v2971
        %v2973 = vpop.f32.mrb[0].mxu0
        %2974 = vmatprep.mubr.f32.mxu0 0.0
        %2975 = vmatmul.mubr.f32.gmra.mrb[0].mxu0 %v2780
        %v2976 = vpop.f32.mrb[0].mxu0
        %v2977 = vadd.f32 0.0, %v2976
        %v2978 = vpop.f32.mrb[0].mxu0
        %2979 = vmatprep.mubr.f32.mxu0 0.0
        %2980 = vmatmul.mubr.f32.gmra.mrb[0].mxu0 %v2783
        %v2981 = vpop.f32.mrb[0].mxu0
        %v2982 = vadd.f32 0.0, %v2981
        %v2983 = vpop.f32.mrb[0].mxu0
        %2984 = vmatprep.mubr.f32.mxu0 0.0
        %2985 = vmatmul.mubr.f32.gmra.mrb[0].mxu0 %v2786
        %v2986 = vpop.f32.mrb[0].mxu0
        %v2987 = vadd.f32 0.0, %v2986
        %v2988 = vpop.f32.mrb[0].mxu0
        %2989 = vmatprep.mubr.f32.mxu0 0.0
        %2990 = vmatmul.mubr.f32.gmra.mrb[0].mxu0 %v2789
        %v2991 = vpop.f32.mrb[0].mxu0
        %v2992 = vadd.f32 0.0, %v2991
        %v2993 = vpop.f32.mrb[0].mxu0
        %2994 = vmatprep.mubr.f32.mxu0 0.0
        %2995 = vmatmul.mubr.f32.gmra.mrb[0].mxu0 %v2792
        %v2996 = vpop.f32.mrb[0].mxu0
        %v2997 = vadd.f32 0.0, %v2996
        %v2998 = vpop.f32.mrb[0].mxu0
        %2999 = vmatprep.mubr.f32.mxu0 0.0
        %3000 = vmatmul.mubr.f32.gmra.mrb[0].mxu0 %v2795
        %v3001 = vpop.f32.mrb[0].mxu0
        %v3002 = vadd.f32 0.0, %v3001
        %v3003 = vpop.f32.mrb[0].mxu0
        %3004 = vmatprep.mubr.f32.mxu0 0.0
        %3005 = vmatmul.mubr.f32.gmra.mrb[0].mxu0 %v2798
        %v3006 = vpop.f32.mrb[0].mxu0
        %v3007 = vadd.f32 0.0, %v3006
        %v3008 = vpop.f32.mrb[0].mxu0
        %3009 = vmatprep.mubr.f32.mxu0 0.0
        %3010 = vmatmul.mubr.f32.gmra.mrb[0].mxu0 %v2801
        %v3011 = vpop.f32.mrb[0].mxu0
        %v3012 = vadd.f32 0.0, %v3011
        %v3013 = vpop.f32.mrb[0].mxu0
        %3014 = vmatprep.mubr.f32.mxu0 0.0
        %3015 = vmatmul.mubr.f32.gmra.mrb[0].mxu0 %v2804
        %v3016 = vpop.f32.mrb[0].mxu0
        %v3017 = vadd.f32 0.0, %v3016
        %v3018 = vpop.f32.mrb[0].mxu0
        %3019 = vmatprep.mubr.f32.mxu0 0.0
        %3020 = vmatmul.mubr.f32.gmra.mrb[0].mxu0 %v2807
        %v3021 = vpop.f32.mrb[0].mxu0
        %v3022 = vadd.f32 0.0, %v3021
        %v3023 = vpop.f32.mrb[0].mxu0
        %3024 = vmatprep.mubr.f32.mxu0 0.0
        %3025 = vmatmul.mubr.f32.gmra.mrb[0].mxu0 %v2810
        %v3026 = vpop.f32.mrb[0].mxu0
        %v3027 = vadd.f32 0.0, %v3026
        %v3028 = vpop.f32.mrb[0].mxu0
        %3029 = vmatprep.mubr.f32.mxu0 0.0
        %3030 = vmatmul.mubr.f32.gmra.mrb[0].mxu0 %v2813
        %v3031 = vpop.f32.mrb[0].mxu0
        %v3032 = vadd.f32 0.0, %v3031
        %v3033 = vpop.f32.mrb[0].mxu0
        %3034 = vmatprep.mubr.f32.mxu0 0.0
        %3035 = vmatmul.mubr.f32.gmra.mrb[0].mxu0 %v2816
        %v3036 = vpop.f32.mrb[0].mxu0
        %v3037 = vadd.f32 0.0, %v3036
        %v3038 = vpop.f32.mrb[0].mxu0
        %3039 = vmatprep.mubr.f32.mxu0 0.0
        %3040 = vmatmul.mubr.f32.gmra.mrb[0].mxu0 %v2819
        %v3041 = vpop.f32.mrb[0].mxu0
        %v3042 = vadd.f32 0.0, %v3041
        %v3043 = vpop.f32.mrb[0].mxu0
        %3044 = vmatprep.mubr.f32.mxu0 0.0
        %3045 = vmatmul.mubr.f32.gmra.mrb[0].mxu0 %v2822
        %v3046 = vpop.f32.mrb[0].mxu0
        %v3047 = vadd.f32 0.0, %v3046
        %v3048 = vpop.f32.mrb[0].mxu0
        %3049 = vmatprep.mubr.f32.mxu0 0.0
        %3050 = vmatmul.mubr.f32.gmra.mrb[0].mxu0 %v2825
        %v3051 = vpop.f32.mrb[0].mxu0
        %v3052 = vadd.f32 0.0, %v3051
        %v3053 = vpop.f32.mrb[0].mxu0
        %3054 = vdwg.mxu0
        %v3055 = vadd.f32 %v2664, %v2897
        %v3056 = vadd.f32 %v2665, %v2902
        %v3057 = vadd.f32 %v2666, %v2907
        %v3058 = vadd.f32 %v2667, %v2912
        %v3059 = vadd.f32 %v2668, %v2917
        %v3060 = vadd.f32 %v2669, %v2922
        %v3061 = vadd.f32 %v2670, %v2927
        %v3062 = vadd.f32 %v2671, %v2932
        %v3063 = vadd.f32 %v2672, %v2937
        %v3064 = vadd.f32 %v2673, %v2942
        %v3065 = vadd.f32 %v2674, %v2947
        %v3066 = vadd.f32 %v2675, %v2952
        %v3067 = vadd.f32 %v2676, %v2957
        %v3068 = vadd.f32 %v2677, %v2962
        %v3069 = vadd.f32 %v2678, %v2967
        %v3070 = vadd.f32 %v2679, %v2972
        %v3071 = vadd.f32 %v2680, %v2977
        %v3072 = vadd.f32 %v2681, %v2982
        %v3073 = vadd.f32 %v2682, %v2987
        %v3074 = vadd.f32 %v2683, %v2992
        %v3075 = vadd.f32 %v2684, %v2997
        %v3076 = vadd.f32 %v2685, %v3002
        %v3077 = vadd.f32 %v2686, %v3007
        %v3078 = vadd.f32 %v2687, %v3012
        %v3079 = vadd.f32 %v2688, %v3017
        %v3080 = vadd.f32 %v2689, %v3022
        %v3081 = vadd.f32 %v2690, %v3027
        %v3082 = vadd.f32 %v2691, %v3032
        %v3083 = vadd.f32 %v2692, %v3037
        %v3084 = vadd.f32 %v2693, %v3042
        %v3085 = vadd.f32 %v2694, %v3047
        %v3086 = vadd.f32 %v2695, %v3052
        %v3087 = vld [vmem:[%s2696 + $0x1] sm:$0xff]
        %v3088 = vld [vmem:[%s2696 + $0x9] sm:$0xff]
        %v3089 = vld [vmem:[%s2696 + $0x19] sm:$0xff]
        %v3090 = vld [vmem:[%s2696 + $0x21] sm:$0xff]
        %v3091 = vld [vmem:[%s2696 + $0x31] sm:$0xff]
        %v3092 = vld [vmem:[%s2696 + $0x39] sm:$0xff]
        %v3093 = vld [vmem:[%s2696 + $0x49] sm:$0xff]
        %v3094 = vld [vmem:[%s2696 + $0x51] sm:$0xff]
        %v3095 = vld [vmem:[%s2696 + $0x61] sm:$0xff]
        %v3096 = vld [vmem:[%s2696 + $0x69] sm:$0xff]
        %v3097 = vld [vmem:[%s2696 + $0x79] sm:$0xff]
        %v3098 = vld [vmem:[%s2696 + $0x81] sm:$0xff]
        %v3099 = vld [vmem:[%s2696 + $0x91] sm:$0xff]
        %v3100 = vld [vmem:[%s2696 + $0x99] sm:$0xff]
        %v3101 = vld [vmem:[%s2696 + $0xa9] sm:$0xff]
        %v3102 = vld [vmem:[%s2696 + $0xb1] sm:$0xff]
        %v3103 = vld [vmem:[%s2696 + $0xc1] sm:$0xff]
        %v3104 = vld [vmem:[%s2696 + $0xc9] sm:$0xff]
        %v3105 = vld [vmem:[%s2696 + $0xd9] sm:$0xff]
        %v3106 = vld [vmem:[%s2696 + $0xe1] sm:$0xff]
        %v3107 = vld [vmem:[%s2696 + $0xf1] sm:$0xff]
        %v3108 = vld [vmem:[%s2696 + $0xf9] sm:$0xff]
        %v3109 = vld [vmem:[%s2696 + $0x109] sm:$0xff]
        %v3110 = vld [vmem:[%s2696 + $0x111] sm:$0xff]
        %v3111 = vld [vmem:[%s2696 + $0x121] sm:$0xff]
        %v3112 = vld [vmem:[%s2696 + $0x129] sm:$0xff]
        %v3113 = vld [vmem:[%s2696 + $0x139] sm:$0xff]
        %v3114 = vld [vmem:[%s2696 + $0x141] sm:$0xff]
        %v3115 = vld [vmem:[%s2696 + $0x151] sm:$0xff]
        %v3116 = vld [vmem:[%s2696 + $0x159] sm:$0xff]
        %v3117 = vld [vmem:[%s2696 + $0x169] sm:$0xff]
        %v3118 = vld [vmem:[%s2696 + $0x171] sm:$0xff]
        %s3119 = scalar_lea.vmem %s2, 28
        %v3120 = vld [vmem:[%s3119] sm:$0xf]
        %v3122 = vsel %vm356, %v3087, 0
        %v3125 = vsel %vm356, %v3088, 0
        %v3128 = vsel %vm356, %v3089, 0
        %v3131 = vsel %vm356, %v3090, 0
        %v3134 = vsel %vm356, %v3091, 0
        %v3137 = vsel %vm356, %v3092, 0
        %v3140 = vsel %vm356, %v3093, 0
        %v3143 = vsel %vm356, %v3094, 0
        %v3146 = vsel %vm356, %v3095, 0
        %v3149 = vsel %vm356, %v3096, 0
        %v3152 = vsel %vm356, %v3097, 0
        %v3155 = vsel %vm356, %v3098, 0
        %v3158 = vsel %vm356, %v3099, 0
        %v3161 = vsel %vm356, %v3100, 0
        %v3164 = vsel %vm356, %v3101, 0
        %v3167 = vsel %vm356, %v3102, 0
        %v3170 = vsel %vm356, %v3103, 0
        %v3173 = vsel %vm356, %v3104, 0
        %v3176 = vsel %vm356, %v3105, 0
        %v3179 = vsel %vm356, %v3106, 0
        %v3182 = vsel %vm356, %v3107, 0
        %v3185 = vsel %vm356, %v3108, 0
        %v3188 = vsel %vm356, %v3109, 0
        %v3191 = vsel %vm356, %v3110, 0
        %v3194 = vsel %vm356, %v3111, 0
        %v3197 = vsel %vm356, %v3112, 0
        %v3200 = vsel %vm356, %v3113, 0
        %v3203 = vsel %vm356, %v3114, 0
        %v3206 = vsel %vm356, %v3115, 0
        %v3209 = vsel %vm356, %v3116, 0
        %v3212 = vsel %vm356, %v3117, 0
        %v3215 = vsel %vm356, %v3118, 0
        %v3218 = vsel %vm582, %v3120, 0
        %3220 = vmatprep.subr.mxu0 0.0
        %3221 = vmatpush1.msra.mxu0 %v3218
        %3222 = vmatprep.subr.mxu0 0.0
        %3223 = vmatpush1.msra.mxu0 0.0
        %3224 = vmatprep.subr.mxu0 0.0
        %3225 = vmatpush1.msra.mxu0 0.0
        %3226 = vmatprep.subr.mxu0 0.0
        %3227 = vmatpush1.msra.mxu0 0.0
        %3228 = vmatprep.subr.mxu0 0.0
        %3229 = vmatpush1.msra.mxu0 0.0
        %3230 = vmatprep.subr.mxu0 0.0
        %3231 = vmatpush1.msra.mxu0 0.0
        %3232 = vmatprep.subr.mxu0 0.0
        %3233 = vmatpush1.msra.mxu0 0.0
        %3234 = vmatprep.subr.mxu0 0.0
        %3235 = vmatpush1.msra.mxu0 0.0
        %3236 = vmatprep.subr.mxu0 0.0
        %3237 = vmatpush1.msra.mxu0 0.0
        %3238 = vmatprep.subr.mxu0 0.0
        %3239 = vmatpush1.msra.mxu0 0.0
        %3240 = vmatprep.subr.mxu0 0.0
        %3241 = vmatpush1.msra.mxu0 0.0
        %3242 = vmatprep.subr.mxu0 0.0
        %3243 = vmatpush1.msra.mxu0 0.0
        %3244 = vmatprep.subr.mxu0 0.0
        %3245 = vmatpush1.msra.mxu0 0.0
        %3246 = vmatprep.subr.mxu0 0.0
        %3247 = vmatpush1.msra.mxu0 0.0
        %3248 = vmatprep.subr.mxu0 0.0
        %3249 = vmatpush1.msra.mxu0 0.0
        %3250 = vmatprep.subr.mxu0 0.0
        %3251 = vmatpush1.msra.mxu0 0.0
        %3252 = vmatprep.subr.mxu0 0.0
        %3253 = vmatpush1.msra.mxu0 0.0
        %3254 = vmatprep.subr.mxu0 0.0
        %3255 = vmatpush1.msra.mxu0 0.0
        %3256 = vmatprep.subr.mxu0 0.0
        %3257 = vmatpush1.msra.mxu0 0.0
        %3258 = vmatprep.subr.mxu0 0.0
        %3259 = vmatpush1.msra.mxu0 0.0
        %3260 = vmatprep.subr.mxu0 0.0
        %3261 = vmatpush1.msra.mxu0 0.0
        %3262 = vmatprep.subr.mxu0 0.0
        %3263 = vmatpush1.msra.mxu0 0.0
        %3264 = vmatprep.subr.mxu0 0.0
        %3265 = vmatpush1.msra.mxu0 0.0
        %3266 = vmatprep.subr.mxu0 0.0
        %3267 = vmatpush1.msra.mxu0 0.0
        %3268 = vmatprep.subr.mxu0 0.0
        %3269 = vmatpush1.msra.mxu0 0.0
        %3270 = vmatprep.subr.mxu0 0.0
        %3271 = vmatpush1.msra.mxu0 0.0
        %3272 = vmatprep.subr.mxu0 0.0
        %3273 = vmatpush1.msra.mxu0 0.0
        %3274 = vmatprep.subr.mxu0 0.0
        %3275 = vmatpush1.msra.mxu0 0.0
        %3276 = vmatprep.subr.mxu0 0.0
        %3277 = vmatpush1.msra.mxu0 0.0
        %3278 = vmatprep.subr.mxu0 0.0
        %3279 = vmatpush1.msra.mxu0 0.0
        %3280 = vmatprep.subr.mxu0 0.0
        %3281 = vmatpush1.msra.mxu0 0.0
        %3282 = vmatprep.subr.mxu0 0.0
        %3283 = vmatpush1.msra.mxu0 0.0
        %3284 = vmatprep.mubr.f32.mxu0 0.0
        %3285 = vmatmul.mubr.f32.gmra.mrb[0].mxu0 %v3122
        %v3286 = vpop.f32.mrb[0].mxu0
        %v3287 = vadd.f32 0.0, %v3286
        %v3288 = vpop.f32.mrb[0].mxu0
        %3289 = vmatprep.mubr.f32.mxu0 0.0
        %3290 = vmatmul.mubr.f32.gmra.mrb[0].mxu0 %v3125
        %v3291 = vpop.f32.mrb[0].mxu0
        %v3292 = vadd.f32 0.0, %v3291
        %v3293 = vpop.f32.mrb[0].mxu0
        %3294 = vmatprep.mubr.f32.mxu0 0.0
        %3295 = vmatmul.mubr.f32.gmra.mrb[0].mxu0 %v3128
        %v3296 = vpop.f32.mrb[0].mxu0
        %v3297 = vadd.f32 0.0, %v3296
        %v3298 = vpop.f32.mrb[0].mxu0
        %3299 = vmatprep.mubr.f32.mxu0 0.0
        %3300 = vmatmul.mubr.f32.gmra.mrb[0].mxu0 %v3131
        %v3301 = vpop.f32.mrb[0].mxu0
        %v3302 = vadd.f32 0.0, %v3301
        %v3303 = vpop.f32.mrb[0].mxu0
        %3304 = vmatprep.mubr.f32.mxu0 0.0
        %3305 = vmatmul.mubr.f32.gmra.mrb[0].mxu0 %v3134
        %v3306 = vpop.f32.mrb[0].mxu0
        %v3307 = vadd.f32 0.0, %v3306
        %v3308 = vpop.f32.mrb[0].mxu0
        %3309 = vmatprep.mubr.f32.mxu0 0.0
        %3310 = vmatmul.mubr.f32.gmra.mrb[0].mxu0 %v3137
        %v3311 = vpop.f32.mrb[0].mxu0
        %v3312 = vadd.f32 0.0, %v3311
        %v3313 = vpop.f32.mrb[0].mxu0
        %3314 = vmatprep.mubr.f32.mxu0 0.0
        %3315 = vmatmul.mubr.f32.gmra.mrb[0].mxu0 %v3140
        %v3316 = vpop.f32.mrb[0].mxu0
        %v3317 = vadd.f32 0.0, %v3316
        %v3318 = vpop.f32.mrb[0].mxu0
        %3319 = vmatprep.mubr.f32.mxu0 0.0
        %3320 = vmatmul.mubr.f32.gmra.mrb[0].mxu0 %v3143
        %v3321 = vpop.f32.mrb[0].mxu0
        %v3322 = vadd.f32 0.0, %v3321
        %v3323 = vpop.f32.mrb[0].mxu0
        %3324 = vmatprep.mubr.f32.mxu0 0.0
        %3325 = vmatmul.mubr.f32.gmra.mrb[0].mxu0 %v3146
        %v3326 = vpop.f32.mrb[0].mxu0
        %v3327 = vadd.f32 0.0, %v3326
        %v3328 = vpop.f32.mrb[0].mxu0
        %3329 = vmatprep.mubr.f32.mxu0 0.0
        %3330 = vmatmul.mubr.f32.gmra.mrb[0].mxu0 %v3149
        %v3331 = vpop.f32.mrb[0].mxu0
        %v3332 = vadd.f32 0.0, %v3331
        %v3333 = vpop.f32.mrb[0].mxu0
        %3334 = vmatprep.mubr.f32.mxu0 0.0
        %3335 = vmatmul.mubr.f32.gmra.mrb[0].mxu0 %v3152
        %v3336 = vpop.f32.mrb[0].mxu0
        %v3337 = vadd.f32 0.0, %v3336
        %v3338 = vpop.f32.mrb[0].mxu0
        %3339 = vmatprep.mubr.f32.mxu0 0.0
        %3340 = vmatmul.mubr.f32.gmra.mrb[0].mxu0 %v3155
        %v3341 = vpop.f32.mrb[0].mxu0
        %v3342 = vadd.f32 0.0, %v3341
        %v3343 = vpop.f32.mrb[0].mxu0
        %3344 = vmatprep.mubr.f32.mxu0 0.0
        %3345 = vmatmul.mubr.f32.gmra.mrb[0].mxu0 %v3158
        %v3346 = vpop.f32.mrb[0].mxu0
        %v3347 = vadd.f32 0.0, %v3346
        %v3348 = vpop.f32.mrb[0].mxu0
        %3349 = vmatprep.mubr.f32.mxu0 0.0
        %3350 = vmatmul.mubr.f32.gmra.mrb[0].mxu0 %v3161
        %v3351 = vpop.f32.mrb[0].mxu0
        %v3352 = vadd.f32 0.0, %v3351
        %v3353 = vpop.f32.mrb[0].mxu0
        %3354 = vmatprep.mubr.f32.mxu0 0.0
        %3355 = vmatmul.mubr.f32.gmra.mrb[0].mxu0 %v3164
        %v3356 = vpop.f32.mrb[0].mxu0
        %v3357 = vadd.f32 0.0, %v3356
        %v3358 = vpop.f32.mrb[0].mxu0
        %3359 = vmatprep.mubr.f32.mxu0 0.0
        %3360 = vmatmul.mubr.f32.gmra.mrb[0].mxu0 %v3167
        %v3361 = vpop.f32.mrb[0].mxu0
        %v3362 = vadd.f32 0.0, %v3361
        %v3363 = vpop.f32.mrb[0].mxu0
        %3364 = vmatprep.mubr.f32.mxu0 0.0
        %3365 = vmatmul.mubr.f32.gmra.mrb[0].mxu0 %v3170
        %v3366 = vpop.f32.mrb[0].mxu0
        %v3367 = vadd.f32 0.0, %v3366
        %v3368 = vpop.f32.mrb[0].mxu0
        %3369 = vmatprep.mubr.f32.mxu0 0.0
        %3370 = vmatmul.mubr.f32.gmra.mrb[0].mxu0 %v3173
        %v3371 = vpop.f32.mrb[0].mxu0
        %v3372 = vadd.f32 0.0, %v3371
        %v3373 = vpop.f32.mrb[0].mxu0
        %3374 = vmatprep.mubr.f32.mxu0 0.0
        %3375 = vmatmul.mubr.f32.gmra.mrb[0].mxu0 %v3176
        %v3376 = vpop.f32.mrb[0].mxu0
        %v3377 = vadd.f32 0.0, %v3376
        %v3378 = vpop.f32.mrb[0].mxu0
        %3379 = vmatprep.mubr.f32.mxu0 0.0
        %3380 = vmatmul.mubr.f32.gmra.mrb[0].mxu0 %v3179
        %v3381 = vpop.f32.mrb[0].mxu0
        %v3382 = vadd.f32 0.0, %v3381
        %v3383 = vpop.f32.mrb[0].mxu0
        %3384 = vmatprep.mubr.f32.mxu0 0.0
        %3385 = vmatmul.mubr.f32.gmra.mrb[0].mxu0 %v3182
        %v3386 = vpop.f32.mrb[0].mxu0
        %v3387 = vadd.f32 0.0, %v3386
        %v3388 = vpop.f32.mrb[0].mxu0
        %3389 = vmatprep.mubr.f32.mxu0 0.0
        %3390 = vmatmul.mubr.f32.gmra.mrb[0].mxu0 %v3185
        %v3391 = vpop.f32.mrb[0].mxu0
        %v3392 = vadd.f32 0.0, %v3391
        %v3393 = vpop.f32.mrb[0].mxu0
        %3394 = vmatprep.mubr.f32.mxu0 0.0
        %3395 = vmatmul.mubr.f32.gmra.mrb[0].mxu0 %v3188
        %v3396 = vpop.f32.mrb[0].mxu0
        %v3397 = vadd.f32 0.0, %v3396
        %v3398 = vpop.f32.mrb[0].mxu0
        %3399 = vmatprep.mubr.f32.mxu0 0.0
        %3400 = vmatmul.mubr.f32.gmra.mrb[0].mxu0 %v3191
        %v3401 = vpop.f32.mrb[0].mxu0
        %v3402 = vadd.f32 0.0, %v3401
        %v3403 = vpop.f32.mrb[0].mxu0
        %3404 = vmatprep.mubr.f32.mxu0 0.0
        %3405 = vmatmul.mubr.f32.gmra.mrb[0].mxu0 %v3194
        %v3406 = vpop.f32.mrb[0].mxu0
        %v3407 = vadd.f32 0.0, %v3406
        %v3408 = vpop.f32.mrb[0].mxu0
        %3409 = vmatprep.mubr.f32.mxu0 0.0
        %3410 = vmatmul.mubr.f32.gmra.mrb[0].mxu0 %v3197
        %v3411 = vpop.f32.mrb[0].mxu0
        %v3412 = vadd.f32 0.0, %v3411
        %v3413 = vpop.f32.mrb[0].mxu0
        %3414 = vmatprep.mubr.f32.mxu0 0.0
        %3415 = vmatmul.mubr.f32.gmra.mrb[0].mxu0 %v3200
        %v3416 = vpop.f32.mrb[0].mxu0
        %v3417 = vadd.f32 0.0, %v3416
        %v3418 = vpop.f32.mrb[0].mxu0
        %3419 = vmatprep.mubr.f32.mxu0 0.0
        %3420 = vmatmul.mubr.f32.gmra.mrb[0].mxu0 %v3203
        %v3421 = vpop.f32.mrb[0].mxu0
        %v3422 = vadd.f32 0.0, %v3421
        %v3423 = vpop.f32.mrb[0].mxu0
        %3424 = vmatprep.mubr.f32.mxu0 0.0
        %3425 = vmatmul.mubr.f32.gmra.mrb[0].mxu0 %v3206
        %v3426 = vpop.f32.mrb[0].mxu0
        %v3427 = vadd.f32 0.0, %v3426
        %v3428 = vpop.f32.mrb[0].mxu0
        %3429 = vmatprep.mubr.f32.mxu0 0.0
        %3430 = vmatmul.mubr.f32.gmra.mrb[0].mxu0 %v3209
        %v3431 = vpop.f32.mrb[0].mxu0
        %v3432 = vadd.f32 0.0, %v3431
        %v3433 = vpop.f32.mrb[0].mxu0
        %3434 = vmatprep.mubr.f32.mxu0 0.0
        %3435 = vmatmul.mubr.f32.gmra.mrb[0].mxu0 %v3212
        %v3436 = vpop.f32.mrb[0].mxu0
        %v3437 = vadd.f32 0.0, %v3436
        %v3438 = vpop.f32.mrb[0].mxu0
        %3439 = vmatprep.mubr.f32.mxu0 0.0
        %3440 = vmatmul.mubr.f32.gmra.mrb[0].mxu0 %v3215
        %v3441 = vpop.f32.mrb[0].mxu0
        %v3442 = vadd.f32 0.0, %v3441
        %v3443 = vpop.f32.mrb[0].mxu0
        %3444 = vdwg.mxu0
        %v3445 = vadd.f32 %v3055, %v3287
        %v3446 = vadd.f32 %v3056, %v3292
        %v3447 = vadd.f32 %v3057, %v3297
        %v3448 = vadd.f32 %v3058, %v3302
        %v3449 = vadd.f32 %v3059, %v3307
        %v3450 = vadd.f32 %v3060, %v3312
        %v3451 = vadd.f32 %v3061, %v3317
        %v3452 = vadd.f32 %v3062, %v3322
        %v3453 = vadd.f32 %v3063, %v3327
        %v3454 = vadd.f32 %v3064, %v3332
        %v3455 = vadd.f32 %v3065, %v3337
        %v3456 = vadd.f32 %v3066, %v3342
        %v3457 = vadd.f32 %v3067, %v3347
        %v3458 = vadd.f32 %v3068, %v3352
        %v3459 = vadd.f32 %v3069, %v3357
        %v3460 = vadd.f32 %v3070, %v3362
        %v3461 = vadd.f32 %v3071, %v3367
        %v3462 = vadd.f32 %v3072, %v3372
        %v3463 = vadd.f32 %v3073, %v3377
        %v3464 = vadd.f32 %v3074, %v3382
        %v3465 = vadd.f32 %v3075, %v3387
        %v3466 = vadd.f32 %v3076, %v3392
        %v3467 = vadd.f32 %v3077, %v3397
        %v3468 = vadd.f32 %v3078, %v3402
        %v3469 = vadd.f32 %v3079, %v3407
        %v3470 = vadd.f32 %v3080, %v3412
        %v3471 = vadd.f32 %v3081, %v3417
        %v3472 = vadd.f32 %v3082, %v3422
        %v3473 = vadd.f32 %v3083, %v3427
        %v3474 = vadd.f32 %v3084, %v3432
        %v3475 = vadd.f32 %v3085, %v3437
        %v3476 = vadd.f32 %v3086, %v3442
        %v3477 = vld [vmem:[%s2696 + $0x2] sm:$0xff]
        %v3478 = vld [vmem:[%s2696 + $0xa] sm:$0xff]
        %v3479 = vld [vmem:[%s2696 + $0x1a] sm:$0xff]
        %v3480 = vld [vmem:[%s2696 + $0x22] sm:$0xff]
        %v3481 = vld [vmem:[%s2696 + $0x32] sm:$0xff]
        %v3482 = vld [vmem:[%s2696 + $0x3a] sm:$0xff]
        %v3483 = vld [vmem:[%s2696 + $0x4a] sm:$0xff]
        %v3484 = vld [vmem:[%s2696 + $0x52] sm:$0xff]
        %v3485 = vld [vmem:[%s2696 + $0x62] sm:$0xff]
        %v3486 = vld [vmem:[%s2696 + $0x6a] sm:$0xff]
        %v3487 = vld [vmem:[%s2696 + $0x7a] sm:$0xff]
        %v3488 = vld [vmem:[%s2696 + $0x82] sm:$0xff]
        %v3489 = vld [vmem:[%s2696 + $0x92] sm:$0xff]
        %v3490 = vld [vmem:[%s2696 + $0x9a] sm:$0xff]
        %v3491 = vld [vmem:[%s2696 + $0xaa] sm:$0xff]
        %v3492 = vld [vmem:[%s2696 + $0xb2] sm:$0xff]
        %v3493 = vld [vmem:[%s2696 + $0xc2] sm:$0xff]
        %v3494 = vld [vmem:[%s2696 + $0xca] sm:$0xff]
        %v3495 = vld [vmem:[%s2696 + $0xda] sm:$0xff]
        %v3496 = vld [vmem:[%s2696 + $0xe2] sm:$0xff]
        %v3497 = vld [vmem:[%s2696 + $0xf2] sm:$0xff]
        %v3498 = vld [vmem:[%s2696 + $0xfa] sm:$0xff]
        %v3499 = vld [vmem:[%s2696 + $0x10a] sm:$0xff]
        %v3500 = vld [vmem:[%s2696 + $0x112] sm:$0xff]
        %v3501 = vld [vmem:[%s2696 + $0x122] sm:$0xff]
        %v3502 = vld [vmem:[%s2696 + $0x12a] sm:$0xff]
        %v3503 = vld [vmem:[%s2696 + $0x13a] sm:$0xff]
        %v3504 = vld [vmem:[%s2696 + $0x142] sm:$0xff]
        %v3505 = vld [vmem:[%s2696 + $0x152] sm:$0xff]
        %v3506 = vld [vmem:[%s2696 + $0x15a] sm:$0xff]
        %v3507 = vld [vmem:[%s2696 + $0x16a] sm:$0xff]
        %v3508 = vld [vmem:[%s2696 + $0x172] sm:$0xff]
        %s3509 = scalar_lea.vmem %s2, 32
        %v3510 = vld [vmem:[%s3509] sm:$0xf]
        %v3512 = vsel %vm356, %v3477, 0
        %v3515 = vsel %vm356, %v3478, 0
        %v3518 = vsel %vm356, %v3479, 0
        %v3521 = vsel %vm356, %v3480, 0
        %v3524 = vsel %vm356, %v3481, 0
        %v3527 = vsel %vm356, %v3482, 0
        %v3530 = vsel %vm356, %v3483, 0
        %v3533 = vsel %vm356, %v3484, 0
        %v3536 = vsel %vm356, %v3485, 0
        %v3539 = vsel %vm356, %v3486, 0
        %v3542 = vsel %vm356, %v3487, 0
        %v3545 = vsel %vm356, %v3488, 0
        %v3548 = vsel %vm356, %v3489, 0
        %v3551 = vsel %vm356, %v3490, 0
        %v3554 = vsel %vm356, %v3491, 0
        %v3557 = vsel %vm356, %v3492, 0
        %v3560 = vsel %vm356, %v3493, 0
        %v3563 = vsel %vm356, %v3494, 0
        %v3566 = vsel %vm356, %v3495, 0
        %v3569 = vsel %vm356, %v3496, 0
        %v3572 = vsel %vm356, %v3497, 0
        %v3575 = vsel %vm356, %v3498, 0
        %v3578 = vsel %vm356, %v3499, 0
        %v3581 = vsel %vm356, %v3500, 0
        %v3584 = vsel %vm356, %v3501, 0
        %v3587 = vsel %vm356, %v3502, 0
        %v3590 = vsel %vm356, %v3503, 0
        %v3593 = vsel %vm356, %v3504, 0
        %v3596 = vsel %vm356, %v3505, 0
        %v3599 = vsel %vm356, %v3506, 0
        %v3602 = vsel %vm356, %v3507, 0
        %v3605 = vsel %vm356, %v3508, 0
        %v3608 = vsel %vm582, %v3510, 0
        %3610 = vmatprep.subr.mxu0 0.0
        %3611 = vmatpush1.msra.mxu0 %v3608
        %3612 = vmatprep.subr.mxu0 0.0
        %3613 = vmatpush1.msra.mxu0 0.0
        %3614 = vmatprep.subr.mxu0 0.0
        %3615 = vmatpush1.msra.mxu0 0.0
        %3616 = vmatprep.subr.mxu0 0.0
        %3617 = vmatpush1.msra.mxu0 0.0
        %3618 = vmatprep.subr.mxu0 0.0
        %3619 = vmatpush1.msra.mxu0 0.0
        %3620 = vmatprep.subr.mxu0 0.0
        %3621 = vmatpush1.msra.mxu0 0.0
        %3622 = vmatprep.subr.mxu0 0.0
        %3623 = vmatpush1.msra.mxu0 0.0
        %3624 = vmatprep.subr.mxu0 0.0
        %3625 = vmatpush1.msra.mxu0 0.0
        %3626 = vmatprep.subr.mxu0 0.0
        %3627 = vmatpush1.msra.mxu0 0.0
        %3628 = vmatprep.subr.mxu0 0.0
        %3629 = vmatpush1.msra.mxu0 0.0
        %3630 = vmatprep.subr.mxu0 0.0
        %3631 = vmatpush1.msra.mxu0 0.0
        %3632 = vmatprep.subr.mxu0 0.0
        %3633 = vmatpush1.msra.mxu0 0.0
        %3634 = vmatprep.subr.mxu0 0.0
        %3635 = vmatpush1.msra.mxu0 0.0
        %3636 = vmatprep.subr.mxu0 0.0
        %3637 = vmatpush1.msra.mxu0 0.0
        %3638 = vmatprep.subr.mxu0 0.0
        %3639 = vmatpush1.msra.mxu0 0.0
        %3640 = vmatprep.subr.mxu0 0.0
        %3641 = vmatpush1.msra.mxu0 0.0
        %3642 = vmatprep.subr.mxu0 0.0
        %3643 = vmatpush1.msra.mxu0 0.0
        %3644 = vmatprep.subr.mxu0 0.0
        %3645 = vmatpush1.msra.mxu0 0.0
        %3646 = vmatprep.subr.mxu0 0.0
        %3647 = vmatpush1.msra.mxu0 0.0
        %3648 = vmatprep.subr.mxu0 0.0
        %3649 = vmatpush1.msra.mxu0 0.0
        %3650 = vmatprep.subr.mxu0 0.0
        %3651 = vmatpush1.msra.mxu0 0.0
        %3652 = vmatprep.subr.mxu0 0.0
        %3653 = vmatpush1.msra.mxu0 0.0
        %3654 = vmatprep.subr.mxu0 0.0
        %3655 = vmatpush1.msra.mxu0 0.0
        %3656 = vmatprep.subr.mxu0 0.0
        %3657 = vmatpush1.msra.mxu0 0.0
        %3658 = vmatprep.subr.mxu0 0.0
        %3659 = vmatpush1.msra.mxu0 0.0
        %3660 = vmatprep.subr.mxu0 0.0
        %3661 = vmatpush1.msra.mxu0 0.0
        %3662 = vmatprep.subr.mxu0 0.0
        %3663 = vmatpush1.msra.mxu0 0.0
        %3664 = vmatprep.subr.mxu0 0.0
        %3665 = vmatpush1.msra.mxu0 0.0
        %3666 = vmatprep.subr.mxu0 0.0
        %3667 = vmatpush1.msra.mxu0 0.0
        %3668 = vmatprep.subr.mxu0 0.0
        %3669 = vmatpush1.msra.mxu0 0.0
        %3670 = vmatprep.subr.mxu0 0.0
        %3671 = vmatpush1.msra.mxu0 0.0
        %3672 = vmatprep.subr.mxu0 0.0
        %3673 = vmatpush1.msra.mxu0 0.0
        %3674 = vmatprep.mubr.f32.mxu0 0.0
        %3675 = vmatmul.mubr.f32.gmra.mrb[0].mxu0 %v3512
        %v3676 = vpop.f32.mrb[0].mxu0
        %v3677 = vadd.f32 0.0, %v3676
        %v3678 = vpop.f32.mrb[0].mxu0
        %3679 = vmatprep.mubr.f32.mxu0 0.0
        %3680 = vmatmul.mubr.f32.gmra.mrb[0].mxu0 %v3515
        %v3681 = vpop.f32.mrb[0].mxu0
        %v3682 = vadd.f32 0.0, %v3681
        %v3683 = vpop.f32.mrb[0].mxu0
        %3684 = vmatprep.mubr.f32.mxu0 0.0
        %3685 = vmatmul.mubr.f32.gmra.mrb[0].mxu0 %v3518
        %v3686 = vpop.f32.mrb[0].mxu0
        %v3687 = vadd.f32 0.0, %v3686
        %v3688 = vpop.f32.mrb[0].mxu0
        %3689 = vmatprep.mubr.f32.mxu0 0.0
        %3690 = vmatmul.mubr.f32.gmra.mrb[0].mxu0 %v3521
        %v3691 = vpop.f32.mrb[0].mxu0
        %v3692 = vadd.f32 0.0, %v3691
        %v3693 = vpop.f32.mrb[0].mxu0
        %3694 = vmatprep.mubr.f32.mxu0 0.0
        %3695 = vmatmul.mubr.f32.gmra.mrb[0].mxu0 %v3524
        %v3696 = vpop.f32.mrb[0].mxu0
        %v3697 = vadd.f32 0.0, %v3696
        %v3698 = vpop.f32.mrb[0].mxu0
        %3699 = vmatprep.mubr.f32.mxu0 0.0
        %3700 = vmatmul.mubr.f32.gmra.mrb[0].mxu0 %v3527
        %v3701 = vpop.f32.mrb[0].mxu0
        %v3702 = vadd.f32 0.0, %v3701
        %v3703 = vpop.f32.mrb[0].mxu0
        %3704 = vmatprep.mubr.f32.mxu0 0.0
        %3705 = vmatmul.mubr.f32.gmra.mrb[0].mxu0 %v3530
        %v3706 = vpop.f32.mrb[0].mxu0
        %v3707 = vadd.f32 0.0, %v3706
        %v3708 = vpop.f32.mrb[0].mxu0
        %3709 = vmatprep.mubr.f32.mxu0 0.0
        %3710 = vmatmul.mubr.f32.gmra.mrb[0].mxu0 %v3533
        %v3711 = vpop.f32.mrb[0].mxu0
        %v3712 = vadd.f32 0.0, %v3711
        %v3713 = vpop.f32.mrb[0].mxu0
        %3714 = vmatprep.mubr.f32.mxu0 0.0
        %3715 = vmatmul.mubr.f32.gmra.mrb[0].mxu0 %v3536
        %v3716 = vpop.f32.mrb[0].mxu0
        %v3717 = vadd.f32 0.0, %v3716
        %v3718 = vpop.f32.mrb[0].mxu0
        %3719 = vmatprep.mubr.f32.mxu0 0.0
        %3720 = vmatmul.mubr.f32.gmra.mrb[0].mxu0 %v3539
        %v3721 = vpop.f32.mrb[0].mxu0
        %v3722 = vadd.f32 0.0, %v3721
        %v3723 = vpop.f32.mrb[0].mxu0
        %3724 = vmatprep.mubr.f32.mxu0 0.0
        %3725 = vmatmul.mubr.f32.gmra.mrb[0].mxu0 %v3542
        %v3726 = vpop.f32.mrb[0].mxu0
        %v3727 = vadd.f32 0.0, %v3726
        %v3728 = vpop.f32.mrb[0].mxu0
        %3729 = vmatprep.mubr.f32.mxu0 0.0
        %3730 = vmatmul.mubr.f32.gmra.mrb[0].mxu0 %v3545
        %v3731 = vpop.f32.mrb[0].mxu0
        %v3732 = vadd.f32 0.0, %v3731
        %v3733 = vpop.f32.mrb[0].mxu0
        %3734 = vmatprep.mubr.f32.mxu0 0.0
        %3735 = vmatmul.mubr.f32.gmra.mrb[0].mxu0 %v3548
        %v3736 = vpop.f32.mrb[0].mxu0
        %v3737 = vadd.f32 0.0, %v3736
        %v3738 = vpop.f32.mrb[0].mxu0
        %3739 = vmatprep.mubr.f32.mxu0 0.0
        %3740 = vmatmul.mubr.f32.gmra.mrb[0].mxu0 %v3551
        %v3741 = vpop.f32.mrb[0].mxu0
        %v3742 = vadd.f32 0.0, %v3741
        %v3743 = vpop.f32.mrb[0].mxu0
        %3744 = vmatprep.mubr.f32.mxu0 0.0
        %3745 = vmatmul.mubr.f32.gmra.mrb[0].mxu0 %v3554
        %v3746 = vpop.f32.mrb[0].mxu0
        %v3747 = vadd.f32 0.0, %v3746
        %v3748 = vpop.f32.mrb[0].mxu0
        %3749 = vmatprep.mubr.f32.mxu0 0.0
        %3750 = vmatmul.mubr.f32.gmra.mrb[0].mxu0 %v3557
        %v3751 = vpop.f32.mrb[0].mxu0
        %v3752 = vadd.f32 0.0, %v3751
        %v3753 = vpop.f32.mrb[0].mxu0
        %3754 = vmatprep.mubr.f32.mxu0 0.0
        %3755 = vmatmul.mubr.f32.gmra.mrb[0].mxu0 %v3560
        %v3756 = vpop.f32.mrb[0].mxu0
        %v3757 = vadd.f32 0.0, %v3756
        %v3758 = vpop.f32.mrb[0].mxu0
        %3759 = vmatprep.mubr.f32.mxu0 0.0
        %3760 = vmatmul.mubr.f32.gmra.mrb[0].mxu0 %v3563
        %v3761 = vpop.f32.mrb[0].mxu0
        %v3762 = vadd.f32 0.0, %v3761
        %v3763 = vpop.f32.mrb[0].mxu0
        %3764 = vmatprep.mubr.f32.mxu0 0.0
        %3765 = vmatmul.mubr.f32.gmra.mrb[0].mxu0 %v3566
        %v3766 = vpop.f32.mrb[0].mxu0
        %v3767 = vadd.f32 0.0, %v3766
        %v3768 = vpop.f32.mrb[0].mxu0
        %3769 = vmatprep.mubr.f32.mxu0 0.0
        %3770 = vmatmul.mubr.f32.gmra.mrb[0].mxu0 %v3569
        %v3771 = vpop.f32.mrb[0].mxu0
        %v3772 = vadd.f32 0.0, %v3771
        %v3773 = vpop.f32.mrb[0].mxu0
        %3774 = vmatprep.mubr.f32.mxu0 0.0
        %3775 = vmatmul.mubr.f32.gmra.mrb[0].mxu0 %v3572
        %v3776 = vpop.f32.mrb[0].mxu0
        %v3777 = vadd.f32 0.0, %v3776
        %v3778 = vpop.f32.mrb[0].mxu0
        %3779 = vmatprep.mubr.f32.mxu0 0.0
        %3780 = vmatmul.mubr.f32.gmra.mrb[0].mxu0 %v3575
        %v3781 = vpop.f32.mrb[0].mxu0
        %v3782 = vadd.f32 0.0, %v3781
        %v3783 = vpop.f32.mrb[0].mxu0
        %3784 = vmatprep.mubr.f32.mxu0 0.0
        %3785 = vmatmul.mubr.f32.gmra.mrb[0].mxu0 %v3578
        %v3786 = vpop.f32.mrb[0].mxu0
        %v3787 = vadd.f32 0.0, %v3786
        %v3788 = vpop.f32.mrb[0].mxu0
        %3789 = vmatprep.mubr.f32.mxu0 0.0
        %3790 = vmatmul.mubr.f32.gmra.mrb[0].mxu0 %v3581
        %v3791 = vpop.f32.mrb[0].mxu0
        %v3792 = vadd.f32 0.0, %v3791
        %v3793 = vpop.f32.mrb[0].mxu0
        %3794 = vmatprep.mubr.f32.mxu0 0.0
        %3795 = vmatmul.mubr.f32.gmra.mrb[0].mxu0 %v3584
        %v3796 = vpop.f32.mrb[0].mxu0
        %v3797 = vadd.f32 0.0, %v3796
        %v3798 = vpop.f32.mrb[0].mxu0
        %3799 = vmatprep.mubr.f32.mxu0 0.0
        %3800 = vmatmul.mubr.f32.gmra.mrb[0].mxu0 %v3587
        %v3801 = vpop.f32.mrb[0].mxu0
        %v3802 = vadd.f32 0.0, %v3801
        %v3803 = vpop.f32.mrb[0].mxu0
        %3804 = vmatprep.mubr.f32.mxu0 0.0
        %3805 = vmatmul.mubr.f32.gmra.mrb[0].mxu0 %v3590
        %v3806 = vpop.f32.mrb[0].mxu0
        %v3807 = vadd.f32 0.0, %v3806
        %v3808 = vpop.f32.mrb[0].mxu0
        %3809 = vmatprep.mubr.f32.mxu0 0.0
        %3810 = vmatmul.mubr.f32.gmra.mrb[0].mxu0 %v3593
        %v3811 = vpop.f32.mrb[0].mxu0
        %v3812 = vadd.f32 0.0, %v3811
        %v3813 = vpop.f32.mrb[0].mxu0
        %3814 = vmatprep.mubr.f32.mxu0 0.0
        %3815 = vmatmul.mubr.f32.gmra.mrb[0].mxu0 %v3596
        %v3816 = vpop.f32.mrb[0].mxu0
        %v3817 = vadd.f32 0.0, %v3816
        %v3818 = vpop.f32.mrb[0].mxu0
        %3819 = vmatprep.mubr.f32.mxu0 0.0
        %3820 = vmatmul.mubr.f32.gmra.mrb[0].mxu0 %v3599
        %v3821 = vpop.f32.mrb[0].mxu0
        %v3822 = vadd.f32 0.0, %v3821
        %v3823 = vpop.f32.mrb[0].mxu0
        %3824 = vmatprep.mubr.f32.mxu0 0.0
        %3825 = vmatmul.mubr.f32.gmra.mrb[0].mxu0 %v3602
        %v3826 = vpop.f32.mrb[0].mxu0
        %v3827 = vadd.f32 0.0, %v3826
        %v3828 = vpop.f32.mrb[0].mxu0
        %3829 = vmatprep.mubr.f32.mxu0 0.0
        %3830 = vmatmul.mubr.f32.gmra.mrb[0].mxu0 %v3605
        %v3831 = vpop.f32.mrb[0].mxu0
        %v3832 = vadd.f32 0.0, %v3831
        %v3833 = vpop.f32.mrb[0].mxu0
        %3834 = vdwg.mxu0
        %v3835 = vadd.f32 %v3445, %v3677
        %v3836 = vadd.f32 %v3446, %v3682
        %v3837 = vadd.f32 %v3447, %v3687
        %v3838 = vadd.f32 %v3448, %v3692
        %v3839 = vadd.f32 %v3449, %v3697
        %v3840 = vadd.f32 %v3450, %v3702
        %v3841 = vadd.f32 %v3451, %v3707
        %v3842 = vadd.f32 %v3452, %v3712
        %v3843 = vadd.f32 %v3453, %v3717
        %v3844 = vadd.f32 %v3454, %v3722
        %v3845 = vadd.f32 %v3455, %v3727
        %v3846 = vadd.f32 %v3456, %v3732
        %v3847 = vadd.f32 %v3457, %v3737
        %v3848 = vadd.f32 %v3458, %v3742
        %v3849 = vadd.f32 %v3459, %v3747
        %v3850 = vadd.f32 %v3460, %v3752
        %v3851 = vadd.f32 %v3461, %v3757
        %v3852 = vadd.f32 %v3462, %v3762
        %v3853 = vadd.f32 %v3463, %v3767
        %v3854 = vadd.f32 %v3464, %v3772
        %v3855 = vadd.f32 %v3465, %v3777
        %v3856 = vadd.f32 %v3466, %v3782
        %v3857 = vadd.f32 %v3467, %v3787
        %v3858 = vadd.f32 %v3468, %v3792
        %v3859 = vadd.f32 %v3469, %v3797
        %v3860 = vadd.f32 %v3470, %v3802
        %v3861 = vadd.f32 %v3471, %v3807
        %v3862 = vadd.f32 %v3472, %v3812
        %v3863 = vadd.f32 %v3473, %v3817
        %v3864 = vadd.f32 %v3474, %v3822
        %v3865 = vadd.f32 %v3475, %v3827
        %v3866 = vadd.f32 %v3476, %v3832
        %v3867 = vld [vmem:[%s3] sm:$0x1]
        %v3869 = vlaneseq
        %v3870 = vshrl.u32 %v3869, 7
        %v3871 = vsub.s32 0, %v3870
        %v3872 = vrot.slane %v3867, %v3871
        %v3874 = vadd.f32 %v3835, %v3872
        %v3875 = vadd.f32 %v3836, %v3872
        %v3876 = vadd.f32 %v3837, %v3872
        %v3877 = vadd.f32 %v3838, %v3872
        %v3878 = vadd.f32 %v3839, %v3872
        %v3879 = vadd.f32 %v3840, %v3872
        %v3880 = vadd.f32 %v3841, %v3872
        %v3881 = vadd.f32 %v3842, %v3872
        %v3882 = vadd.f32 %v3843, %v3872
        %v3883 = vadd.f32 %v3844, %v3872
        %v3884 = vadd.f32 %v3845, %v3872
        %v3885 = vadd.f32 %v3846, %v3872
        %v3886 = vadd.f32 %v3847, %v3872
        %v3887 = vadd.f32 %v3848, %v3872
        %v3888 = vadd.f32 %v3849, %v3872
        %v3889 = vadd.f32 %v3850, %v3872
        %v3890 = vadd.f32 %v3851, %v3872
        %v3891 = vadd.f32 %v3852, %v3872
        %v3892 = vadd.f32 %v3853, %v3872
        %v3893 = vadd.f32 %v3854, %v3872
        %v3894 = vadd.f32 %v3855, %v3872
        %v3895 = vadd.f32 %v3856, %v3872
        %v3896 = vadd.f32 %v3857, %v3872
        %v3897 = vadd.f32 %v3858, %v3872
        %v3898 = vadd.f32 %v3859, %v3872
        %v3899 = vadd.f32 %v3860, %v3872
        %v3900 = vadd.f32 %v3861, %v3872
        %v3901 = vadd.f32 %v3862, %v3872
        %v3902 = vadd.f32 %v3863, %v3872
        %v3903 = vadd.f32 %v3864, %v3872
        %v3904 = vadd.f32 %v3865, %v3872
        %v3905 = vadd.f32 %v3866, %v3872
        %3906 = vst [vmem:[%s270] sm:$0xff] %v3874
        %3907 = vst [vmem:[%s270 + $0x8] sm:$0xff] %v3875
        %3908 = vst [vmem:[%s270 + $0x10] sm:$0xff] %v3876
        %3909 = vst [vmem:[%s270 + $0x18] sm:$0xff] %v3877
        %3910 = vst [vmem:[%s270 + $0x20] sm:$0xff] %v3878
        %3911 = vst [vmem:[%s270 + $0x28] sm:$0xff] %v3879
        %3912 = vst [vmem:[%s270 + $0x30] sm:$0xff] %v3880
        %3913 = vst [vmem:[%s270 + $0x38] sm:$0xff] %v3881
        %3914 = vst [vmem:[%s270 + $0x40] sm:$0xff] %v3882
        %3915 = vst [vmem:[%s270 + $0x48] sm:$0xff] %v3883
        %3916 = vst [vmem:[%s270 + $0x50] sm:$0xff] %v3884
        %3917 = vst [vmem:[%s270 + $0x58] sm:$0xff] %v3885
        %3918 = vst [vmem:[%s270 + $0x60] sm:$0xff] %v3886
        %3919 = vst [vmem:[%s270 + $0x68] sm:$0xff] %v3887
        %3920 = vst [vmem:[%s270 + $0x70] sm:$0xff] %v3888
        %3921 = vst [vmem:[%s270 + $0x78] sm:$0xff] %v3889
        %3922 = vst [vmem:[%s270 + $0x80] sm:$0xff] %v3890
        %3923 = vst [vmem:[%s270 + $0x88] sm:$0xff] %v3891
        %3924 = vst [vmem:[%s270 + $0x90] sm:$0xff] %v3892
        %3925 = vst [vmem:[%s270 + $0x98] sm:$0xff] %v3893
        %3926 = vst [vmem:[%s270 + $0xa0] sm:$0xff] %v3894
        %3927 = vst [vmem:[%s270 + $0xa8] sm:$0xff] %v3895
        %3928 = vst [vmem:[%s270 + $0xb0] sm:$0xff] %v3896
        %3929 = vst [vmem:[%s270 + $0xb8] sm:$0xff] %v3897
        %3930 = vst [vmem:[%s270 + $0xc0] sm:$0xff] %v3898
        %3931 = vst [vmem:[%s270 + $0xc8] sm:$0xff] %v3899
        %3932 = vst [vmem:[%s270 + $0xd0] sm:$0xff] %v3900
        %3933 = vst [vmem:[%s270 + $0xd8] sm:$0xff] %v3901
        %3934 = vst [vmem:[%s270 + $0xe0] sm:$0xff] %v3902
        %3935 = vst [vmem:[%s270 + $0xe8] sm:$0xff] %v3903
        %3936 = vst [vmem:[%s270 + $0xf0] sm:$0xff] %v3904
        %3937 = vst [vmem:[%s270 + $0xf8] sm:$0xff] %v3905
        %s3938 = sand.u32 %s142, 1
        %s3939 = scalar_lea.sflag [#allocation4], %s3938
        %s3940 = sand.u32 %s142, 1
        %s3941 = smul.addr %s3940, 256
        %s3942 = scalar_lea.vmem [#allocation3], %s3941
        // Predicated region
        $region37: #{tpu_custom_call.1} parent=35 // pred_check
          %p3943 = pneg %p152
        $region38: #{tpu_custom_call.1} parent=35 // pred_check_branch
          %3945 = sbr.rel (%p3943) target = $region40
        $region39: #{tpu_custom_call.1} parent=35 // pred_region
          %s3946 = smul.u32 16, %s23
          %s3948 = ssub.s32 4096, 4096
          %3949 = vsyncadd %s3939, %s3948
          %s3950 = smul.addr %s3946, 2
          %s3951 = smul.addr %s22, 32
          %s3952 = sadd.s32 %s3950, %s3951
          %s3953 = smul.addr %s3952, 128
          %s3954 = scalar_lea.hbm %s4, %s3953
          %s3955 = sshll.u32 %s3942, 4
          %s3956 = int_to_ptr.vmem [resolvable:$true] %s3955
          %3961 = dma.vmem_to_hbm [thread:$0]  %s3956, 4096, %s3954, %s3939, 128, 128, 8
        $region40: #{tpu_custom_call.1} parent=35 // pred_fallthru
          _
      $region36: #{tpu_custom_call.1} parent=5 // pred_fallthru
        _
      %p3962 = scmp.le.s32.totalorder 2, %s13
      // Predicated region
      $region41: #{tpu_custom_call.1} parent=5 // pred_check
        %p3963 = pneg %p3962
      $region42: #{tpu_custom_call.1} parent=5 // pred_check_branch
        %3965 = sbr.rel (%p3963) target = $region44
      $region43: #{tpu_custom_call.1} parent=5 // pred_region
        %s3966 = ssub.s32 %s13, 2
        // Predicated region
        $region45: #{tpu_custom_call.1} parent=43 // pred_check
          %p3967 = pneg %p158
        $region46: #{tpu_custom_call.1} parent=43 // pred_check_branch
          %3969 = sbr.rel (%p3967) target = $region48
        $region47: #{tpu_custom_call.1} parent=43 // pred_region
          %s3970 = sand.u32 %s143, 1
          %s3971 = scalar_lea.sflag [#allocation4], %s3970
          %s3972 = sand.u32 %s143, 1
          %s3973 = smul.addr %s3972, 256
          %s3974 = scalar_lea.vmem [#allocation3], %s3973
          %3975 = dma.done %s3971, 4096
        $region48: #{tpu_custom_call.1} parent=43 // pred_fallthru
          _
      $region44: #{tpu_custom_call.1} parent=5 // pred_fallthru
        _
    $region6: #{tpu_custom_call.1} parent=1 // loop_footer
      %s17 = sadd.s32 1, %s13
    $region7: #{tpu_custom_call.1} parent=1 // loop_footer_branch
      %12 = sbr.rel target = $region3
    $region8: #{tpu_custom_call.1} parent=1 // loop_exit
      _
    %3976 = vsyncpa [#allocation4], 1
    %s3977 = scalar_lea.sflag [#allocation4], 1
    %3978 = vsyncpa %s3977, 1

</llo_original>
